<compile_context>
chip_gen: v7x
topology: tpu7x:2x2x1
jax: 0.10.0
libtpu: 0.0.40
codegen_flags: <defaults>
</compile_context>

<pallas_src>
import functools

import numpy as np
import jax
import jax.numpy as jnp
from jax.experimental import pallas as pl
from jax.experimental.pallas import tpu as pltpu

# (H, W, Cin, Cout) of each Conv3x3(pad=1) -> ReLU -> MaxPool2x2 stage.
_LAYER_CFG = ((32, 32, 3, 6), (16, 16, 6, 12), (8, 8, 12, 18), (4, 4, 18, 24))
_CIN0_PAD = 4            # input channels padded 3 -> 4 (input slab = 32*4 = 128 lanes)
_HEAD_IN = 2 * 2 * 24    # 96 features into the linear head


# ---------------------------------------------------------------------------
# Fused Pallas kernel: conv1..conv4 (+ReLU+pool) + linear head, all in VMEM.
# ---------------------------------------------------------------------------
def _fused_forward_kernel(x_ref, *refs, nb):
    f32, bf16 = jnp.float32, jnp.bfloat16

    def mm(a, b):
        # MXU operands in bf16 (native MXU rate on v5e/v6e/v7x), f32 accumulation.
        return jnp.dot(a.astype(bf16), b.astype(bf16), preferred_element_type=f32)

    nl = len(_LAYER_CFG)
    layer_refs = [refs[4 * l:4 * (l + 1)] for l in range(nl)]
    vsel_ref, hs_ref, wl_ref, bl_ref, o_ref = refs[4 * nl:]

    act = x_ref[...].astype(f32)                                  # (nb*32, 128)
    for (h, _w, _cin, cout), (band_ref, bias_ref, mask_ref, hsel_ref) in zip(
            _LAYER_CFG, layer_refs):
        rows = nb * h
        # Conv3x3(pad=1).  pltpu.roll follows jnp.roll semantics: out[i] = in[i-shift].
        #   ky=0 tap needs act[r-1] (zeroed where r%h==0)   -> roll(+1)      * mask col 0
        #   ky=2 tap needs act[r+1] (zeroed where r%h==h-1) -> roll(rows-1)  * mask col 1
        # All three ky taps are fused into one K = 3*W*Cin matmul against the
        # stacked band weights (kx taps + w zero-padding are baked into the bands).
        a_dn = pltpu.roll(act, 1, 0) * mask_ref[:, 0:1]
        a_up = pltpu.roll(act, rows - 1, 0) * mask_ref[:, 1:2]
        lhs = jnp.concatenate([a_dn, act, a_up], axis=1)          # (rows, 3*W*Cin)
        acc = mm(lhs, band_ref[...])                              # (rows, W*Cout) f32
        acc = jnp.maximum(acc + bias_ref[...], 0.0)               # bias + ReLU (f32 VPU)
        # MaxPool2d(2,2): 2x2 window max via XLU rolls (pair max lands at odd rows /
        # odd w-blocks), then one lane compaction + one sublane compaction matmul
        # using host-precomputed bf16 0/1 selectors (no in-kernel iota matrices).
        m = jnp.maximum(acc, pltpu.roll(acc, cout, 1))            # horizontal pair max
        m = jnp.maximum(m, pltpu.roll(m, 1, 0))                   # vertical pair max
        pooled = mm(m, hsel_ref[...])                             # (rows, (W//2)*Cout)
        act = mm(vsel_ref[0:rows // 2, 0:rows], pooled)           # (rows//2, (W//2)*Cout)

    # Flatten (PyTorch NCHW order folded into the head-weight permutation) + Linear.
    # Output slab is zero-padded to 128 lanes for dense stores.
    top = mm(hs_ref[0], act)                                      # h = 0 rows -> (nb, 48)
    bot = mm(hs_ref[1], act)                                      # h = 1 rows -> (nb, 48)
    logits = mm(top, wl_ref[0]) + mm(bot, wl_ref[1]) + bl_ref[...]
    o_ref[...] = logits.astype(o_ref.dtype)


# ---------------------------------------------------------------------------
# One-time host-side (numpy) constant / weight packing.
# ---------------------------------------------------------------------------
def _band_weights(w_hwio, width):
    """(3,3,Cin,Cout) HWIO conv weight -> (3*width*Cin, width*Cout) stacked bands.

    Rows [ky*width*Cin : (ky+1)*width*Cin] hold the band matrix of kernel row ky:
    band[w_i*Cin+ci, w_o*Cout+co] = W[ky, w_i-w_o+1, ci, co] for |w_i-w_o| <= 1,
    so `concat([act[r-1], act[r], act[r+1]], lanes) @ bands` applies the full 3x3
    kernel at every output column with implicit zero padding at the w borders.
    """
    _, _, cin, cout = w_hwio.shape
    bands = []
    for ky in range(3):
        band = np.zeros((width * cin, width * cout), np.float32)
        for kx in range(3):
            dx = kx - 1
            eye = np.eye(width, k=-dx, dtype=np.float32)  # eye[wi,wo]=1 iff wi==wo+dx
            band = band + np.einsum(
                "io,cd->icod", eye, w_hwio[ky, kx]).reshape(width * cin, width * cout)
        bands.append(band)
    return np.concatenate(bands, axis=0)


def _hpool_select(w, cout):
    """(W*Cout, (W//2)*Cout) 0/1 matrix picking the ODD w-blocks (pair max lands there)."""
    sel = np.zeros((w * cout, (w // 2) * cout), np.float32)
    for j in range(w // 2):
        for c in range(cout):
            sel[(2 * j + 1) * cout + c, j * cout + c] = 1.0
    return sel


def _odd_row_select(rows_out, rows_in):
    """(rows_out, rows_in) 0/1 matrix picking odd rows; shared by all layers (top-left slices)."""
    sel = np.zeros((rows_out, rows_in), np.float32)
    sel[np.arange(rows_out), 2 * np.arange(rows_out) + 1] = 1.0
    return sel


def _head_row_select(nb):
    """(2, nb, 2*nb): [0] picks even rows (h=0), [1] picks odd rows (h=1)."""
    sel = np.zeros((2, nb, 2 * nb), np.float32)
    sel[0, np.arange(nb), 2 * np.arange(nb)] = 1.0
    sel[1, np.arange(nb), 2 * np.arange(nb) + 1] = 1.0
    return sel


def _border_masks(nb, h):
    """(nb*h, 2) f32: col 0 zero where r%h==0 (top border), col 1 zero where r%h==h-1."""
    r = np.arange(nb * h) % h
    return np.stack([(r != 0), (r != h - 1)], axis=1).astype(np.float32)


def _head_weights(wl):
    """(96, out) linear weight (rows in PyTorch NCHW-flatten order c*4 + h*2 + w)
    -> (2, 48, out): slab h has its rows reordered to the kernel's w*24 + c layout."""
    slabs = []
    for hh in range(2):
        idx = np.array([c * 4 + hh * 2 + ww for ww in range(2) for c in range(24)])
        slabs.append(wl[idx, :])
    return np.stack(slabs, axis=0)


def prepare_params(params):
    """Repack PyTorch-layout params into the fused kernel's layout (one-time, host side)."""
    packed = {"convs": []}
    for li, ((h, w, cin, cout), (wc, bc)) in enumerate(zip(_LAYER_CFG, params["convs"])):
        wc = np.asarray(wc, np.float32)                     # HWIO (3, 3, Cin, Cout)
        if li == 0:                                         # pad input channels 3 -> 4
            wc = np.pad(wc, ((0, 0), (0, 0), (0, _CIN0_PAD - wc.shape[2]), (0, 0)))
        band = _band_weights(wc, w)
        bias = np.tile(np.asarray(bc, np.float32), w).reshape(1, w * cout)
        hsel = _hpool_select(w, cout)
        packed["convs"].append((jnp.asarray(band, jnp.bfloat16),
                                jnp.asarray(bias, jnp.float32),
                                jnp.asarray(hsel, jnp.bfloat16)))
    wl = np.asarray(params["linear"][0], np.float32)
    bl = np.asarray(params["linear"][1], np.float32)
    out_size = wl.shape[1]
    out_pad = -(-out_size // 128) * 128                      # lane-dense logits slab
    wl2 = np.zeros((2, _HEAD_IN // 2, out_pad), np.float32)
    wl2[:, :, :out_size] = _head_weights(wl)
    blp = np.zeros((1, out_pad), np.float32)
    blp[0, :out_size] = bl
    packed["linear"] = (jnp.asarray(wl2, jnp.bfloat16), jnp.asarray(blp, jnp.float32))
    return packed


# ---------------------------------------------------------------------------
# Forward wrapper.
# ---------------------------------------------------------------------------
def _const_spec(a):
    zeros = (0,) * a.ndim
    return pl.BlockSpec(a.shape, lambda i: zeros)


def _pick_batch_block(n):
    # Output block's batch dim must be == N or a multiple of 8 ((8,128) rule).
    # nb=8 also yields >= 2 "parallel" grid steps (both v7x TensorCores) once N >= 16.
    return 8 if (n % 8 == 0) else n


def cifar10_forward(x_nchw, packed, out_size, batch_block=None):
    """x_nchw: (N, 3, 32, 32) float32 -> logits (N, out_size)."""
    n = x_nchw.shape[0]
    nb = batch_block if batch_block is not None else _pick_batch_block(n)
    if n % nb != 0 or not (nb == n or nb % 8 == 0):
        raise ValueError(f"batch block {nb} incompatible with batch {n}")
    out_pad = packed["linear"][1].shape[-1]

    # NCHW -> NHWC, pad C 3->4, then lane-dense 2-D: rows = image*32 + h, cols = w*4 + c.
    x = jnp.transpose(x_nchw, (0, 2, 3, 1)).astype(jnp.float32)
    x = jnp.pad(x, ((0, 0), (0, 0), (0, 0), (0, _CIN0_PAD - x.shape[-1])))
    x2d = x.reshape(n * 32, 32 * _CIN0_PAD)

    operands = [x2d]
    in_specs = [pl.BlockSpec((nb * 32, 32 * _CIN0_PAD), lambda i: (i, 0))]
    for (h, w, cin, cout), (band, bias, hsel) in zip(_LAYER_CFG, packed["convs"]):
        mask = jnp.asarray(_border_masks(nb, h), jnp.float32)
        for a in (band, bias, mask, hsel):
            operands.append(a)
            in_specs.append(_const_spec(a))

    vsel = jnp.asarray(_odd_row_select(nb * 16, nb * 32), jnp.bfloat16)
    head_sel = jnp.asarray(_head_row_select(nb), jnp.bfloat16)
    wl, bl = packed["linear"]
    for a in (vsel, head_sel, wl, bl):
        operands.append(a)
        in_specs.append(_const_spec(a))

    kernel = functools.partial(_fused_forward_kernel, nb=nb)
    out = pl.pallas_call(
        kernel,
        out_shape=jax.ShapeDtypeStruct((n, out_pad), jnp.float32),
        grid=(n // nb,),
        in_specs=in_specs,
        out_specs=pl.BlockSpec((nb, out_pad), lambda i: (i, 0)),
        compiler_params=pltpu.CompilerParams(
            dimension_semantics=("parallel",),
            vmem_limit_bytes=32 * 1024 * 1024),
    )(*operands)
    return out[:, :out_size]


# ---------------------------------------------------------------------------
# Deterministic synthetic parameters (same shapes/init scheme as the nn.Module).
# ---------------------------------------------------------------------------
def init_params(key, output_size: int):
    params = {"convs": []}
    for (_, _, cin, cout) in _LAYER_CFG:
        key, kw, kb = jax.random.split(key, 3)
        bound = 1.0 / float(np.sqrt(cin * 9.0))
        w = jax.random.uniform(kw, (3, 3, cin, cout), jnp.float32, -bound, bound)  # HWIO
        b = jax.random.uniform(kb, (cout,), jnp.float32, -bound, bound)
        params["convs"].append((w, b))
    key, kw, kb = jax.random.split(key, 3)
    bound = 1.0 / float(np.sqrt(float(_HEAD_IN)))
    wl = jax.random.uniform(kw, (_HEAD_IN, output_size), jnp.float32, -bound, bound)
    bl = jax.random.uniform(kb, (output_size,), jnp.float32, -bound, bound)
    params["linear"] = (wl, bl)
    return params


if __name__ == "__main__":
    output_size = 10
    key = jax.random.PRNGKey(0)
    kx, kp = jax.random.split(key)
    # CIFAR-10 sized input is required by the architecture (32x32 -> 2x2 after 4 pools).
    x = jax.random.normal(kx, (2, 3, 32, 32), dtype=jnp.float32)
    params = init_params(kp, output_size)
    packed = prepare_params(params)        # one-time host-side weight/constant repack

    fwd = jax.jit(cifar10_forward, static_argnames=("out_size", "batch_block"))
    out = jax.block_until_ready(fwd(x, packed, out_size=output_size))
    assert out.shape == (2, output_size)
    assert out.dtype == jnp.float32
    print("KERNEL_OK")
</pallas_src>

<mosaic_0001>
module attributes {stable_mosaic.version = 11 : i64} {
  func.func @_fused_forward_kernel(%arg0: i32, %arg1: memref<64x128xf32, #tpu.memory_space<vmem>>, %arg2: memref<384x192xbf16, #tpu.memory_space<vmem>>, %arg3: memref<1x192xf32, #tpu.memory_space<vmem>>, %arg4: memref<64x2xf32, #tpu.memory_space<vmem>>, %arg5: memref<192x96xbf16, #tpu.memory_space<vmem>>, %arg6: memref<288x192xbf16, #tpu.memory_space<vmem>>, %arg7: memref<1x192xf32, #tpu.memory_space<vmem>>, %arg8: memref<32x2xf32, #tpu.memory_space<vmem>>, %arg9: memref<192x96xbf16, #tpu.memory_space<vmem>>, %arg10: memref<288x144xbf16, #tpu.memory_space<vmem>>, %arg11: memref<1x144xf32, #tpu.memory_space<vmem>>, %arg12: memref<16x2xf32, #tpu.memory_space<vmem>>, %arg13: memref<144x72xbf16, #tpu.memory_space<vmem>>, %arg14: memref<216x96xbf16, #tpu.memory_space<vmem>>, %arg15: memref<1x96xf32, #tpu.memory_space<vmem>>, %arg16: memref<8x2xf32, #tpu.memory_space<vmem>>, %arg17: memref<96x48xbf16, #tpu.memory_space<vmem>>, %arg18: memref<32x64xbf16, #tpu.memory_space<vmem>>, %arg19: memref<2x2x4xbf16, #tpu.memory_space<vmem>>, %arg20: memref<2x48x128xbf16, #tpu.memory_space<vmem>>, %arg21: memref<1x128xf32, #tpu.memory_space<vmem>>, %arg22: memref<2x128xf32, #tpu.memory_space<vmem>>) attributes {dimension_semantics = [#tpu.dimension_semantics<parallel>], iteration_bounds = array<i64: 1>, scalar_prefetch = 0 : i64, scratch_operands = 0 : i64, tpu.core_type = #tpu.core_type<tc>, window_params = [{transform_indices = @transform_0, window_bounds = array<i64: 64, 128>}, {pipeline_mode = #tpu.pipeline_mode<synchronous>, transform_indices = @transform_1, window_bounds = array<i64: 384, 192>}, {pipeline_mode = #tpu.pipeline_mode<synchronous>, transform_indices = @transform_2, window_bounds = array<i64: 1, 192>}, {pipeline_mode = #tpu.pipeline_mode<synchronous>, transform_indices = @transform_3, window_bounds = array<i64: 64, 2>}, {pipeline_mode = #tpu.pipeline_mode<synchronous>, transform_indices = @transform_4, window_bounds = array<i64: 192, 96>}, {pipeline_mode = #tpu.pipeline_mode<synchronous>, transform_indices = @transform_5, window_bounds = array<i64: 288, 192>}, {pipeline_mode = #tpu.pipeline_mode<synchronous>, transform_indices = @transform_6, window_bounds = array<i64: 1, 192>}, {pipeline_mode = #tpu.pipeline_mode<synchronous>, transform_indices = @transform_7, window_bounds = array<i64: 32, 2>}, {pipeline_mode = #tpu.pipeline_mode<synchronous>, transform_indices = @transform_8, window_bounds = array<i64: 192, 96>}, {pipeline_mode = #tpu.pipeline_mode<synchronous>, transform_indices = @transform_9, window_bounds = array<i64: 288, 144>}, {pipeline_mode = #tpu.pipeline_mode<synchronous>, transform_indices = @transform_10, window_bounds = array<i64: 1, 144>}, {pipeline_mode = #tpu.pipeline_mode<synchronous>, transform_indices = @transform_11, window_bounds = array<i64: 16, 2>}, {pipeline_mode = #tpu.pipeline_mode<synchronous>, transform_indices = @transform_12, window_bounds = array<i64: 144, 72>}, {pipeline_mode = #tpu.pipeline_mode<synchronous>, transform_indices = @transform_13, window_bounds = array<i64: 216, 96>}, {pipeline_mode = #tpu.pipeline_mode<synchronous>, transform_indices = @transform_14, window_bounds = array<i64: 1, 96>}, {pipeline_mode = #tpu.pipeline_mode<synchronous>, transform_indices = @transform_15, window_bounds = array<i64: 8, 2>}, {pipeline_mode = #tpu.pipeline_mode<synchronous>, transform_indices = @transform_16, window_bounds = array<i64: 96, 48>}, {pipeline_mode = #tpu.pipeline_mode<synchronous>, transform_indices = @transform_17, window_bounds = array<i64: 32, 64>}, {pipeline_mode = #tpu.pipeline_mode<synchronous>, transform_indices = @transform_18, window_bounds = array<i64: 2, 2, 4>}, {pipeline_mode = #tpu.pipeline_mode<synchronous>, transform_indices = @transform_19, window_bounds = array<i64: 2, 48, 128>}, {pipeline_mode = #tpu.pipeline_mode<synchronous>, transform_indices = @transform_20, window_bounds = array<i64: 1, 128>}, {transform_indices = @transform_21, window_bounds = array<i64: 2, 128>}]} {
    %c0 = arith.constant 0 : index
    %c0_0 = arith.constant 0 : index
    %0 = vector.load %arg1[%c0, %c0_0] : memref<64x128xf32, #tpu.memory_space<vmem>>, vector<64x128xf32>
    %c1_i32 = arith.constant 1 : i32
    %1 = tpu.dynamic_rotate %0 by %c1_i32 dim 0 : vector<64x128xf32>, i32 -> vector<64x128xf32>
    %c0_1 = arith.constant 0 : index
    %c0_2 = arith.constant 0 : index
    %2 = vector.load %arg4[%c0_1, %c0_2] : memref<64x2xf32, #tpu.memory_space<vmem>>, vector<64x1xf32>
    %3 = vector.broadcast %2 : vector<64x1xf32> to vector<64x128xf32>
    %4 = arith.mulf %1, %3 : vector<64x128xf32>
    %c63_i32 = arith.constant 63 : i32
    %5 = tpu.dynamic_rotate %0 by %c63_i32 dim 0 : vector<64x128xf32>, i32 -> vector<64x128xf32>
    %c0_3 = arith.constant 0 : index
    %c1 = arith.constant 1 : index
    %6 = vector.load %arg4[%c0_3, %c1] : memref<64x2xf32, #tpu.memory_space<vmem>>, vector<64x1xf32>
    %7 = vector.broadcast %6 : vector<64x1xf32> to vector<64x128xf32>
    %8 = arith.mulf %5, %7 : vector<64x128xf32>
    %9 = tpu.concatenate %4, %0, %8 in 1 : vector<64x128xf32>, vector<64x128xf32>, vector<64x128xf32> -> vector<64x384xf32>
    %c0_4 = arith.constant 0 : index
    %c0_5 = arith.constant 0 : index
    %10 = vector.load %arg2[%c0_4, %c0_5] : memref<384x192xbf16, #tpu.memory_space<vmem>>, vector<384x192xbf16>
    %11 = arith.truncf %9 : vector<64x384xf32> to vector<64x384xbf16>
    %cst = arith.constant dense<0.000000e+00> : vector<64x192xf32>
    %12 = tpu.matmul %11, %10, %cst {dimension_numbers = #tpu.dot_dimension_numbers<[1], [0], [0], [1], [0, 0, 1, 1], [], []>} : vector<64x384xbf16>, vector<384x192xbf16>, vector<64x192xf32> -> vector<64x192xf32>
    %c0_6 = arith.constant 0 : index
    %c0_7 = arith.constant 0 : index
    %13 = vector.load %arg3[%c0_6, %c0_7] : memref<1x192xf32, #tpu.memory_space<vmem>>, vector<1x192xf32>
    %14 = vector.broadcast %13 : vector<1x192xf32> to vector<64x192xf32>
    %15 = arith.addf %12, %14 : vector<64x192xf32>
    %cst_8 = arith.constant 0.000000e+00 : f32
    %16 = vector.broadcast %cst_8 : f32 to vector<64x192xf32>
    %17 = arith.maximumf %15, %16 : vector<64x192xf32>
    %c6_i32 = arith.constant 6 : i32
    %18 = tpu.dynamic_rotate %17 by %c6_i32 dim 1 : vector<64x192xf32>, i32 -> vector<64x192xf32>
    %19 = arith.maximumf %17, %18 : vector<64x192xf32>
    %c1_i32_9 = arith.constant 1 : i32
    %20 = tpu.dynamic_rotate %19 by %c1_i32_9 dim 0 : vector<64x192xf32>, i32 -> vector<64x192xf32>
    %21 = arith.maximumf %19, %20 : vector<64x192xf32>
    %c0_10 = arith.constant 0 : index
    %c0_11 = arith.constant 0 : index
    %22 = vector.load %arg5[%c0_10, %c0_11] : memref<192x96xbf16, #tpu.memory_space<vmem>>, vector<192x96xbf16>
    %23 = arith.truncf %21 : vector<64x192xf32> to vector<64x192xbf16>
    %cst_12 = arith.constant dense<0.000000e+00> : vector<64x96xf32>
    %24 = tpu.matmul %23, %22, %cst_12 {dimension_numbers = #tpu.dot_dimension_numbers<[1], [0], [0], [1], [0, 0, 1, 1], [], []>} : vector<64x192xbf16>, vector<192x96xbf16>, vector<64x96xf32> -> vector<64x96xf32>
    %c0_13 = arith.constant 0 : index
    %c0_14 = arith.constant 0 : index
    %25 = vector.load %arg18[%c0_13, %c0_14] : memref<32x64xbf16, #tpu.memory_space<vmem>>, vector<32x64xbf16>
    %26 = arith.truncf %24 : vector<64x96xf32> to vector<64x96xbf16>
    %cst_15 = arith.constant dense<0.000000e+00> : vector<32x96xf32>
    %27 = tpu.matmul %25, %26, %cst_15 {dimension_numbers = #tpu.dot_dimension_numbers<[1], [0], [0], [1], [0, 0, 1, 1], [], []>} : vector<32x64xbf16>, vector<64x96xbf16>, vector<32x96xf32> -> vector<32x96xf32>
    %c1_i32_16 = arith.constant 1 : i32
    %28 = tpu.dynamic_rotate %27 by %c1_i32_16 dim 0 : vector<32x96xf32>, i32 -> vector<32x96xf32>
    %c0_17 = arith.constant 0 : index
    %c0_18 = arith.constant 0 : index
    %29 = vector.load %arg8[%c0_17, %c0_18] : memref<32x2xf32, #tpu.memory_space<vmem>>, vector<32x1xf32>
    %30 = vector.broadcast %29 : vector<32x1xf32> to vector<32x96xf32>
    %31 = arith.mulf %28, %30 : vector<32x96xf32>
    %c31_i32 = arith.constant 31 : i32
    %32 = tpu.dynamic_rotate %27 by %c31_i32 dim 0 : vector<32x96xf32>, i32 -> vector<32x96xf32>
    %c0_19 = arith.constant 0 : index
    %c1_20 = arith.constant 1 : index
    %33 = vector.load %arg8[%c0_19, %c1_20] : memref<32x2xf32, #tpu.memory_space<vmem>>, vector<32x1xf32>
    %34 = vector.broadcast %33 : vector<32x1xf32> to vector<32x96xf32>
    %35 = arith.mulf %32, %34 : vector<32x96xf32>
    %36 = tpu.concatenate %31, %27, %35 in 1 : vector<32x96xf32>, vector<32x96xf32>, vector<32x96xf32> -> vector<32x288xf32>
    %c0_21 = arith.constant 0 : index
    %c0_22 = arith.constant 0 : index
    %37 = vector.load %arg6[%c0_21, %c0_22] : memref<288x192xbf16, #tpu.memory_space<vmem>>, vector<288x192xbf16>
    %38 = arith.truncf %36 : vector<32x288xf32> to vector<32x288xbf16>
    %cst_23 = arith.constant dense<0.000000e+00> : vector<32x192xf32>
    %39 = tpu.matmul %38, %37, %cst_23 {dimension_numbers = #tpu.dot_dimension_numbers<[1], [0], [0], [1], [0, 0, 1, 1], [], []>} : vector<32x288xbf16>, vector<288x192xbf16>, vector<32x192xf32> -> vector<32x192xf32>
    %c0_24 = arith.constant 0 : index
    %c0_25 = arith.constant 0 : index
    %40 = vector.load %arg7[%c0_24, %c0_25] : memref<1x192xf32, #tpu.memory_space<vmem>>, vector<1x192xf32>
    %41 = vector.broadcast %40 : vector<1x192xf32> to vector<32x192xf32>
    %42 = arith.addf %39, %41 : vector<32x192xf32>
    %cst_26 = arith.constant 0.000000e+00 : f32
    %43 = vector.broadcast %cst_26 : f32 to vector<32x192xf32>
    %44 = arith.maximumf %42, %43 : vector<32x192xf32>
    %c12_i32 = arith.constant 12 : i32
    %45 = tpu.dynamic_rotate %44 by %c12_i32 dim 1 : vector<32x192xf32>, i32 -> vector<32x192xf32>
    %46 = arith.maximumf %44, %45 : vector<32x192xf32>
    %c1_i32_27 = arith.constant 1 : i32
    %47 = tpu.dynamic_rotate %46 by %c1_i32_27 dim 0 : vector<32x192xf32>, i32 -> vector<32x192xf32>
    %48 = arith.maximumf %46, %47 : vector<32x192xf32>
    %c0_28 = arith.constant 0 : index
    %c0_29 = arith.constant 0 : index
    %49 = vector.load %arg9[%c0_28, %c0_29] : memref<192x96xbf16, #tpu.memory_space<vmem>>, vector<192x96xbf16>
    %50 = arith.truncf %48 : vector<32x192xf32> to vector<32x192xbf16>
    %cst_30 = arith.constant dense<0.000000e+00> : vector<32x96xf32>
    %51 = tpu.matmul %50, %49, %cst_30 {dimension_numbers = #tpu.dot_dimension_numbers<[1], [0], [0], [1], [0, 0, 1, 1], [], []>} : vector<32x192xbf16>, vector<192x96xbf16>, vector<32x96xf32> -> vector<32x96xf32>
    %c0_31 = arith.constant 0 : index
    %c0_32 = arith.constant 0 : index
    %52 = vector.load %arg18[%c0_31, %c0_32] : memref<32x64xbf16, #tpu.memory_space<vmem>>, vector<16x32xbf16>
    %53 = arith.truncf %51 : vector<32x96xf32> to vector<32x96xbf16>
    %cst_33 = arith.constant dense<0.000000e+00> : vector<16x96xf32>
    %54 = tpu.matmul %52, %53, %cst_33 {dimension_numbers = #tpu.dot_dimension_numbers<[1], [0], [0], [1], [0, 0, 1, 1], [], []>} : vector<16x32xbf16>, vector<32x96xbf16>, vector<16x96xf32> -> vector<16x96xf32>
    %c1_i32_34 = arith.constant 1 : i32
    %55 = tpu.dynamic_rotate %54 by %c1_i32_34 dim 0 : vector<16x96xf32>, i32 -> vector<16x96xf32>
    %c0_35 = arith.constant 0 : index
    %c0_36 = arith.constant 0 : index
    %56 = vector.load %arg12[%c0_35, %c0_36] : memref<16x2xf32, #tpu.memory_space<vmem>>, vector<16x1xf32>
    %57 = vector.broadcast %56 : vector<16x1xf32> to vector<16x96xf32>
    %58 = arith.mulf %55, %57 : vector<16x96xf32>
    %c15_i32 = arith.constant 15 : i32
    %59 = tpu.dynamic_rotate %54 by %c15_i32 dim 0 : vector<16x96xf32>, i32 -> vector<16x96xf32>
    %c0_37 = arith.constant 0 : index
    %c1_38 = arith.constant 1 : index
    %60 = vector.load %arg12[%c0_37, %c1_38] : memref<16x2xf32, #tpu.memory_space<vmem>>, vector<16x1xf32>
    %61 = vector.broadcast %60 : vector<16x1xf32> to vector<16x96xf32>
    %62 = arith.mulf %59, %61 : vector<16x96xf32>
    %63 = tpu.concatenate %58, %54, %62 in 1 : vector<16x96xf32>, vector<16x96xf32>, vector<16x96xf32> -> vector<16x288xf32>
    %c0_39 = arith.constant 0 : index
    %c0_40 = arith.constant 0 : index
    %64 = vector.load %arg10[%c0_39, %c0_40] : memref<288x144xbf16, #tpu.memory_space<vmem>>, vector<288x144xbf16>
    %65 = arith.truncf %63 : vector<16x288xf32> to vector<16x288xbf16>
    %cst_41 = arith.constant dense<0.000000e+00> : vector<16x144xf32>
    %66 = tpu.matmul %65, %64, %cst_41 {dimension_numbers = #tpu.dot_dimension_numbers<[1], [0], [0], [1], [0, 0, 1, 1], [], []>} : vector<16x288xbf16>, vector<288x144xbf16>, vector<16x144xf32> -> vector<16x144xf32>
    %c0_42 = arith.constant 0 : index
    %c0_43 = arith.constant 0 : index
    %67 = vector.load %arg11[%c0_42, %c0_43] : memref<1x144xf32, #tpu.memory_space<vmem>>, vector<1x144xf32>
    %68 = vector.broadcast %67 : vector<1x144xf32> to vector<16x144xf32>
    %69 = arith.addf %66, %68 : vector<16x144xf32>
    %cst_44 = arith.constant 0.000000e+00 : f32
    %70 = vector.broadcast %cst_44 : f32 to vector<16x144xf32>
    %71 = arith.maximumf %69, %70 : vector<16x144xf32>
    %c18_i32 = arith.constant 18 : i32
    %72 = tpu.dynamic_rotate %71 by %c18_i32 dim 1 : vector<16x144xf32>, i32 -> vector<16x144xf32>
    %73 = arith.maximumf %71, %72 : vector<16x144xf32>
    %c1_i32_45 = arith.constant 1 : i32
    %74 = tpu.dynamic_rotate %73 by %c1_i32_45 dim 0 : vector<16x144xf32>, i32 -> vector<16x144xf32>
    %75 = arith.maximumf %73, %74 : vector<16x144xf32>
    %c0_46 = arith.constant 0 : index
    %c0_47 = arith.constant 0 : index
    %76 = vector.load %arg13[%c0_46, %c0_47] : memref<144x72xbf16, #tpu.memory_space<vmem>>, vector<144x72xbf16>
    %77 = arith.truncf %75 : vector<16x144xf32> to vector<16x144xbf16>
    %cst_48 = arith.constant dense<0.000000e+00> : vector<16x72xf32>
    %78 = tpu.matmul %77, %76, %cst_48 {dimension_numbers = #tpu.dot_dimension_numbers<[1], [0], [0], [1], [0, 0, 1, 1], [], []>} : vector<16x144xbf16>, vector<144x72xbf16>, vector<16x72xf32> -> vector<16x72xf32>
    %c0_49 = arith.constant 0 : index
    %c0_50 = arith.constant 0 : index
    %79 = vector.load %arg18[%c0_49, %c0_50] : memref<32x64xbf16, #tpu.memory_space<vmem>>, vector<8x16xbf16>
    %80 = arith.truncf %78 : vector<16x72xf32> to vector<16x72xbf16>
    %cst_51 = arith.constant dense<0.000000e+00> : vector<8x72xf32>
    %81 = tpu.matmul %79, %80, %cst_51 {dimension_numbers = #tpu.dot_dimension_numbers<[1], [0], [0], [1], [0, 0, 1, 1], [], []>} : vector<8x16xbf16>, vector<16x72xbf16>, vector<8x72xf32> -> vector<8x72xf32>
    %c1_i32_52 = arith.constant 1 : i32
    %82 = tpu.dynamic_rotate %81 by %c1_i32_52 dim 0 : vector<8x72xf32>, i32 -> vector<8x72xf32>
    %c0_53 = arith.constant 0 : index
    %c0_54 = arith.constant 0 : index
    %83 = vector.load %arg16[%c0_53, %c0_54] : memref<8x2xf32, #tpu.memory_space<vmem>>, vector<8x1xf32>
    %84 = vector.broadcast %83 : vector<8x1xf32> to vector<8x72xf32>
    %85 = arith.mulf %82, %84 : vector<8x72xf32>
    %c7_i32 = arith.constant 7 : i32
    %86 = tpu.dynamic_rotate %81 by %c7_i32 dim 0 : vector<8x72xf32>, i32 -> vector<8x72xf32>
    %c0_55 = arith.constant 0 : index
    %c1_56 = arith.constant 1 : index
    %87 = vector.load %arg16[%c0_55, %c1_56] : memref<8x2xf32, #tpu.memory_space<vmem>>, vector<8x1xf32>
    %88 = vector.broadcast %87 : vector<8x1xf32> to vector<8x72xf32>
    %89 = arith.mulf %86, %88 : vector<8x72xf32>
    %90 = tpu.concatenate %85, %81, %89 in 1 : vector<8x72xf32>, vector<8x72xf32>, vector<8x72xf32> -> vector<8x216xf32>
    %c0_57 = arith.constant 0 : index
    %c0_58 = arith.constant 0 : index
    %91 = vector.load %arg14[%c0_57, %c0_58] : memref<216x96xbf16, #tpu.memory_space<vmem>>, vector<216x96xbf16>
    %92 = arith.truncf %90 : vector<8x216xf32> to vector<8x216xbf16>
    %cst_59 = arith.constant dense<0.000000e+00> : vector<8x96xf32>
    %93 = tpu.matmul %92, %91, %cst_59 {dimension_numbers = #tpu.dot_dimension_numbers<[1], [0], [0], [1], [0, 0, 1, 1], [], []>} : vector<8x216xbf16>, vector<216x96xbf16>, vector<8x96xf32> -> vector<8x96xf32>
    %c0_60 = arith.constant 0 : index
    %c0_61 = arith.constant 0 : index
    %94 = vector.load %arg15[%c0_60, %c0_61] : memref<1x96xf32, #tpu.memory_space<vmem>>, vector<1x96xf32>
    %95 = vector.broadcast %94 : vector<1x96xf32> to vector<8x96xf32>
    %96 = arith.addf %93, %95 : vector<8x96xf32>
    %cst_62 = arith.constant 0.000000e+00 : f32
    %97 = vector.broadcast %cst_62 : f32 to vector<8x96xf32>
    %98 = arith.maximumf %96, %97 : vector<8x96xf32>
    %c24_i32 = arith.constant 24 : i32
    %99 = tpu.dynamic_rotate %98 by %c24_i32 dim 1 : vector<8x96xf32>, i32 -> vector<8x96xf32>
    %100 = arith.maximumf %98, %99 : vector<8x96xf32>
    %c1_i32_63 = arith.constant 1 : i32
    %101 = tpu.dynamic_rotate %100 by %c1_i32_63 dim 0 : vector<8x96xf32>, i32 -> vector<8x96xf32>
    %102 = arith.maximumf %100, %101 : vector<8x96xf32>
    %c0_64 = arith.constant 0 : index
    %c0_65 = arith.constant 0 : index
    %103 = vector.load %arg17[%c0_64, %c0_65] : memref<96x48xbf16, #tpu.memory_space<vmem>>, vector<96x48xbf16>
    %104 = arith.truncf %102 : vector<8x96xf32> to vector<8x96xbf16>
    %cst_66 = arith.constant dense<0.000000e+00> : vector<8x48xf32>
    %105 = tpu.matmul %104, %103, %cst_66 {dimension_numbers = #tpu.dot_dimension_numbers<[1], [0], [0], [1], [0, 0, 1, 1], [], []>} : vector<8x96xbf16>, vector<96x48xbf16>, vector<8x48xf32> -> vector<8x48xf32>
    %c0_67 = arith.constant 0 : index
    %c0_68 = arith.constant 0 : index
    %106 = vector.load %arg18[%c0_67, %c0_68] : memref<32x64xbf16, #tpu.memory_space<vmem>>, vector<4x8xbf16>
    %107 = arith.truncf %105 : vector<8x48xf32> to vector<8x48xbf16>
    %cst_69 = arith.constant dense<0.000000e+00> : vector<4x48xf32>
    %108 = tpu.matmul %106, %107, %cst_69 {dimension_numbers = #tpu.dot_dimension_numbers<[1], [0], [0], [1], [0, 0, 1, 1], [], []>} : vector<4x8xbf16>, vector<8x48xbf16>, vector<4x48xf32> -> vector<4x48xf32>
    %c0_70 = arith.constant 0 : index
    %c0_71 = arith.constant 0 : index
    %c0_72 = arith.constant 0 : index
    %109 = vector.load %arg19[%c0_70, %c0_71, %c0_72] : memref<2x2x4xbf16, #tpu.memory_space<vmem>>, vector<1x2x4xbf16>
    %110 = vector.shape_cast %109 : vector<1x2x4xbf16> to vector<2x4xbf16>
    %111 = arith.truncf %108 : vector<4x48xf32> to vector<4x48xbf16>
    %cst_73 = arith.constant dense<0.000000e+00> : vector<2x48xf32>
    %112 = tpu.matmul %110, %111, %cst_73 {dimension_numbers = #tpu.dot_dimension_numbers<[1], [0], [0], [1], [0, 0, 1, 1], [], []>} : vector<2x4xbf16>, vector<4x48xbf16>, vector<2x48xf32> -> vector<2x48xf32>
    %c1_74 = arith.constant 1 : index
    %c0_75 = arith.constant 0 : index
    %c0_76 = arith.constant 0 : index
    %113 = vector.load %arg19[%c1_74, %c0_75, %c0_76] : memref<2x2x4xbf16, #tpu.memory_space<vmem>>, vector<1x2x4xbf16>
    %114 = vector.shape_cast %113 : vector<1x2x4xbf16> to vector<2x4xbf16>
    %115 = arith.truncf %108 : vector<4x48xf32> to vector<4x48xbf16>
    %cst_77 = arith.constant dense<0.000000e+00> : vector<2x48xf32>
    %116 = tpu.matmul %114, %115, %cst_77 {dimension_numbers = #tpu.dot_dimension_numbers<[1], [0], [0], [1], [0, 0, 1, 1], [], []>} : vector<2x4xbf16>, vector<4x48xbf16>, vector<2x48xf32> -> vector<2x48xf32>
    %c0_78 = arith.constant 0 : index
    %c0_79 = arith.constant 0 : index
    %c0_80 = arith.constant 0 : index
    %117 = vector.load %arg20[%c0_78, %c0_79, %c0_80] : memref<2x48x128xbf16, #tpu.memory_space<vmem>>, vector<1x48x128xbf16>
    %118 = vector.shape_cast %117 : vector<1x48x128xbf16> to vector<48x128xbf16>
    %119 = arith.truncf %112 : vector<2x48xf32> to vector<2x48xbf16>
    %cst_81 = arith.constant dense<0.000000e+00> : vector<2x128xf32>
    %120 = tpu.matmul %119, %118, %cst_81 {dimension_numbers = #tpu.dot_dimension_numbers<[1], [0], [0], [1], [0, 0, 1, 1], [], []>} : vector<2x48xbf16>, vector<48x128xbf16>, vector<2x128xf32> -> vector<2x128xf32>
    %c1_82 = arith.constant 1 : index
    %c0_83 = arith.constant 0 : index
    %c0_84 = arith.constant 0 : index
    %121 = vector.load %arg20[%c1_82, %c0_83, %c0_84] : memref<2x48x128xbf16, #tpu.memory_space<vmem>>, vector<1x48x128xbf16>
    %122 = vector.shape_cast %121 : vector<1x48x128xbf16> to vector<48x128xbf16>
    %123 = arith.truncf %116 : vector<2x48xf32> to vector<2x48xbf16>
    %cst_85 = arith.constant dense<0.000000e+00> : vector<2x128xf32>
    %124 = tpu.matmul %123, %122, %cst_85 {dimension_numbers = #tpu.dot_dimension_numbers<[1], [0], [0], [1], [0, 0, 1, 1], [], []>} : vector<2x48xbf16>, vector<48x128xbf16>, vector<2x128xf32> -> vector<2x128xf32>
    %125 = arith.addf %120, %124 : vector<2x128xf32>
    %c0_86 = arith.constant 0 : index
    %c0_87 = arith.constant 0 : index
    %126 = vector.load %arg21[%c0_86, %c0_87] : memref<1x128xf32, #tpu.memory_space<vmem>>, vector<1x128xf32>
    %127 = vector.broadcast %126 : vector<1x128xf32> to vector<2x128xf32>
    %128 = arith.addf %125, %127 : vector<2x128xf32>
    %c0_88 = arith.constant 0 : index
    %c0_89 = arith.constant 0 : index
    %129 = vector.load %arg22[%c0_88, %c0_89] : memref<2x128xf32, #tpu.memory_space<vmem>>, vector<2x128xf32>
    tpu.vector_store %arg22[%c0_88, %c0_89], %128 {strides = array<i32>} : memref<2x128xf32, #tpu.memory_space<vmem>>, vector<2x128xf32>,
    return
  }
  func.func @transform_0(%arg0: i32) -> (i32, i32) {
    %c0_i32 = arith.constant 0 : i32
    %c0_i32_0 = arith.constant 0 : i32
    return %arg0, %c0_i32 : i32, i32
  }
  func.func @transform_1(%arg0: i32) -> (i32, i32) {
    %c0_i32 = arith.constant 0 : i32
    %c0_i32_0 = arith.constant 0 : i32
    %c0_i32_1 = arith.constant 0 : i32
    return %c0_i32, %c0_i32_0 : i32, i32
  }
  func.func @transform_2(%arg0: i32) -> (i32, i32) {
    %c0_i32 = arith.constant 0 : i32
    %c0_i32_0 = arith.constant 0 : i32
    %c0_i32_1 = arith.constant 0 : i32
    return %c0_i32, %c0_i32_0 : i32, i32
  }
  func.func @transform_3(%arg0: i32) -> (i32, i32) {
    %c0_i32 = arith.constant 0 : i32
    %c0_i32_0 = arith.constant 0 : i32
    %c0_i32_1 = arith.constant 0 : i32
    return %c0_i32, %c0_i32_0 : i32, i32
  }
  func.func @transform_4(%arg0: i32) -> (i32, i32) {
    %c0_i32 = arith.constant 0 : i32
    %c0_i32_0 = arith.constant 0 : i32
    %c0_i32_1 = arith.constant 0 : i32
    return %c0_i32, %c0_i32_0 : i32, i32
  }
  func.func @transform_5(%arg0: i32) -> (i32, i32) {
    %c0_i32 = arith.constant 0 : i32
    %c0_i32_0 = arith.constant 0 : i32
    %c0_i32_1 = arith.constant 0 : i32
    return %c0_i32, %c0_i32_0 : i32, i32
  }
  func.func @transform_6(%arg0: i32) -> (i32, i32) {
    %c0_i32 = arith.constant 0 : i32
    %c0_i32_0 = arith.constant 0 : i32
    %c0_i32_1 = arith.constant 0 : i32
    return %c0_i32, %c0_i32_0 : i32, i32
  }
  func.func @transform_7(%arg0: i32) -> (i32, i32) {
    %c0_i32 = arith.constant 0 : i32
    %c0_i32_0 = arith.constant 0 : i32
    %c0_i32_1 = arith.constant 0 : i32
    return %c0_i32, %c0_i32_0 : i32, i32
  }
  func.func @transform_8(%arg0: i32) -> (i32, i32) {
    %c0_i32 = arith.constant 0 : i32
    %c0_i32_0 = arith.constant 0 : i32
    %c0_i32_1 = arith.constant 0 : i32
    return %c0_i32, %c0_i32_0 : i32, i32
  }
  func.func @transform_9(%arg0: i32) -> (i32, i32) {
    %c0_i32 = arith.constant 0 : i32
    %c0_i32_0 = arith.constant 0 : i32
    %c0_i32_1 = arith.constant 0 : i32
    return %c0_i32, %c0_i32_0 : i32, i32
  }
  func.func @transform_10(%arg0: i32) -> (i32, i32) {
    %c0_i32 = arith.constant 0 : i32
    %c0_i32_0 = arith.constant 0 : i32
    %c0_i32_1 = arith.constant 0 : i32
    return %c0_i32, %c0_i32_0 : i32, i32
  }
  func.func @transform_11(%arg0: i32) -> (i32, i32) {
    %c0_i32 = arith.constant 0 : i32
    %c0_i32_0 = arith.constant 0 : i32
    %c0_i32_1 = arith.constant 0 : i32
    return %c0_i32, %c0_i32_0 : i32, i32
  }
  func.func @transform_12(%arg0: i32) -> (i32, i32) {
    %c0_i32 = arith.constant 0 : i32
    %c0_i32_0 = arith.constant 0 : i32
    %c0_i32_1 = arith.constant 0 : i32
    return %c0_i32, %c0_i32_0 : i32, i32
  }
  func.func @transform_13(%arg0: i32) -> (i32, i32) {
    %c0_i32 = arith.constant 0 : i32
    %c0_i32_0 = arith.constant 0 : i32
    %c0_i32_1 = arith.constant 0 : i32
    return %c0_i32, %c0_i32_0 : i32, i32
  }
  func.func @transform_14(%arg0: i32) -> (i32, i32) {
    %c0_i32 = arith.constant 0 : i32
    %c0_i32_0 = arith.constant 0 : i32
    %c0_i32_1 = arith.constant 0 : i32
    return %c0_i32, %c0_i32_0 : i32, i32
  }
  func.func @transform_15(%arg0: i32) -> (i32, i32) {
    %c0_i32 = arith.constant 0 : i32
    %c0_i32_0 = arith.constant 0 : i32
    %c0_i32_1 = arith.constant 0 : i32
    return %c0_i32, %c0_i32_0 : i32, i32
  }
  func.func @transform_16(%arg0: i32) -> (i32, i32) {
    %c0_i32 = arith.constant 0 : i32
    %c0_i32_0 = arith.constant 0 : i32
    %c0_i32_1 = arith.constant 0 : i32
    return %c0_i32, %c0_i32_0 : i32, i32
  }
  func.func @transform_17(%arg0: i32) -> (i32, i32) {
    %c0_i32 = arith.constant 0 : i32
    %c0_i32_0 = arith.constant 0 : i32
    %c0_i32_1 = arith.constant 0 : i32
    return %c0_i32, %c0_i32_0 : i32, i32
  }
  func.func @transform_18(%arg0: i32) -> (i32, i32, i32) {
    %c0_i32 = arith.constant 0 : i32
    %c0_i32_0 = arith.constant 0 : i32
    %c0_i32_1 = arith.constant 0 : i32
    %c0_i32_2 = arith.constant 0 : i32
    return %c0_i32, %c0_i32_0, %c0_i32_1 : i32, i32, i32
  }
  func.func @transform_19(%arg0: i32) -> (i32, i32, i32) {
    %c0_i32 = arith.constant 0 : i32
    %c0_i32_0 = arith.constant 0 : i32
    %c0_i32_1 = arith.constant 0 : i32
    %c0_i32_2 = arith.constant 0 : i32
    return %c0_i32, %c0_i32_0, %c0_i32_1 : i32, i32, i32
  }
  func.func @transform_20(%arg0: i32) -> (i32, i32) {
    %c0_i32 = arith.constant 0 : i32
    %c0_i32_0 = arith.constant 0 : i32
    %c0_i32_1 = arith.constant 0 : i32
    return %c0_i32, %c0_i32_0 : i32, i32
  }
  func.func @transform_21(%arg0: i32) -> (i32, i32) {
    %c0_i32 = arith.constant 0 : i32
    %c0_i32_0 = arith.constant 0 : i32
    return %arg0, %c0_i32 : i32, i32
  }
}

</mosaic_0001>

<llo_original>
// kernel: cifar10_forward.1
$region0: #{cifar10_forward.1}
  #allocation0 [shape = 'u32[]', space=smem, size = 0x4, offset = 0x4, fixed_abs, tag = 'smem constant byte address 0x4 - core index']
  #allocation1 [shape = 'u32[144,128]{1,0:T(1,128)}', space=vmem, size = 0x12000, scoped, tag = 'internal scratch']
  %s0 = inlined_call_operand.vmem [shape: f32[64,128], index: 0, kind: input, shape index: {}]
  %s1 = inlined_call_operand.vmem [shape: bf16[384,192], index: 1, kind: input, shape index: {}]
  %s2 = inlined_call_operand.vmem [shape: f32[1,192], index: 2, kind: input, shape index: {}]
  %s3 = inlined_call_operand.vmem [shape: f32[64,2], index: 3, kind: input, shape index: {}]
  %s4 = inlined_call_operand.vmem [shape: bf16[192,96], index: 4, kind: input, shape index: {}]
  %s5 = inlined_call_operand.vmem [shape: bf16[288,192], index: 5, kind: input, shape index: {}]
  %s6 = inlined_call_operand.vmem [shape: f32[1,192], index: 6, kind: input, shape index: {}]
  %s7 = inlined_call_operand.vmem [shape: f32[32,2], index: 7, kind: input, shape index: {}]
  %s8 = inlined_call_operand.vmem [shape: bf16[192,96], index: 8, kind: input, shape index: {}]
  %s9 = inlined_call_operand.vmem [shape: bf16[288,144], index: 9, kind: input, shape index: {}]
  %s10 = inlined_call_operand.vmem [shape: f32[1,144], index: 10, kind: input, shape index: {}]
  %s11 = inlined_call_operand.vmem [shape: f32[16,2], index: 11, kind: input, shape index: {}]
  %s12 = inlined_call_operand.vmem [shape: bf16[144,72], index: 12, kind: input, shape index: {}]
  %s13 = inlined_call_operand.vmem [shape: bf16[216,96], index: 13, kind: input, shape index: {}]
  %s14 = inlined_call_operand.vmem [shape: f32[1,96], index: 14, kind: input, shape index: {}]
  %s15 = inlined_call_operand.vmem [shape: f32[8,2], index: 15, kind: input, shape index: {}]
  %s16 = inlined_call_operand.vmem [shape: bf16[96,48], index: 16, kind: input, shape index: {}]
  %s17 = inlined_call_operand.vmem [shape: bf16[32,64], index: 17, kind: input, shape index: {}]
  %s18 = inlined_call_operand.vmem [shape: bf16[2,2,4], index: 18, kind: input, shape index: {}]
  %s19 = inlined_call_operand.vmem [shape: bf16[2,48,128], index: 19, kind: input, shape index: {}]
  %s20 = inlined_call_operand.vmem [shape: f32[1,128], index: 20, kind: input, shape index: {}]
  %s21 = inlined_call_operand.hbm [shape: f32[2,128], index: 21, kind: output, shape index: {}]
  %s22 = sld [smem:[#allocation0]]
  $region94: #{cifar10_forward.1} parent=0
    _
  %s24 = ssub.s32 1, %s22
  %s25 = scalar_select 0, %s24, %s22
  $region1: #{cifar10_forward.1} parent=0
    #allocation2 [shape = 'u8[1024]{0}', space=vmem, size = 0x400, scoped, tag = 'output window, operand 0, single buffered']
    #allocation3 [shape = 's32[1]{0}', space=sflag, size = 0x4, scoped, tag = 'scoped memory for cifar10_forward.1']
    %26 = vsyncpa [#allocation3], 0
    // Predicated region
    $region2: #{cifar10_forward.1} parent=1 // pred_check
      _
    $region3: #{cifar10_forward.1} parent=1 // pred_check_branch
      %28 = sbr.rel (0) target = $region5
    $region4: #{cifar10_forward.1} parent=1 // pred_region
      _
    $region5: #{cifar10_forward.1} parent=1 // pred_fallthru
      _
    // Predicated region
    $region6: #{cifar10_forward.1} parent=1 // pred_check
      _
    $region7: #{cifar10_forward.1} parent=1 // pred_check_branch
      %30 = sbr.rel (0) target = $region9
    $region8: #{cifar10_forward.1} parent=1 // pred_region
      _
    $region9: #{cifar10_forward.1} parent=1 // pred_fallthru
      _
    // Predicated region
    $region10: #{cifar10_forward.1} parent=1 // pred_check
      _
    $region11: #{cifar10_forward.1} parent=1 // pred_check_branch
      %32 = sbr.rel (0) target = $region13
    $region12: #{cifar10_forward.1} parent=1 // pred_region
      _
    $region13: #{cifar10_forward.1} parent=1 // pred_fallthru
      _
    // Predicated region
    $region14: #{cifar10_forward.1} parent=1 // pred_check
      _
    $region15: #{cifar10_forward.1} parent=1 // pred_check_branch
      %34 = sbr.rel (0) target = $region17
    $region16: #{cifar10_forward.1} parent=1 // pred_region
      _
    $region17: #{cifar10_forward.1} parent=1 // pred_fallthru
      _
    // Predicated region
    $region18: #{cifar10_forward.1} parent=1 // pred_check
      _
    $region19: #{cifar10_forward.1} parent=1 // pred_check_branch
      %36 = sbr.rel (0) target = $region21
    $region20: #{cifar10_forward.1} parent=1 // pred_region
      _
    $region21: #{cifar10_forward.1} parent=1 // pred_fallthru
      _
    // Predicated region
    $region22: #{cifar10_forward.1} parent=1 // pred_check
      _
    $region23: #{cifar10_forward.1} parent=1 // pred_check_branch
      %38 = sbr.rel (0) target = $region25
    $region24: #{cifar10_forward.1} parent=1 // pred_region
      _
    $region25: #{cifar10_forward.1} parent=1 // pred_fallthru
      _
    // Predicated region
    $region26: #{cifar10_forward.1} parent=1 // pred_check
      _
    $region27: #{cifar10_forward.1} parent=1 // pred_check_branch
      %40 = sbr.rel (0) target = $region29
    $region28: #{cifar10_forward.1} parent=1 // pred_region
      _
    $region29: #{cifar10_forward.1} parent=1 // pred_fallthru
      _
    // Predicated region
    $region30: #{cifar10_forward.1} parent=1 // pred_check
      _
    $region31: #{cifar10_forward.1} parent=1 // pred_check_branch
      %42 = sbr.rel (0) target = $region33
    $region32: #{cifar10_forward.1} parent=1 // pred_region
      _
    $region33: #{cifar10_forward.1} parent=1 // pred_fallthru
      _
    // Predicated region
    $region34: #{cifar10_forward.1} parent=1 // pred_check
      _
    $region35: #{cifar10_forward.1} parent=1 // pred_check_branch
      %44 = sbr.rel (0) target = $region37
    $region36: #{cifar10_forward.1} parent=1 // pred_region
      _
    $region37: #{cifar10_forward.1} parent=1 // pred_fallthru
      _
    // Predicated region
    $region38: #{cifar10_forward.1} parent=1 // pred_check
      _
    $region39: #{cifar10_forward.1} parent=1 // pred_check_branch
      %46 = sbr.rel (0) target = $region41
    $region40: #{cifar10_forward.1} parent=1 // pred_region
      _
    $region41: #{cifar10_forward.1} parent=1 // pred_fallthru
      _
    // Predicated region
    $region42: #{cifar10_forward.1} parent=1 // pred_check
      _
    $region43: #{cifar10_forward.1} parent=1 // pred_check_branch
      %48 = sbr.rel (0) target = $region45
    $region44: #{cifar10_forward.1} parent=1 // pred_region
      _
    $region45: #{cifar10_forward.1} parent=1 // pred_fallthru
      _
    // Predicated region
    $region46: #{cifar10_forward.1} parent=1 // pred_check
      _
    $region47: #{cifar10_forward.1} parent=1 // pred_check_branch
      %50 = sbr.rel (0) target = $region49
    $region48: #{cifar10_forward.1} parent=1 // pred_region
      _
    $region49: #{cifar10_forward.1} parent=1 // pred_fallthru
      _
    // Predicated region
    $region50: #{cifar10_forward.1} parent=1 // pred_check
      _
    $region51: #{cifar10_forward.1} parent=1 // pred_check_branch
      %52 = sbr.rel (0) target = $region53
    $region52: #{cifar10_forward.1} parent=1 // pred_region
      _
    $region53: #{cifar10_forward.1} parent=1 // pred_fallthru
      _
    // Predicated region
    $region54: #{cifar10_forward.1} parent=1 // pred_check
      _
    $region55: #{cifar10_forward.1} parent=1 // pred_check_branch
      %54 = sbr.rel (0) target = $region57
    $region56: #{cifar10_forward.1} parent=1 // pred_region
      _
    $region57: #{cifar10_forward.1} parent=1 // pred_fallthru
      _
    // Predicated region
    $region58: #{cifar10_forward.1} parent=1 // pred_check
      _
    $region59: #{cifar10_forward.1} parent=1 // pred_check_branch
      %56 = sbr.rel (0) target = $region61
    $region60: #{cifar10_forward.1} parent=1 // pred_region
      _
    $region61: #{cifar10_forward.1} parent=1 // pred_fallthru
      _
    // Predicated region
    $region62: #{cifar10_forward.1} parent=1 // pred_check
      _
    $region63: #{cifar10_forward.1} parent=1 // pred_check_branch
      %58 = sbr.rel (0) target = $region65
    $region64: #{cifar10_forward.1} parent=1 // pred_region
      _
    $region65: #{cifar10_forward.1} parent=1 // pred_fallthru
      _
    // Predicated region
    $region66: #{cifar10_forward.1} parent=1 // pred_check
      _
    $region67: #{cifar10_forward.1} parent=1 // pred_check_branch
      %60 = sbr.rel (0) target = $region69
    $region68: #{cifar10_forward.1} parent=1 // pred_region
      _
    $region69: #{cifar10_forward.1} parent=1 // pred_fallthru
      _
    // Predicated region
    $region70: #{cifar10_forward.1} parent=1 // pred_check
      _
    $region71: #{cifar10_forward.1} parent=1 // pred_check_branch
      %62 = sbr.rel (0) target = $region73
    $region72: #{cifar10_forward.1} parent=1 // pred_region
      _
    $region73: #{cifar10_forward.1} parent=1 // pred_fallthru
      _
    // Predicated region
    $region74: #{cifar10_forward.1} parent=1 // pred_check
      _
    $region75: #{cifar10_forward.1} parent=1 // pred_check_branch
      %64 = sbr.rel (0) target = $region77
    $region76: #{cifar10_forward.1} parent=1 // pred_region
      _
    $region77: #{cifar10_forward.1} parent=1 // pred_fallthru
      _
    // Predicated region
    $region78: #{cifar10_forward.1} parent=1 // pred_check
      _
    $region79: #{cifar10_forward.1} parent=1 // pred_check_branch
      %66 = sbr.rel (0) target = $region81
    $region80: #{cifar10_forward.1} parent=1 // pred_region
      _
    $region81: #{cifar10_forward.1} parent=1 // pred_fallthru
      _
    // Predicated region
    $region82: #{cifar10_forward.1} parent=1 // pred_check
      _
    $region83: #{cifar10_forward.1} parent=1 // pred_check_branch
      %68 = sbr.rel (0) target = $region85
    $region84: #{cifar10_forward.1} parent=1 // pred_region
      _
    $region85: #{cifar10_forward.1} parent=1 // pred_fallthru
      _
    %v70 = vld [vmem:[%s0] sm:$0xff]
    %v71 = vld [vmem:[%s0 + $0x8] sm:$0xff]
    %v72 = vld [vmem:[%s0 + $0x10] sm:$0xff]
    %v73 = vld [vmem:[%s0 + $0x18] sm:$0xff]
    %v74 = vld [vmem:[%s0 + $0x20] sm:$0xff]
    %v75 = vld [vmem:[%s0 + $0x28] sm:$0xff]
    %v76 = vld [vmem:[%s0 + $0x30] sm:$0xff]
    %v77 = vld [vmem:[%s0 + $0x38] sm:$0xff]
    %v78 = vrot.slane %v70, 7
    %v79 = vrot.slane %v71, 7
    %v80 = vrot.slane %v72, 7
    %v81 = vrot.slane %v73, 7
    %v82 = vrot.slane %v74, 7
    %v83 = vrot.slane %v75, 7
    %v84 = vrot.slane %v76, 7
    %v85 = vrot.slane %v77, 7
    %v86 = vlaneseq
    %v87 = vshrl.u32 %v86, 7
    %vm88 = vcmp.lt.s32.totalorder %v87, 1
    %v89 = vsel %vm88, %v84, %v85
    %v90 = vsel %vm88, %v83, %v84
    %v91 = vsel %vm88, %v82, %v83
    %v92 = vsel %vm88, %v81, %v82
    %v93 = vsel %vm88, %v80, %v81
    %v94 = vsel %vm88, %v79, %v80
    %v95 = vsel %vm88, %v78, %v79
    %v96 = vsel %vm88, %v85, %v78
    %v97 = vld [vmem:[%s3] sm:$0xff]
    %v98 = vld [vmem:[%s3 + $0x8] sm:$0xff]
    %v99 = vld [vmem:[%s3 + $0x10] sm:$0xff]
    %v100 = vld [vmem:[%s3 + $0x18] sm:$0xff]
    %v101 = vld [vmem:[%s3 + $0x20] sm:$0xff]
    %v102 = vld [vmem:[%s3 + $0x28] sm:$0xff]
    %v103 = vld [vmem:[%s3 + $0x30] sm:$0xff]
    %v104 = vld [vmem:[%s3 + $0x38] sm:$0xff]
    %106 = vset.pattern.permute.xlu0 0
    %107 = vperm.xlu0 %106, %v97
    %v108 = vpop.permute.xlu0 %107
    %111 = vset.pattern.permute.xlu0 0
    %112 = vperm.xlu0 %111, %v98
    %v113 = vpop.permute.xlu0 %112
    %116 = vset.pattern.permute.xlu0 0
    %117 = vperm.xlu0 %116, %v99
    %v118 = vpop.permute.xlu0 %117
    %121 = vset.pattern.permute.xlu0 0
    %122 = vperm.xlu0 %121, %v100
    %v123 = vpop.permute.xlu0 %122
    %126 = vset.pattern.permute.xlu0 0
    %127 = vperm.xlu0 %126, %v101
    %v128 = vpop.permute.xlu0 %127
    %131 = vset.pattern.permute.xlu0 0
    %132 = vperm.xlu0 %131, %v102
    %v133 = vpop.permute.xlu0 %132
    %136 = vset.pattern.permute.xlu0 0
    %137 = vperm.xlu0 %136, %v103
    %v138 = vpop.permute.xlu0 %137
    %141 = vset.pattern.permute.xlu0 0
    %142 = vperm.xlu0 %141, %v104
    %v143 = vpop.permute.xlu0 %142
    %v145 = vmul.f32 %v96, %v108
    %v146 = vmul.f32 %v95, %v113
    %v147 = vmul.f32 %v94, %v118
    %v148 = vmul.f32 %v93, %v123
    %v149 = vmul.f32 %v92, %v128
    %v150 = vmul.f32 %v91, %v133
    %v151 = vmul.f32 %v90, %v138
    %v152 = vmul.f32 %v89, %v143
    %v153 = vrot.slane %v70, 1
    %v154 = vrot.slane %v71, 1
    %v155 = vrot.slane %v72, 1
    %v156 = vrot.slane %v73, 1
    %v157 = vrot.slane %v74, 1
    %v158 = vrot.slane %v75, 1
    %v159 = vrot.slane %v76, 1
    %v160 = vrot.slane %v77, 1
    %vm161 = vcmp.lt.s32.totalorder %v87, 7
    %v162 = vsel %vm161, %v159, %v160
    %v163 = vsel %vm161, %v158, %v159
    %v164 = vsel %vm161, %v157, %v158
    %v165 = vsel %vm161, %v156, %v157
    %v166 = vsel %vm161, %v155, %v156
    %v167 = vsel %vm161, %v154, %v155
    %v168 = vsel %vm161, %v153, %v154
    %v169 = vsel %vm161, %v160, %v153
    %170 = vset.pattern.permute.xlu0 1
    %171 = vperm.xlu0 %170, %v97
    %v172 = vpop.permute.xlu0 %171
    %174 = vset.pattern.permute.xlu0 1
    %175 = vperm.xlu0 %174, %v98
    %v176 = vpop.permute.xlu0 %175
    %178 = vset.pattern.permute.xlu0 1
    %179 = vperm.xlu0 %178, %v99
    %v180 = vpop.permute.xlu0 %179
    %182 = vset.pattern.permute.xlu0 1
    %183 = vperm.xlu0 %182, %v100
    %v184 = vpop.permute.xlu0 %183
    %186 = vset.pattern.permute.xlu0 1
    %187 = vperm.xlu0 %186, %v101
    %v188 = vpop.permute.xlu0 %187
    %190 = vset.pattern.permute.xlu0 1
    %191 = vperm.xlu0 %190, %v102
    %v192 = vpop.permute.xlu0 %191
    %194 = vset.pattern.permute.xlu0 1
    %195 = vperm.xlu0 %194, %v103
    %v196 = vpop.permute.xlu0 %195
    %198 = vset.pattern.permute.xlu0 1
    %199 = vperm.xlu0 %198, %v104
    %v200 = vpop.permute.xlu0 %199
    %v202 = vmul.f32 %v168, %v172
    %v203 = vmul.f32 %v167, %v176
    %v204 = vmul.f32 %v166, %v180
    %v205 = vmul.f32 %v165, %v184
    %v206 = vmul.f32 %v164, %v188
    %v207 = vmul.f32 %v163, %v192
    %v208 = vmul.f32 %v162, %v196
    %v209 = vmul.f32 %v169, %v200
    %v210 = vld [vmem:[%s1] sm:$0xff]
    %v211 = vld [vmem:[%s1 + $0x8] sm:$0xff]
    %v212 = vld [vmem:[%s1 + $0x10] sm:$0xff]
    %v213 = vld [vmem:[%s1 + $0x18] sm:$0xff]
    %v214 = vld [vmem:[%s1 + $0x20] sm:$0xff]
    %v215 = vld [vmem:[%s1 + $0x28] sm:$0xff]
    %v216 = vld [vmem:[%s1 + $0x30] sm:$0xff]
    %v217 = vld [vmem:[%s1 + $0x38] sm:$0xff]
    %v218 = vld [vmem:[%s1 + $0x40] sm:$0xff]
    %v219 = vld [vmem:[%s1 + $0x48] sm:$0xff]
    %v220 = vld [vmem:[%s1 + $0x50] sm:$0xff]
    %v221 = vld [vmem:[%s1 + $0x58] sm:$0xff]
    %v222 = vld [vmem:[%s1 + $0x60] sm:$0xff]
    %v223 = vld [vmem:[%s1 + $0x68] sm:$0xff]
    %v224 = vld [vmem:[%s1 + $0x70] sm:$0xff]
    %v225 = vld [vmem:[%s1 + $0x78] sm:$0xff]
    %v226 = vld [vmem:[%s1 + $0x80] sm:$0xff]
    %v227 = vld [vmem:[%s1 + $0x88] sm:$0xff]
    %v228 = vld [vmem:[%s1 + $0x90] sm:$0xff]
    %v229 = vld [vmem:[%s1 + $0x98] sm:$0xff]
    %v230 = vld [vmem:[%s1 + $0xa0] sm:$0xff]
    %v231 = vld [vmem:[%s1 + $0xa8] sm:$0xff]
    %v232 = vld [vmem:[%s1 + $0xb0] sm:$0xff]
    %v233 = vld [vmem:[%s1 + $0xb8] sm:$0xff]
    %v234 = vld [vmem:[%s1 + $0xc0] sm:$0xff]
    %v235 = vld [vmem:[%s1 + $0xc8] sm:$0xff]
    %v236 = vld [vmem:[%s1 + $0xd0] sm:$0xff]
    %v237 = vld [vmem:[%s1 + $0xd8] sm:$0xff]
    %v238 = vld [vmem:[%s1 + $0xe0] sm:$0xff]
    %v239 = vld [vmem:[%s1 + $0xe8] sm:$0xff]
    %v240 = vld [vmem:[%s1 + $0xf0] sm:$0xff]
    %v241 = vld [vmem:[%s1 + $0xf8] sm:$0xff]
    %v242 = vld [vmem:[%s1 + $0x100] sm:$0xff]
    %v243 = vld [vmem:[%s1 + $0x108] sm:$0xff]
    %v244 = vld [vmem:[%s1 + $0x110] sm:$0xff]
    %v245 = vld [vmem:[%s1 + $0x118] sm:$0xff]
    %v246 = vld [vmem:[%s1 + $0x120] sm:$0xff]
    %v247 = vld [vmem:[%s1 + $0x128] sm:$0xff]
    %v248 = vld [vmem:[%s1 + $0x130] sm:$0xff]
    %v249 = vld [vmem:[%s1 + $0x138] sm:$0xff]
    %v250 = vld [vmem:[%s1 + $0x140] sm:$0xff]
    %v251 = vld [vmem:[%s1 + $0x148] sm:$0xff]
    %v252 = vld [vmem:[%s1 + $0x150] sm:$0xff]
    %v253 = vld [vmem:[%s1 + $0x158] sm:$0xff]
    %v254 = vld [vmem:[%s1 + $0x160] sm:$0xff]
    %v255 = vld [vmem:[%s1 + $0x168] sm:$0xff]
    %v256 = vld [vmem:[%s1 + $0x170] sm:$0xff]
    %v257 = vld [vmem:[%s1 + $0x178] sm:$0xff]
    %v258 = vpack.c.bf16 %v146, %v145
    %v259 = vpack.c.bf16 %v71, %v70
    %v260 = vpack.c.bf16 %v203, %v202
    %v261 = vpack.c.bf16 %v148, %v147
    %v262 = vpack.c.bf16 %v73, %v72
    %v263 = vpack.c.bf16 %v205, %v204
    %v264 = vpack.c.bf16 %v150, %v149
    %v265 = vpack.c.bf16 %v75, %v74
    %v266 = vpack.c.bf16 %v207, %v206
    %v267 = vpack.c.bf16 %v152, %v151
    %v268 = vpack.c.bf16 %v77, %v76
    %v269 = vpack.c.bf16 %v209, %v208
    %v270 = vld [vmem:[%s2] sm:$0x3]
    %v272 = vlaneseq
    %v273 = vshrl.u32 %v272, 7
    %v274 = vsub.s32 0, %v273
    %v275 = vrot.slane %v270, %v274
    %v276 = vlaneseq
    %v277 = vshrl.u32 %v276, 7
    %v278 = vsub.s32 1, %v277
    %v279 = vrot.slane %v270, %v278
    %v330 = vunpack.c.l.b16 %v210
    %v331 = vunpack.c.h.b16 %v210
    %v332 = vunpack.c.l.b16 %v211
    %v333 = vunpack.c.h.b16 %v211
    %v334 = vunpack.c.l.b16 %v212
    %v335 = vunpack.c.h.b16 %v212
    %v336 = vunpack.c.l.b16 %v213
    %v337 = vunpack.c.h.b16 %v213
    %v338 = vunpack.c.l.b16 %v214
    %v339 = vunpack.c.h.b16 %v214
    %v340 = vunpack.c.l.b16 %v215
    %v341 = vunpack.c.h.b16 %v215
    %v342 = vunpack.c.l.b16 %v216
    %v343 = vunpack.c.h.b16 %v216
    %v344 = vunpack.c.l.b16 %v217
    %v345 = vunpack.c.h.b16 %v217
    %v346 = vunpack.c.l.b16 %v218
    %v347 = vunpack.c.h.b16 %v218
    %v348 = vunpack.c.l.b16 %v219
    %v349 = vunpack.c.h.b16 %v219
    %v350 = vunpack.c.l.b16 %v220
    %v351 = vunpack.c.h.b16 %v220
    %v352 = vunpack.c.l.b16 %v221
    %v353 = vunpack.c.h.b16 %v221
    %v354 = vunpack.c.l.b16 %v222
    %v355 = vunpack.c.h.b16 %v222
    %v356 = vunpack.c.l.b16 %v223
    %v357 = vunpack.c.h.b16 %v223
    %v358 = vunpack.c.l.b16 %v224
    %v359 = vunpack.c.h.b16 %v224
    %v360 = vunpack.c.l.b16 %v225
    %v361 = vunpack.c.h.b16 %v225
    %v362 = vunpack.c.l.b16 %v226
    %v363 = vunpack.c.h.b16 %v226
    %v364 = vunpack.c.l.b16 %v227
    %v365 = vunpack.c.h.b16 %v227
    %v366 = vunpack.c.l.b16 %v228
    %v367 = vunpack.c.h.b16 %v228
    %v368 = vunpack.c.l.b16 %v229
    %v369 = vunpack.c.h.b16 %v229
    %v370 = vunpack.c.l.b16 %v230
    %v371 = vunpack.c.h.b16 %v230
    %v372 = vunpack.c.l.b16 %v231
    %v373 = vunpack.c.h.b16 %v231
    %v374 = vunpack.c.l.b16 %v232
    %v375 = vunpack.c.h.b16 %v232
    %v376 = vunpack.c.l.b16 %v233
    %v377 = vunpack.c.h.b16 %v233
    %v378 = vunpack.c.l.b16 %v234
    %v379 = vunpack.c.h.b16 %v234
    %v380 = vunpack.c.l.b16 %v235
    %v381 = vunpack.c.h.b16 %v235
    %v382 = vunpack.c.l.b16 %v236
    %v383 = vunpack.c.h.b16 %v236
    %v384 = vunpack.c.l.b16 %v237
    %v385 = vunpack.c.h.b16 %v237
    %v386 = vunpack.c.l.b16 %v238
    %v387 = vunpack.c.h.b16 %v238
    %v388 = vunpack.c.l.b16 %v239
    %v389 = vunpack.c.h.b16 %v239
    %v390 = vunpack.c.l.b16 %v240
    %v391 = vunpack.c.h.b16 %v240
    %v392 = vunpack.c.l.b16 %v241
    %v393 = vunpack.c.h.b16 %v241
    %v394 = vunpack.c.l.b16 %v242
    %v395 = vunpack.c.h.b16 %v242
    %v396 = vunpack.c.l.b16 %v243
    %v397 = vunpack.c.h.b16 %v243
    %v398 = vunpack.c.l.b16 %v244
    %v399 = vunpack.c.h.b16 %v244
    %v400 = vunpack.c.l.b16 %v245
    %v401 = vunpack.c.h.b16 %v245
    %v402 = vunpack.c.l.b16 %v246
    %v403 = vunpack.c.h.b16 %v246
    %v404 = vunpack.c.l.b16 %v247
    %v405 = vunpack.c.h.b16 %v247
    %v406 = vunpack.c.l.b16 %v248
    %v407 = vunpack.c.h.b16 %v248
    %v408 = vunpack.c.l.b16 %v249
    %v409 = vunpack.c.h.b16 %v249
    %v410 = vunpack.c.l.b16 %v250
    %v411 = vunpack.c.h.b16 %v250
    %v412 = vunpack.c.l.b16 %v251
    %v413 = vunpack.c.h.b16 %v251
    %v414 = vunpack.c.l.b16 %v252
    %v415 = vunpack.c.h.b16 %v252
    %v416 = vunpack.c.l.b16 %v253
    %v417 = vunpack.c.h.b16 %v253
    %v418 = vunpack.c.l.b16 %v254
    %v419 = vunpack.c.h.b16 %v254
    %v420 = vunpack.c.l.b16 %v255
    %v421 = vunpack.c.h.b16 %v255
    %v422 = vunpack.c.l.b16 %v256
    %v423 = vunpack.c.h.b16 %v256
    %v424 = vunpack.c.l.b16 %v257
    %v425 = vunpack.c.h.b16 %v257
    %v426 = vpack.c.b16 %v332, %v330
    %v427 = vpack.c.b16 %v333, %v331
    %v428 = vpack.c.b16 %v336, %v334
    %v429 = vpack.c.b16 %v337, %v335
    %v430 = vpack.c.b16 %v340, %v338
    %v431 = vpack.c.b16 %v341, %v339
    %v432 = vpack.c.b16 %v344, %v342
    %v433 = vpack.c.b16 %v345, %v343
    %v434 = vpack.c.b16 %v348, %v346
    %v435 = vpack.c.b16 %v349, %v347
    %v436 = vpack.c.b16 %v352, %v350
    %v437 = vpack.c.b16 %v353, %v351
    %v438 = vpack.c.b16 %v356, %v354
    %v439 = vpack.c.b16 %v357, %v355
    %v440 = vpack.c.b16 %v360, %v358
    %v441 = vpack.c.b16 %v361, %v359
    %v442 = vpack.c.b16 %v364, %v362
    %v443 = vpack.c.b16 %v365, %v363
    %v444 = vpack.c.b16 %v368, %v366
    %v445 = vpack.c.b16 %v369, %v367
    %v446 = vpack.c.b16 %v372, %v370
    %v447 = vpack.c.b16 %v373, %v371
    %v448 = vpack.c.b16 %v376, %v374
    %v449 = vpack.c.b16 %v377, %v375
    %v450 = vpack.c.b16 %v380, %v378
    %v451 = vpack.c.b16 %v381, %v379
    %v452 = vpack.c.b16 %v384, %v382
    %v453 = vpack.c.b16 %v385, %v383
    %v454 = vpack.c.b16 %v388, %v386
    %v455 = vpack.c.b16 %v389, %v387
    %v456 = vpack.c.b16 %v392, %v390
    %v457 = vpack.c.b16 %v393, %v391
    %v458 = vpack.c.b16 %v396, %v394
    %v459 = vpack.c.b16 %v397, %v395
    %v460 = vpack.c.b16 %v400, %v398
    %v461 = vpack.c.b16 %v401, %v399
    %v462 = vpack.c.b16 %v404, %v402
    %v463 = vpack.c.b16 %v405, %v403
    %v464 = vpack.c.b16 %v408, %v406
    %v465 = vpack.c.b16 %v409, %v407
    %v466 = vpack.c.b16 %v412, %v410
    %v467 = vpack.c.b16 %v413, %v411
    %v468 = vpack.c.b16 %v416, %v414
    %v469 = vpack.c.b16 %v417, %v415
    %v470 = vpack.c.b16 %v420, %v418
    %v471 = vpack.c.b16 %v421, %v419
    %v472 = vpack.c.b16 %v424, %v422
    %v473 = vpack.c.b16 %v425, %v423
    %522 = vmatprep.subr.bf16.mxu0 %v427
    %523 = vmatpush1.bf16.msra.mxu0 %v426
    %524 = vmatprep.subr.bf16.mxu0 %v429
    %525 = vmatpush1.bf16.msra.mxu0 %v428
    %526 = vmatprep.subr.bf16.mxu0 %v431
    %527 = vmatpush1.bf16.msra.mxu0 %v430
    %528 = vmatprep.subr.bf16.mxu0 %v433
    %529 = vmatpush1.bf16.msra.mxu0 %v432
    %530 = vmatprep.subr.bf16.mxu0 %v435
    %531 = vmatpush1.bf16.msra.mxu0 %v434
    %532 = vmatprep.subr.bf16.mxu0 %v437
    %533 = vmatpush1.bf16.msra.mxu0 %v436
    %534 = vmatprep.subr.bf16.mxu0 %v439
    %535 = vmatpush1.bf16.msra.mxu0 %v438
    %536 = vmatprep.subr.bf16.mxu0 %v441
    %537 = vmatpush1.bf16.msra.mxu0 %v440
    %538 = vmatprep.subr.bf16.mxu0 %v443
    %539 = vmatpush1.bf16.msra.mxu0 %v442
    %540 = vmatprep.subr.bf16.mxu0 %v445
    %541 = vmatpush1.bf16.msra.mxu0 %v444
    %542 = vmatprep.subr.bf16.mxu0 %v447
    %543 = vmatpush1.bf16.msra.mxu0 %v446
    %544 = vmatprep.subr.bf16.mxu0 %v449
    %545 = vmatpush1.bf16.msra.mxu0 %v448
    %546 = vmatprep.subr.bf16.mxu0 %v451
    %547 = vmatpush1.bf16.msra.mxu0 %v450
    %548 = vmatprep.subr.bf16.mxu0 %v453
    %549 = vmatpush1.bf16.msra.mxu0 %v452
    %550 = vmatprep.subr.bf16.mxu0 %v455
    %551 = vmatpush1.bf16.msra.mxu0 %v454
    %552 = vmatprep.subr.bf16.mxu0 %v457
    %553 = vmatpush1.bf16.msra.mxu0 %v456
    %554 = vmatprep.mubr.bf16.mxu0 %v259
    %555 = vmatmul.mubr.bf16.gmra.mrb[0].mxu0 %v258
    %v556 = vpop.f32.mrb[0].mxu0
    %v557 = vadd.f32 %v275, %v556
    %v558 = vpop.f32.mrb[0].mxu0
    %v559 = vadd.f32 %v279, %v558
    %v560 = vpop.f32.mrb[0].mxu0
    %v561 = vadd.f32 %v275, %v560
    %v562 = vpop.f32.mrb[0].mxu0
    %v563 = vadd.f32 %v279, %v562
    %564 = vmatprep.mubr.bf16.mxu0 %v262
    %565 = vmatmul.mubr.bf16.gmra.mrb[0].mxu0 %v261
    %v566 = vpop.f32.mrb[0].mxu0
    %v567 = vadd.f32 %v275, %v566
    %v568 = vpop.f32.mrb[0].mxu0
    %v569 = vadd.f32 %v279, %v568
    %v570 = vpop.f32.mrb[0].mxu0
    %v571 = vadd.f32 %v275, %v570
    %v572 = vpop.f32.mrb[0].mxu0
    %v573 = vadd.f32 %v279, %v572
    %574 = vmatprep.mubr.bf16.mxu0 %v265
    %575 = vmatmul.mubr.bf16.gmra.mrb[0].mxu0 %v264
    %v576 = vpop.f32.mrb[0].mxu0
    %v577 = vadd.f32 %v275, %v576
    %v578 = vpop.f32.mrb[0].mxu0
    %v579 = vadd.f32 %v279, %v578
    %v580 = vpop.f32.mrb[0].mxu0
    %v581 = vadd.f32 %v275, %v580
    %v582 = vpop.f32.mrb[0].mxu0
    %v583 = vadd.f32 %v279, %v582
    %584 = vmatprep.mubr.bf16.mxu0 %v268
    %585 = vmatmul.mubr.bf16.gmra.mrb[0].mxu0 %v267
    %v586 = vpop.f32.mrb[0].mxu0
    %v587 = vadd.f32 %v275, %v586
    %v588 = vpop.f32.mrb[0].mxu0
    %v589 = vadd.f32 %v279, %v588
    %v590 = vpop.f32.mrb[0].mxu0
    %v591 = vadd.f32 %v275, %v590
    %v592 = vpop.f32.mrb[0].mxu0
    %v593 = vadd.f32 %v279, %v592
    %594 = vdwg.mxu0
    %595 = vmatprep.subr.bf16.mxu0 %v459
    %596 = vmatpush1.bf16.msra.mxu0 %v458
    %597 = vmatprep.subr.bf16.mxu0 %v461
    %598 = vmatpush1.bf16.msra.mxu0 %v460
    %599 = vmatprep.subr.bf16.mxu0 %v463
    %600 = vmatpush1.bf16.msra.mxu0 %v462
    %601 = vmatprep.subr.bf16.mxu0 %v465
    %602 = vmatpush1.bf16.msra.mxu0 %v464
    %603 = vmatprep.subr.bf16.mxu0 %v467
    %604 = vmatpush1.bf16.msra.mxu0 %v466
    %605 = vmatprep.subr.bf16.mxu0 %v469
    %606 = vmatpush1.bf16.msra.mxu0 %v468
    %607 = vmatprep.subr.bf16.mxu0 %v471
    %608 = vmatpush1.bf16.msra.mxu0 %v470
    %609 = vmatprep.subr.bf16.mxu0 %v473
    %610 = vmatpush1.bf16.msra.mxu0 %v472
    %611 = vmatprep.subr.bf16.mxu0 0
    %612 = vmatpush1.bf16.msra.mxu0 0
    %613 = vmatprep.subr.bf16.mxu0 0
    %614 = vmatpush1.bf16.msra.mxu0 0
    %615 = vmatprep.subr.bf16.mxu0 0
    %616 = vmatpush1.bf16.msra.mxu0 0
    %617 = vmatprep.subr.bf16.mxu0 0
    %618 = vmatpush1.bf16.msra.mxu0 0
    %619 = vmatprep.subr.bf16.mxu0 0
    %620 = vmatpush1.bf16.msra.mxu0 0
    %621 = vmatprep.subr.bf16.mxu0 0
    %622 = vmatpush1.bf16.msra.mxu0 0
    %623 = vmatprep.subr.bf16.mxu0 0
    %624 = vmatpush1.bf16.msra.mxu0 0
    %625 = vmatprep.subr.bf16.mxu0 0
    %626 = vmatpush1.bf16.msra.mxu0 0
    %627 = vmatprep.mubr.bf16.mxu0 0
    %628 = vmatmul.mubr.bf16.gmra.mrb[0].mxu0 %v260
    %v629 = vpop.f32.mrb[0].mxu0
    %v630 = vadd.f32 %v557, %v629
    %v631 = vpop.f32.mrb[0].mxu0
    %v632 = vadd.f32 %v559, %v631
    %v633 = vpop.f32.mrb[0].mxu0
    %v634 = vadd.f32 %v561, %v633
    %v635 = vpop.f32.mrb[0].mxu0
    %v636 = vadd.f32 %v563, %v635
    %637 = vmatprep.mubr.bf16.mxu0 0
    %638 = vmatmul.mubr.bf16.gmra.mrb[0].mxu0 %v263
    %v639 = vpop.f32.mrb[0].mxu0
    %v640 = vadd.f32 %v567, %v639
    %v641 = vpop.f32.mrb[0].mxu0
    %v642 = vadd.f32 %v569, %v641
    %v643 = vpop.f32.mrb[0].mxu0
    %v644 = vadd.f32 %v571, %v643
    %v645 = vpop.f32.mrb[0].mxu0
    %v646 = vadd.f32 %v573, %v645
    %647 = vmatprep.mubr.bf16.mxu0 0
    %648 = vmatmul.mubr.bf16.gmra.mrb[0].mxu0 %v266
    %v649 = vpop.f32.mrb[0].mxu0
    %v650 = vadd.f32 %v577, %v649
    %v651 = vpop.f32.mrb[0].mxu0
    %v652 = vadd.f32 %v579, %v651
    %v653 = vpop.f32.mrb[0].mxu0
    %v654 = vadd.f32 %v581, %v653
    %v655 = vpop.f32.mrb[0].mxu0
    %v656 = vadd.f32 %v583, %v655
    %657 = vmatprep.mubr.bf16.mxu0 0
    %658 = vmatmul.mubr.bf16.gmra.mrb[0].mxu0 %v269
    %v659 = vpop.f32.mrb[0].mxu0
    %v660 = vadd.f32 %v587, %v659
    %v661 = vpop.f32.mrb[0].mxu0
    %v662 = vadd.f32 %v589, %v661
    %v663 = vpop.f32.mrb[0].mxu0
    %v664 = vadd.f32 %v591, %v663
    %v665 = vpop.f32.mrb[0].mxu0
    %v666 = vadd.f32 %v593, %v665
    %667 = vdwg.mxu0
    %v668 = vmax.f32 %v630, 0.0
    %v669 = vmax.f32 %v632, 0.0
    %v670 = vmax.f32 %v634, 0.0
    %v671 = vmax.f32 %v636, 0.0
    %v672 = vmax.f32 %v640, 0.0
    %v673 = vmax.f32 %v642, 0.0
    %v674 = vmax.f32 %v644, 0.0
    %v675 = vmax.f32 %v646, 0.0
    %v676 = vmax.f32 %v650, 0.0
    %v677 = vmax.f32 %v652, 0.0
    %v678 = vmax.f32 %v654, 0.0
    %v679 = vmax.f32 %v656, 0.0
    %v680 = vmax.f32 %v660, 0.0
    %v681 = vmax.f32 %v662, 0.0
    %v682 = vmax.f32 %v664, 0.0
    %v683 = vmax.f32 %v666, 0.0
    %vm684 = vcmask 1048064
    %685 = vrot.lane.b32.xlu0 %v668, 64
    %v686 = vpop.permute.xlu0 %685
    %v687 = vsel %vm684, %v686, %v669
    %688 = vrot.lane.b32.xlu0 %v670, 64
    %v689 = vpop.permute.xlu0 %688
    %v690 = vsel %vm684, %v689, %v671
    %691 = vrot.lane.b32.xlu0 %v672, 64
    %v692 = vpop.permute.xlu0 %691
    %v693 = vsel %vm684, %v692, %v673
    %694 = vrot.lane.b32.xlu0 %v674, 64
    %v695 = vpop.permute.xlu0 %694
    %v696 = vsel %vm684, %v695, %v675
    %697 = vrot.lane.b32.xlu0 %v676, 64
    %v698 = vpop.permute.xlu0 %697
    %v699 = vsel %vm684, %v698, %v677
    %700 = vrot.lane.b32.xlu0 %v678, 64
    %v701 = vpop.permute.xlu0 %700
    %v702 = vsel %vm684, %v701, %v679
    %703 = vrot.lane.b32.xlu0 %v680, 64
    %v704 = vpop.permute.xlu0 %703
    %v705 = vsel %vm684, %v704, %v681
    %706 = vrot.lane.b32.xlu0 %v682, 64
    %v707 = vpop.permute.xlu0 %706
    %v708 = vsel %vm684, %v707, %v683
    %709 = vrot.lane.b32.xlu0 %v687, 64
    %v710 = vpop.permute.xlu0 %709
    %711 = vrot.lane.b32.xlu0 %v690, 64
    %v712 = vpop.permute.xlu0 %711
    %713 = vrot.lane.b32.xlu0 %v693, 64
    %v714 = vpop.permute.xlu0 %713
    %715 = vrot.lane.b32.xlu0 %v696, 64
    %v716 = vpop.permute.xlu0 %715
    %717 = vrot.lane.b32.xlu0 %v699, 64
    %v718 = vpop.permute.xlu0 %717
    %719 = vrot.lane.b32.xlu0 %v702, 64
    %v720 = vpop.permute.xlu0 %719
    %721 = vrot.lane.b32.xlu0 %v705, 64
    %v722 = vpop.permute.xlu0 %721
    %723 = vrot.lane.b32.xlu0 %v708, 64
    %v724 = vpop.permute.xlu0 %723
    %v725 = vsel %vm684, %v710, %v686
    %v726 = vsel %vm684, %v712, %v689
    %v727 = vsel %vm684, %v714, %v692
    %v728 = vsel %vm684, %v716, %v695
    %v729 = vsel %vm684, %v718, %v698
    %v730 = vsel %vm684, %v720, %v701
    %v731 = vsel %vm684, %v722, %v704
    %v732 = vsel %vm684, %v724, %v707
    %749 = vrot.lane.b32.xlu0 %v687, 70
    %v750 = vpop.permute.xlu0 %749
    %751 = vrot.lane.b32.xlu0 %v725, 70
    %v752 = vpop.permute.xlu0 %751
    %753 = vrot.lane.b32.xlu0 %v690, 70
    %v754 = vpop.permute.xlu0 %753
    %755 = vrot.lane.b32.xlu0 %v726, 70
    %v756 = vpop.permute.xlu0 %755
    %757 = vrot.lane.b32.xlu0 %v693, 70
    %v758 = vpop.permute.xlu0 %757
    %759 = vrot.lane.b32.xlu0 %v727, 70
    %v760 = vpop.permute.xlu0 %759
    %761 = vrot.lane.b32.xlu0 %v696, 70
    %v762 = vpop.permute.xlu0 %761
    %763 = vrot.lane.b32.xlu0 %v728, 70
    %v764 = vpop.permute.xlu0 %763
    %765 = vrot.lane.b32.xlu0 %v699, 70
    %v766 = vpop.permute.xlu0 %765
    %767 = vrot.lane.b32.xlu0 %v729, 70
    %v768 = vpop.permute.xlu0 %767
    %769 = vrot.lane.b32.xlu0 %v702, 70
    %v770 = vpop.permute.xlu0 %769
    %771 = vrot.lane.b32.xlu0 %v730, 70
    %v772 = vpop.permute.xlu0 %771
    %773 = vrot.lane.b32.xlu0 %v705, 70
    %v774 = vpop.permute.xlu0 %773
    %775 = vrot.lane.b32.xlu0 %v731, 70
    %v776 = vpop.permute.xlu0 %775
    %777 = vrot.lane.b32.xlu0 %v708, 70
    %v778 = vpop.permute.xlu0 %777
    %779 = vrot.lane.b32.xlu0 %v732, 70
    %v780 = vpop.permute.xlu0 %779
    %vm781 = vcmask 572416
    %v782 = vsel %vm781, %v750, %v752
    %v783 = vsel %vm781, %v754, %v756
    %v784 = vsel %vm781, %v758, %v760
    %v785 = vsel %vm781, %v762, %v764
    %v786 = vsel %vm781, %v766, %v768
    %v787 = vsel %vm781, %v770, %v772
    %v788 = vsel %vm781, %v774, %v776
    %v789 = vsel %vm781, %v778, %v780
    %v806 = vmax.f32 %v668, %v782
    %v807 = vmax.f32 %v669, %v752
    %v808 = vmax.f32 %v670, %v783
    %v809 = vmax.f32 %v671, %v756
    %v810 = vmax.f32 %v672, %v784
    %v811 = vmax.f32 %v673, %v760
    %v812 = vmax.f32 %v674, %v785
    %v813 = vmax.f32 %v675, %v764
    %v814 = vmax.f32 %v676, %v786
    %v815 = vmax.f32 %v677, %v768
    %v816 = vmax.f32 %v678, %v787
    %v817 = vmax.f32 %v679, %v772
    %v818 = vmax.f32 %v680, %v788
    %v819 = vmax.f32 %v681, %v776
    %v820 = vmax.f32 %v682, %v789
    %v821 = vmax.f32 %v683, %v780
    %v822 = vrot.slane %v806, 7
    %v823 = vrot.slane %v807, 7
    %v824 = vrot.slane %v808, 7
    %v825 = vrot.slane %v809, 7
    %v826 = vrot.slane %v810, 7
    %v827 = vrot.slane %v811, 7
    %v828 = vrot.slane %v812, 7
    %v829 = vrot.slane %v813, 7
    %v830 = vrot.slane %v814, 7
    %v831 = vrot.slane %v815, 7
    %v832 = vrot.slane %v816, 7
    %v833 = vrot.slane %v817, 7
    %v834 = vrot.slane %v818, 7
    %v835 = vrot.slane %v819, 7
    %v836 = vrot.slane %v820, 7
    %v837 = vrot.slane %v821, 7
    %v838 = vsel %vm88, %v834, %v836
    %v839 = vsel %vm88, %v835, %v837
    %v840 = vsel %vm88, %v832, %v834
    %v841 = vsel %vm88, %v833, %v835
    %v842 = vsel %vm88, %v830, %v832
    %v843 = vsel %vm88, %v831, %v833
    %v844 = vsel %vm88, %v828, %v830
    %v845 = vsel %vm88, %v829, %v831
    %v846 = vsel %vm88, %v826, %v828
    %v847 = vsel %vm88, %v827, %v829
    %v848 = vsel %vm88, %v824, %v826
    %v849 = vsel %vm88, %v825, %v827
    %v850 = vsel %vm88, %v822, %v824
    %v851 = vsel %vm88, %v823, %v825
    %v852 = vsel %vm88, %v836, %v822
    %v853 = vsel %vm88, %v837, %v823
    %v854 = vmax.f32 %v806, %v852
    %v855 = vmax.f32 %v807, %v853
    %v856 = vmax.f32 %v808, %v850
    %v857 = vmax.f32 %v809, %v851
    %v858 = vmax.f32 %v810, %v848
    %v859 = vmax.f32 %v811, %v849
    %v860 = vmax.f32 %v812, %v846
    %v861 = vmax.f32 %v813, %v847
    %v862 = vmax.f32 %v814, %v844
    %v863 = vmax.f32 %v815, %v845
    %v864 = vmax.f32 %v816, %v842
    %v865 = vmax.f32 %v817, %v843
    %v866 = vmax.f32 %v818, %v840
    %v867 = vmax.f32 %v819, %v841
    %v868 = vmax.f32 %v820, %v838
    %v869 = vmax.f32 %v821, %v839
    %v870 = vld [vmem:[%s4] sm:$0xf]
    %v871 = vld [vmem:[%s4 + $0x4] sm:$0xf]
    %v872 = vld [vmem:[%s4 + $0x8] sm:$0xf]
    %v873 = vld [vmem:[%s4 + $0xc] sm:$0xf]
    %v874 = vld [vmem:[%s4 + $0x10] sm:$0xf]
    %v875 = vld [vmem:[%s4 + $0x14] sm:$0xf]
    %v876 = vld [vmem:[%s4 + $0x18] sm:$0xf]
    %v877 = vld [vmem:[%s4 + $0x1c] sm:$0xf]
    %v878 = vld [vmem:[%s4 + $0x20] sm:$0xf]
    %v879 = vld [vmem:[%s4 + $0x24] sm:$0xf]
    %v880 = vld [vmem:[%s4 + $0x28] sm:$0xf]
    %v881 = vld [vmem:[%s4 + $0x2c] sm:$0xf]
    %v882 = vld [vmem:[%s4 + $0x30] sm:$0xf]
    %v883 = vld [vmem:[%s4 + $0x34] sm:$0xf]
    %v884 = vld [vmem:[%s4 + $0x38] sm:$0xf]
    %v885 = vld [vmem:[%s4 + $0x3c] sm:$0xf]
    %v886 = vld [vmem:[%s4 + $0x40] sm:$0xf]
    %v887 = vld [vmem:[%s4 + $0x44] sm:$0xf]
    %v888 = vld [vmem:[%s4 + $0x48] sm:$0xf]
    %v889 = vld [vmem:[%s4 + $0x4c] sm:$0xf]
    %v890 = vld [vmem:[%s4 + $0x50] sm:$0xf]
    %v891 = vld [vmem:[%s4 + $0x54] sm:$0xf]
    %v892 = vld [vmem:[%s4 + $0x58] sm:$0xf]
    %v893 = vld [vmem:[%s4 + $0x5c] sm:$0xf]
    %v894 = vpack.c.bf16 %v856, %v854
    %v895 = vpack.c.bf16 %v857, %v855
    %v896 = vpack.c.bf16 %v860, %v858
    %v897 = vpack.c.bf16 %v861, %v859
    %v898 = vpack.c.bf16 %v864, %v862
    %v899 = vpack.c.bf16 %v865, %v863
    %v900 = vpack.c.bf16 %v868, %v866
    %v901 = vpack.c.bf16 %v869, %v867
    %v926 = vunpack.c.l.b16 %v870
    %v927 = vunpack.c.l.b16 %v871
    %v928 = vunpack.c.l.b16 %v872
    %v929 = vunpack.c.l.b16 %v873
    %v930 = vunpack.c.l.b16 %v874
    %v931 = vunpack.c.l.b16 %v875
    %v932 = vunpack.c.l.b16 %v876
    %v933 = vunpack.c.l.b16 %v877
    %v934 = vunpack.c.l.b16 %v878
    %v935 = vunpack.c.l.b16 %v879
    %v936 = vunpack.c.l.b16 %v880
    %v937 = vunpack.c.l.b16 %v881
    %v938 = vunpack.c.l.b16 %v882
    %v939 = vunpack.c.l.b16 %v883
    %v940 = vunpack.c.l.b16 %v884
    %v941 = vunpack.c.l.b16 %v885
    %v942 = vunpack.c.l.b16 %v886
    %v943 = vunpack.c.l.b16 %v887
    %v944 = vunpack.c.l.b16 %v888
    %v945 = vunpack.c.l.b16 %v889
    %v946 = vunpack.c.l.b16 %v890
    %v947 = vunpack.c.l.b16 %v891
    %v948 = vunpack.c.l.b16 %v892
    %v949 = vunpack.c.l.b16 %v893
    %v950 = vpack.c.b16 %v927, %v926
    %v951 = vpack.c.b16 %v929, %v928
    %v952 = vpack.c.b16 %v931, %v930
    %v953 = vpack.c.b16 %v933, %v932
    %v954 = vpack.c.b16 %v935, %v934
    %v955 = vpack.c.b16 %v937, %v936
    %v956 = vpack.c.b16 %v939, %v938
    %v957 = vpack.c.b16 %v941, %v940
    %v958 = vpack.c.b16 %v943, %v942
    %v959 = vpack.c.b16 %v945, %v944
    %v960 = vpack.c.b16 %v947, %v946
    %v961 = vpack.c.b16 %v949, %v948
    %vm974 = vcmask 523264
    %v976 = vsel %vm974, %v895, 0
    %v979 = vsel %vm974, %v897, 0
    %v982 = vsel %vm974, %v899, 0
    %v985 = vsel %vm974, %v901, 0
    %987 = vmatprep.subr.bf16.mxu0 0
    %988 = vmatpush1.bf16.msra.mxu0 %v950
    %989 = vmatprep.subr.bf16.mxu0 0
    %990 = vmatpush1.bf16.msra.mxu0 %v951
    %991 = vmatprep.subr.bf16.mxu0 0
    %992 = vmatpush1.bf16.msra.mxu0 %v952
    %993 = vmatprep.subr.bf16.mxu0 0
    %994 = vmatpush1.bf16.msra.mxu0 %v953
    %995 = vmatprep.subr.bf16.mxu0 0
    %996 = vmatpush1.bf16.msra.mxu0 %v954
    %997 = vmatprep.subr.bf16.mxu0 0
    %998 = vmatpush1.bf16.msra.mxu0 %v955
    %999 = vmatprep.subr.bf16.mxu0 0
    %1000 = vmatpush1.bf16.msra.mxu0 %v956
    %1001 = vmatprep.subr.bf16.mxu0 0
    %1002 = vmatpush1.bf16.msra.mxu0 %v957
    %1003 = vmatprep.subr.bf16.mxu0 0
    %1004 = vmatpush1.bf16.msra.mxu0 %v958
    %1005 = vmatprep.subr.bf16.mxu0 0
    %1006 = vmatpush1.bf16.msra.mxu0 %v959
    %1007 = vmatprep.subr.bf16.mxu0 0
    %1008 = vmatpush1.bf16.msra.mxu0 %v960
    %1009 = vmatprep.subr.bf16.mxu0 0
    %1010 = vmatpush1.bf16.msra.mxu0 %v961
    %1011 = vmatprep.subr.bf16.mxu0 0
    %1012 = vmatpush1.bf16.msra.mxu0 0
    %1013 = vmatprep.subr.bf16.mxu0 0
    %1014 = vmatpush1.bf16.msra.mxu0 0
    %1015 = vmatprep.subr.bf16.mxu0 0
    %1016 = vmatpush1.bf16.msra.mxu0 0
    %1017 = vmatprep.subr.bf16.mxu0 0
    %1018 = vmatpush1.bf16.msra.mxu0 0
    %1019 = vmatprep.mubr.bf16.mxu0 %v976
    %1020 = vmatmul.mubr.bf16.gmra.mrb[0].mxu0 %v894
    %v1021 = vpop.f32.mrb[0].mxu0
    %v1022 = vadd.f32 0.0, %v1021
    %v1023 = vpop.f32.mrb[0].mxu0
    %v1024 = vpop.f32.mrb[0].mxu0
    %v1025 = vadd.f32 0.0, %v1024
    %v1026 = vpop.f32.mrb[0].mxu0
    %1027 = vmatprep.mubr.bf16.mxu0 %v979
    %1028 = vmatmul.mubr.bf16.gmra.mrb[0].mxu0 %v896
    %v1029 = vpop.f32.mrb[0].mxu0
    %v1030 = vadd.f32 0.0, %v1029
    %v1031 = vpop.f32.mrb[0].mxu0
    %v1032 = vpop.f32.mrb[0].mxu0
    %v1033 = vadd.f32 0.0, %v1032
    %v1034 = vpop.f32.mrb[0].mxu0
    %1035 = vmatprep.mubr.bf16.mxu0 %v982
    %1036 = vmatmul.mubr.bf16.gmra.mrb[0].mxu0 %v898
    %v1037 = vpop.f32.mrb[0].mxu0
    %v1038 = vadd.f32 0.0, %v1037
    %v1039 = vpop.f32.mrb[0].mxu0
    %v1040 = vpop.f32.mrb[0].mxu0
    %v1041 = vadd.f32 0.0, %v1040
    %v1042 = vpop.f32.mrb[0].mxu0
    %1043 = vmatprep.mubr.bf16.mxu0 %v985
    %1044 = vmatmul.mubr.bf16.gmra.mrb[0].mxu0 %v900
    %v1045 = vpop.f32.mrb[0].mxu0
    %v1046 = vadd.f32 0.0, %v1045
    %v1047 = vpop.f32.mrb[0].mxu0
    %v1048 = vpop.f32.mrb[0].mxu0
    %v1049 = vadd.f32 0.0, %v1048
    %v1050 = vpop.f32.mrb[0].mxu0
    %1051 = vdwg.mxu0
    %v1052 = vld [vmem:[%s17] sm:$0xf]
    %v1053 = vld [vmem:[%s17 + $0x4] sm:$0xf]
    %v1054 = vld [vmem:[%s17 + $0x8] sm:$0xf]
    %v1055 = vld [vmem:[%s17 + $0xc] sm:$0xf]
    %v1056 = vpack.c.bf16 %v1025, %v1022
    %v1057 = vpack.c.bf16 %v1033, %v1030
    %v1058 = vpack.c.bf16 %v1041, %v1038
    %v1059 = vpack.c.bf16 %v1049, %v1046
    %v1064 = vunpack.c.l.b16 %v1052
    %v1065 = vunpack.c.l.b16 %v1053
    %v1066 = vunpack.c.l.b16 %v1054
    %v1067 = vunpack.c.l.b16 %v1055
    %v1068 = vpack.c.b16 %v1065, %v1064
    %v1069 = vpack.c.b16 %v1067, %v1066
    %v1071 = vsel %vm974, %v1068, 0
    %v1074 = vsel %vm974, %v1069, 0
    %1076 = vmatprep.subr.bf16.mxu0 0
    %1077 = vmatpush1.bf16.msra.mxu0 %v1056
    %1078 = vmatprep.subr.bf16.mxu0 0
    %1079 = vmatpush1.bf16.msra.mxu0 %v1057
    %1080 = vmatprep.subr.bf16.mxu0 0
    %1081 = vmatpush1.bf16.msra.mxu0 %v1058
    %1082 = vmatprep.subr.bf16.mxu0 0
    %1083 = vmatpush1.bf16.msra.mxu0 %v1059
    %1084 = vmatprep.subr.bf16.mxu0 0
    %1085 = vmatpush1.bf16.msra.mxu0 0
    %1086 = vmatprep.subr.bf16.mxu0 0
    %1087 = vmatpush1.bf16.msra.mxu0 0
    %1088 = vmatprep.subr.bf16.mxu0 0
    %1089 = vmatpush1.bf16.msra.mxu0 0
    %1090 = vmatprep.subr.bf16.mxu0 0
    %1091 = vmatpush1.bf16.msra.mxu0 0
    %1092 = vmatprep.subr.bf16.mxu0 0
    %1093 = vmatpush1.bf16.msra.mxu0 0
    %1094 = vmatprep.subr.bf16.mxu0 0
    %1095 = vmatpush1.bf16.msra.mxu0 0
    %1096 = vmatprep.subr.bf16.mxu0 0
    %1097 = vmatpush1.bf16.msra.mxu0 0
    %1098 = vmatprep.subr.bf16.mxu0 0
    %1099 = vmatpush1.bf16.msra.mxu0 0
    %1100 = vmatprep.subr.bf16.mxu0 0
    %1101 = vmatpush1.bf16.msra.mxu0 0
    %1102 = vmatprep.subr.bf16.mxu0 0
    %1103 = vmatpush1.bf16.msra.mxu0 0
    %1104 = vmatprep.subr.bf16.mxu0 0
    %1105 = vmatpush1.bf16.msra.mxu0 0
    %1106 = vmatprep.subr.bf16.mxu0 0
    %1107 = vmatpush1.bf16.msra.mxu0 0
    %1108 = vmatprep.mubr.bf16.mxu0 0
    %1109 = vmatmul.mubr.bf16.gmra.mrb[0].mxu0 %v1071
    %v1110 = vpop.f32.mrb[0].mxu0
    %v1111 = vadd.f32 0.0, %v1110
    %v1112 = vpop.f32.mrb[0].mxu0
    %v1113 = vpop.f32.mrb[0].mxu0
    %v1114 = vadd.f32 0.0, %v1113
    %v1115 = vpop.f32.mrb[0].mxu0
    %1116 = vmatprep.mubr.bf16.mxu0 0
    %1117 = vmatmul.mubr.bf16.gmra.mrb[0].mxu0 %v1074
    %v1118 = vpop.f32.mrb[0].mxu0
    %v1119 = vadd.f32 0.0, %v1118
    %v1120 = vpop.f32.mrb[0].mxu0
    %v1121 = vpop.f32.mrb[0].mxu0
    %v1122 = vadd.f32 0.0, %v1121
    %v1123 = vpop.f32.mrb[0].mxu0
    %1124 = vdwg.mxu0
    %v1125 = vrot.slane %v1111, 7
    %v1126 = vrot.slane %v1114, 7
    %v1127 = vrot.slane %v1119, 7
    %v1128 = vrot.slane %v1122, 7
    %v1129 = vsel %vm88, %v1127, %v1128
    %v1130 = vsel %vm88, %v1126, %v1127
    %v1131 = vsel %vm88, %v1125, %v1126
    %v1132 = vsel %vm88, %v1128, %v1125
    %v1133 = vld [vmem:[%s7] sm:$0xff]
    %v1134 = vld [vmem:[%s7 + $0x8] sm:$0xff]
    %v1135 = vld [vmem:[%s7 + $0x10] sm:$0xff]
    %v1136 = vld [vmem:[%s7 + $0x18] sm:$0xff]
    %1138 = vset.pattern.permute.xlu0 0
    %1139 = vperm.xlu0 %1138, %v1133
    %v1140 = vpop.permute.xlu0 %1139
    %1143 = vset.pattern.permute.xlu0 0
    %1144 = vperm.xlu0 %1143, %v1134
    %v1145 = vpop.permute.xlu0 %1144
    %1148 = vset.pattern.permute.xlu0 0
    %1149 = vperm.xlu0 %1148, %v1135
    %v1150 = vpop.permute.xlu0 %1149
    %1153 = vset.pattern.permute.xlu0 0
    %1154 = vperm.xlu0 %1153, %v1136
    %v1155 = vpop.permute.xlu0 %1154
    %v1157 = vmul.f32 %v1132, %v1140
    %v1158 = vmul.f32 %v1131, %v1145
    %v1159 = vmul.f32 %v1130, %v1150
    %v1160 = vmul.f32 %v1129, %v1155
    %v1161 = vrot.slane %v1111, 1
    %v1162 = vrot.slane %v1114, 1
    %v1163 = vrot.slane %v1119, 1
    %v1164 = vrot.slane %v1122, 1
    %v1165 = vsel %vm161, %v1163, %v1164
    %v1166 = vsel %vm161, %v1162, %v1163
    %v1167 = vsel %vm161, %v1161, %v1162
    %v1168 = vsel %vm161, %v1164, %v1161
    %1169 = vset.pattern.permute.xlu0 1
    %1170 = vperm.xlu0 %1169, %v1133
    %v1171 = vpop.permute.xlu0 %1170
    %1173 = vset.pattern.permute.xlu0 1
    %1174 = vperm.xlu0 %1173, %v1134
    %v1175 = vpop.permute.xlu0 %1174
    %1177 = vset.pattern.permute.xlu0 1
    %1178 = vperm.xlu0 %1177, %v1135
    %v1179 = vpop.permute.xlu0 %1178
    %1181 = vset.pattern.permute.xlu0 1
    %1182 = vperm.xlu0 %1181, %v1136
    %v1183 = vpop.permute.xlu0 %1182
    %v1185 = vmul.f32 %v1167, %v1171
    %v1186 = vmul.f32 %v1166, %v1175
    %v1187 = vmul.f32 %v1165, %v1179
    %v1188 = vmul.f32 %v1168, %v1183
    %1193 = vrot.lane.b32.xlu0 %v1111, 96
    %v1194 = vpop.permute.xlu0 %1193
    %1195 = vrot.lane.b32.xlu0 %v1114, 96
    %v1196 = vpop.permute.xlu0 %1195
    %1197 = vrot.lane.b32.xlu0 %v1119, 96
    %v1198 = vpop.permute.xlu0 %1197
    %1199 = vrot.lane.b32.xlu0 %v1122, 96
    %v1200 = vpop.permute.xlu0 %1199
    %1209 = vrot.lane.b32.xlu0 %v1185, 64
    %v1210 = vpop.permute.xlu0 %1209
    %1211 = vrot.lane.b32.xlu0 %v1186, 64
    %v1212 = vpop.permute.xlu0 %1211
    %1213 = vrot.lane.b32.xlu0 %v1187, 64
    %v1214 = vpop.permute.xlu0 %1213
    %1215 = vrot.lane.b32.xlu0 %v1188, 64
    %v1216 = vpop.permute.xlu0 %1215
    %vm1221 = vcmask 785408
    %v1222 = vsel %vm1221, %v1157, %v1194
    %v1223 = vsel %vm1221, %v1158, %v1196
    %v1224 = vsel %vm1221, %v1159, %v1198
    %v1225 = vsel %vm1221, %v1160, %v1200
    %v1226 = vsel %vm974, %v1194, %v1210
    %v1227 = vsel %vm974, %v1196, %v1212
    %v1228 = vsel %vm974, %v1198, %v1214
    %v1229 = vsel %vm974, %v1200, %v1216
    %v1230 = vld [vmem:[%s5] sm:$0xff]
    %v1231 = vld [vmem:[%s5 + $0x8] sm:$0xff]
    %v1232 = vld [vmem:[%s5 + $0x10] sm:$0xff]
    %v1233 = vld [vmem:[%s5 + $0x18] sm:$0xff]
    %v1234 = vld [vmem:[%s5 + $0x20] sm:$0xff]
    %v1235 = vld [vmem:[%s5 + $0x28] sm:$0xff]
    %v1236 = vld [vmem:[%s5 + $0x30] sm:$0xff]
    %v1237 = vld [vmem:[%s5 + $0x38] sm:$0xff]
    %v1238 = vld [vmem:[%s5 + $0x40] sm:$0xff]
    %v1239 = vld [vmem:[%s5 + $0x48] sm:$0xff]
    %v1240 = vld [vmem:[%s5 + $0x50] sm:$0xff]
    %v1241 = vld [vmem:[%s5 + $0x58] sm:$0xff]
    %v1242 = vld [vmem:[%s5 + $0x60] sm:$0xff]
    %v1243 = vld [vmem:[%s5 + $0x68] sm:$0xff]
    %v1244 = vld [vmem:[%s5 + $0x70] sm:$0xff]
    %v1245 = vld [vmem:[%s5 + $0x78] sm:$0xff]
    %v1246 = vld [vmem:[%s5 + $0x80] sm:$0xff]
    %v1247 = vld [vmem:[%s5 + $0x88] sm:$0xff]
    %v1248 = vld [vmem:[%s5 + $0x90] sm:$0xff]
    %v1249 = vld [vmem:[%s5 + $0x98] sm:$0xff]
    %v1250 = vld [vmem:[%s5 + $0xa0] sm:$0xff]
    %v1251 = vld [vmem:[%s5 + $0xa8] sm:$0xff]
    %v1252 = vld [vmem:[%s5 + $0xb0] sm:$0xff]
    %v1253 = vld [vmem:[%s5 + $0xb8] sm:$0xff]
    %v1254 = vld [vmem:[%s5 + $0xc0] sm:$0xff]
    %v1255 = vld [vmem:[%s5 + $0xc8] sm:$0xff]
    %v1256 = vld [vmem:[%s5 + $0xd0] sm:$0xff]
    %v1257 = vld [vmem:[%s5 + $0xd8] sm:$0xff]
    %v1258 = vld [vmem:[%s5 + $0xe0] sm:$0xff]
    %v1259 = vld [vmem:[%s5 + $0xe8] sm:$0xff]
    %v1260 = vld [vmem:[%s5 + $0xf0] sm:$0xff]
    %v1261 = vld [vmem:[%s5 + $0xf8] sm:$0xff]
    %v1262 = vld [vmem:[%s5 + $0x100] sm:$0xff]
    %v1263 = vld [vmem:[%s5 + $0x108] sm:$0xff]
    %v1264 = vld [vmem:[%s5 + $0x110] sm:$0xff]
    %v1265 = vld [vmem:[%s5 + $0x118] sm:$0xff]
    %v1266 = vpack.c.bf16 %v1223, %v1222
    %v1267 = vpack.c.bf16 %v1227, %v1226
    %v1268 = vpack.c.bf16 %v1212, %v1210
    %v1269 = vpack.c.bf16 %v1225, %v1224
    %v1270 = vpack.c.bf16 %v1229, %v1228
    %v1271 = vpack.c.bf16 %v1216, %v1214
    %v1272 = vld [vmem:[%s6] sm:$0x3]
    %v1274 = vlaneseq
    %v1275 = vshrl.u32 %v1274, 7
    %v1276 = vsub.s32 0, %v1275
    %v1277 = vrot.slane %v1272, %v1276
    %v1278 = vlaneseq
    %v1279 = vshrl.u32 %v1278, 7
    %v1280 = vsub.s32 1, %v1279
    %v1281 = vrot.slane %v1272, %v1280
    %v1320 = vunpack.c.l.b16 %v1230
    %v1321 = vunpack.c.h.b16 %v1230
    %v1322 = vunpack.c.l.b16 %v1231
    %v1323 = vunpack.c.h.b16 %v1231
    %v1324 = vunpack.c.l.b16 %v1232
    %v1325 = vunpack.c.h.b16 %v1232
    %v1326 = vunpack.c.l.b16 %v1233
    %v1327 = vunpack.c.h.b16 %v1233
    %v1328 = vunpack.c.l.b16 %v1234
    %v1329 = vunpack.c.h.b16 %v1234
    %v1330 = vunpack.c.l.b16 %v1235
    %v1331 = vunpack.c.h.b16 %v1235
    %v1332 = vunpack.c.l.b16 %v1236
    %v1333 = vunpack.c.h.b16 %v1236
    %v1334 = vunpack.c.l.b16 %v1237
    %v1335 = vunpack.c.h.b16 %v1237
    %v1336 = vunpack.c.l.b16 %v1238
    %v1337 = vunpack.c.h.b16 %v1238
    %v1338 = vunpack.c.l.b16 %v1239
    %v1339 = vunpack.c.h.b16 %v1239
    %v1340 = vunpack.c.l.b16 %v1240
    %v1341 = vunpack.c.h.b16 %v1240
    %v1342 = vunpack.c.l.b16 %v1241
    %v1343 = vunpack.c.h.b16 %v1241
    %v1344 = vunpack.c.l.b16 %v1242
    %v1345 = vunpack.c.h.b16 %v1242
    %v1346 = vunpack.c.l.b16 %v1243
    %v1347 = vunpack.c.h.b16 %v1243
    %v1348 = vunpack.c.l.b16 %v1244
    %v1349 = vunpack.c.h.b16 %v1244
    %v1350 = vunpack.c.l.b16 %v1245
    %v1351 = vunpack.c.h.b16 %v1245
    %v1352 = vunpack.c.l.b16 %v1246
    %v1353 = vunpack.c.h.b16 %v1246
    %v1354 = vunpack.c.l.b16 %v1247
    %v1355 = vunpack.c.h.b16 %v1247
    %v1356 = vunpack.c.l.b16 %v1248
    %v1357 = vunpack.c.h.b16 %v1248
    %v1358 = vunpack.c.l.b16 %v1249
    %v1359 = vunpack.c.h.b16 %v1249
    %v1360 = vunpack.c.l.b16 %v1250
    %v1361 = vunpack.c.h.b16 %v1250
    %v1362 = vunpack.c.l.b16 %v1251
    %v1363 = vunpack.c.h.b16 %v1251
    %v1364 = vunpack.c.l.b16 %v1252
    %v1365 = vunpack.c.h.b16 %v1252
    %v1366 = vunpack.c.l.b16 %v1253
    %v1367 = vunpack.c.h.b16 %v1253
    %v1368 = vunpack.c.l.b16 %v1254
    %v1369 = vunpack.c.h.b16 %v1254
    %v1370 = vunpack.c.l.b16 %v1255
    %v1371 = vunpack.c.h.b16 %v1255
    %v1372 = vunpack.c.l.b16 %v1256
    %v1373 = vunpack.c.h.b16 %v1256
    %v1374 = vunpack.c.l.b16 %v1257
    %v1375 = vunpack.c.h.b16 %v1257
    %v1376 = vunpack.c.l.b16 %v1258
    %v1377 = vunpack.c.h.b16 %v1258
    %v1378 = vunpack.c.l.b16 %v1259
    %v1379 = vunpack.c.h.b16 %v1259
    %v1380 = vunpack.c.l.b16 %v1260
    %v1381 = vunpack.c.h.b16 %v1260
    %v1382 = vunpack.c.l.b16 %v1261
    %v1383 = vunpack.c.h.b16 %v1261
    %v1384 = vunpack.c.l.b16 %v1262
    %v1385 = vunpack.c.h.b16 %v1262
    %v1386 = vunpack.c.l.b16 %v1263
    %v1387 = vunpack.c.h.b16 %v1263
    %v1388 = vunpack.c.l.b16 %v1264
    %v1389 = vunpack.c.h.b16 %v1264
    %v1390 = vunpack.c.l.b16 %v1265
    %v1391 = vunpack.c.h.b16 %v1265
    %v1392 = vpack.c.b16 %v1322, %v1320
    %v1393 = vpack.c.b16 %v1323, %v1321
    %v1394 = vpack.c.b16 %v1326, %v1324
    %v1395 = vpack.c.b16 %v1327, %v1325
    %v1396 = vpack.c.b16 %v1330, %v1328
    %v1397 = vpack.c.b16 %v1331, %v1329
    %v1398 = vpack.c.b16 %v1334, %v1332
    %v1399 = vpack.c.b16 %v1335, %v1333
    %v1400 = vpack.c.b16 %v1338, %v1336
    %v1401 = vpack.c.b16 %v1339, %v1337
    %v1402 = vpack.c.b16 %v1342, %v1340
    %v1403 = vpack.c.b16 %v1343, %v1341
    %v1404 = vpack.c.b16 %v1346, %v1344
    %v1405 = vpack.c.b16 %v1347, %v1345
    %v1406 = vpack.c.b16 %v1350, %v1348
    %v1407 = vpack.c.b16 %v1351, %v1349
    %v1408 = vpack.c.b16 %v1354, %v1352
    %v1409 = vpack.c.b16 %v1355, %v1353
    %v1410 = vpack.c.b16 %v1358, %v1356
    %v1411 = vpack.c.b16 %v1359, %v1357
    %v1412 = vpack.c.b16 %v1362, %v1360
    %v1413 = vpack.c.b16 %v1363, %v1361
    %v1414 = vpack.c.b16 %v1366, %v1364
    %v1415 = vpack.c.b16 %v1367, %v1365
    %v1416 = vpack.c.b16 %v1370, %v1368
    %v1417 = vpack.c.b16 %v1371, %v1369
    %v1418 = vpack.c.b16 %v1374, %v1372
    %v1419 = vpack.c.b16 %v1375, %v1373
    %v1420 = vpack.c.b16 %v1378, %v1376
    %v1421 = vpack.c.b16 %v1379, %v1377
    %v1422 = vpack.c.b16 %v1382, %v1380
    %v1423 = vpack.c.b16 %v1383, %v1381
    %v1424 = vpack.c.b16 %v1386, %v1384
    %v1425 = vpack.c.b16 %v1387, %v1385
    %v1426 = vpack.c.b16 %v1390, %v1388
    %v1427 = vpack.c.b16 %v1391, %v1389
    %vm1464 = vcmask 261120
    %v1466 = vsel %vm1464, %v1268, 0
    %v1469 = vsel %vm1464, %v1271, 0
    %1471 = vmatprep.subr.bf16.mxu0 %v1393
    %1472 = vmatpush1.bf16.msra.mxu0 %v1392
    %1473 = vmatprep.subr.bf16.mxu0 %v1395
    %1474 = vmatpush1.bf16.msra.mxu0 %v1394
    %1475 = vmatprep.subr.bf16.mxu0 %v1397
    %1476 = vmatpush1.bf16.msra.mxu0 %v1396
    %1477 = vmatprep.subr.bf16.mxu0 %v1399
    %1478 = vmatpush1.bf16.msra.mxu0 %v1398
    %1479 = vmatprep.subr.bf16.mxu0 %v1401
    %1480 = vmatpush1.bf16.msra.mxu0 %v1400
    %1481 = vmatprep.subr.bf16.mxu0 %v1403
    %1482 = vmatpush1.bf16.msra.mxu0 %v1402
    %1483 = vmatprep.subr.bf16.mxu0 %v1405
    %1484 = vmatpush1.bf16.msra.mxu0 %v1404
    %1485 = vmatprep.subr.bf16.mxu0 %v1407
    %1486 = vmatpush1.bf16.msra.mxu0 %v1406
    %1487 = vmatprep.subr.bf16.mxu0 %v1409
    %1488 = vmatpush1.bf16.msra.mxu0 %v1408
    %1489 = vmatprep.subr.bf16.mxu0 %v1411
    %1490 = vmatpush1.bf16.msra.mxu0 %v1410
    %1491 = vmatprep.subr.bf16.mxu0 %v1413
    %1492 = vmatpush1.bf16.msra.mxu0 %v1412
    %1493 = vmatprep.subr.bf16.mxu0 %v1415
    %1494 = vmatpush1.bf16.msra.mxu0 %v1414
    %1495 = vmatprep.subr.bf16.mxu0 %v1417
    %1496 = vmatpush1.bf16.msra.mxu0 %v1416
    %1497 = vmatprep.subr.bf16.mxu0 %v1419
    %1498 = vmatpush1.bf16.msra.mxu0 %v1418
    %1499 = vmatprep.subr.bf16.mxu0 %v1421
    %1500 = vmatpush1.bf16.msra.mxu0 %v1420
    %1501 = vmatprep.subr.bf16.mxu0 %v1423
    %1502 = vmatpush1.bf16.msra.mxu0 %v1422
    %1503 = vmatprep.mubr.bf16.mxu0 %v1267
    %1504 = vmatmul.mubr.bf16.gmra.mrb[0].mxu0 %v1266
    %v1505 = vpop.f32.mrb[0].mxu0
    %v1506 = vadd.f32 %v1277, %v1505
    %v1507 = vpop.f32.mrb[0].mxu0
    %v1508 = vadd.f32 %v1281, %v1507
    %v1509 = vpop.f32.mrb[0].mxu0
    %v1510 = vadd.f32 %v1277, %v1509
    %v1511 = vpop.f32.mrb[0].mxu0
    %v1512 = vadd.f32 %v1281, %v1511
    %1513 = vmatprep.mubr.bf16.mxu0 %v1270
    %1514 = vmatmul.mubr.bf16.gmra.mrb[0].mxu0 %v1269
    %v1515 = vpop.f32.mrb[0].mxu0
    %v1516 = vadd.f32 %v1277, %v1515
    %v1517 = vpop.f32.mrb[0].mxu0
    %v1518 = vadd.f32 %v1281, %v1517
    %v1519 = vpop.f32.mrb[0].mxu0
    %v1520 = vadd.f32 %v1277, %v1519
    %v1521 = vpop.f32.mrb[0].mxu0
    %v1522 = vadd.f32 %v1281, %v1521
    %1523 = vdwg.mxu0
    %1524 = vmatprep.subr.bf16.mxu0 %v1425
    %1525 = vmatpush1.bf16.msra.mxu0 %v1424
    %1526 = vmatprep.subr.bf16.mxu0 %v1427
    %1527 = vmatpush1.bf16.msra.mxu0 %v1426
    %1528 = vmatprep.subr.bf16.mxu0 0
    %1529 = vmatpush1.bf16.msra.mxu0 0
    %1530 = vmatprep.subr.bf16.mxu0 0
    %1531 = vmatpush1.bf16.msra.mxu0 0
    %1532 = vmatprep.subr.bf16.mxu0 0
    %1533 = vmatpush1.bf16.msra.mxu0 0
    %1534 = vmatprep.subr.bf16.mxu0 0
    %1535 = vmatpush1.bf16.msra.mxu0 0
    %1536 = vmatprep.subr.bf16.mxu0 0
    %1537 = vmatpush1.bf16.msra.mxu0 0
    %1538 = vmatprep.subr.bf16.mxu0 0
    %1539 = vmatpush1.bf16.msra.mxu0 0
    %1540 = vmatprep.subr.bf16.mxu0 0
    %1541 = vmatpush1.bf16.msra.mxu0 0
    %1542 = vmatprep.subr.bf16.mxu0 0
    %1543 = vmatpush1.bf16.msra.mxu0 0
    %1544 = vmatprep.subr.bf16.mxu0 0
    %1545 = vmatpush1.bf16.msra.mxu0 0
    %1546 = vmatprep.subr.bf16.mxu0 0
    %1547 = vmatpush1.bf16.msra.mxu0 0
    %1548 = vmatprep.subr.bf16.mxu0 0
    %1549 = vmatpush1.bf16.msra.mxu0 0
    %1550 = vmatprep.subr.bf16.mxu0 0
    %1551 = vmatpush1.bf16.msra.mxu0 0
    %1552 = vmatprep.subr.bf16.mxu0 0
    %1553 = vmatpush1.bf16.msra.mxu0 0
    %1554 = vmatprep.subr.bf16.mxu0 0
    %1555 = vmatpush1.bf16.msra.mxu0 0
    %1556 = vmatprep.mubr.bf16.mxu0 0
    %1557 = vmatmul.mubr.bf16.gmra.mrb[0].mxu0 %v1466
    %v1558 = vpop.f32.mrb[0].mxu0
    %v1559 = vadd.f32 %v1506, %v1558
    %v1560 = vpop.f32.mrb[0].mxu0
    %v1561 = vadd.f32 %v1508, %v1560
    %v1562 = vpop.f32.mrb[0].mxu0
    %v1563 = vadd.f32 %v1510, %v1562
    %v1564 = vpop.f32.mrb[0].mxu0
    %v1565 = vadd.f32 %v1512, %v1564
    %1566 = vmatprep.mubr.bf16.mxu0 0
    %1567 = vmatmul.mubr.bf16.gmra.mrb[0].mxu0 %v1469
    %v1568 = vpop.f32.mrb[0].mxu0
    %v1569 = vadd.f32 %v1516, %v1568
    %v1570 = vpop.f32.mrb[0].mxu0
    %v1571 = vadd.f32 %v1518, %v1570
    %v1572 = vpop.f32.mrb[0].mxu0
    %v1573 = vadd.f32 %v1520, %v1572
    %v1574 = vpop.f32.mrb[0].mxu0
    %v1575 = vadd.f32 %v1522, %v1574
    %1576 = vdwg.mxu0
    %v1577 = vmax.f32 %v1559, 0.0
    %v1578 = vmax.f32 %v1561, 0.0
    %v1579 = vmax.f32 %v1563, 0.0
    %v1580 = vmax.f32 %v1565, 0.0
    %v1581 = vmax.f32 %v1569, 0.0
    %v1582 = vmax.f32 %v1571, 0.0
    %v1583 = vmax.f32 %v1573, 0.0
    %v1584 = vmax.f32 %v1575, 0.0
    %1585 = vrot.lane.b32.xlu0 %v1577, 64
    %v1586 = vpop.permute.xlu0 %1585
    %v1587 = vsel %vm684, %v1586, %v1578
    %1588 = vrot.lane.b32.xlu0 %v1579, 64
    %v1589 = vpop.permute.xlu0 %1588
    %v1590 = vsel %vm684, %v1589, %v1580
    %1591 = vrot.lane.b32.xlu0 %v1581, 64
    %v1592 = vpop.permute.xlu0 %1591
    %v1593 = vsel %vm684, %v1592, %v1582
    %1594 = vrot.lane.b32.xlu0 %v1583, 64
    %v1595 = vpop.permute.xlu0 %1594
    %v1596 = vsel %vm684, %v1595, %v1584
    %1597 = vrot.lane.b32.xlu0 %v1587, 64
    %v1598 = vpop.permute.xlu0 %1597
    %1599 = vrot.lane.b32.xlu0 %v1590, 64
    %v1600 = vpop.permute.xlu0 %1599
    %1601 = vrot.lane.b32.xlu0 %v1593, 64
    %v1602 = vpop.permute.xlu0 %1601
    %1603 = vrot.lane.b32.xlu0 %v1596, 64
    %v1604 = vpop.permute.xlu0 %1603
    %v1605 = vsel %vm684, %v1598, %v1586
    %v1606 = vsel %vm684, %v1600, %v1589
    %v1607 = vsel %vm684, %v1602, %v1592
    %v1608 = vsel %vm684, %v1604, %v1595
    %1617 = vrot.lane.b32.xlu0 %v1587, 76
    %v1618 = vpop.permute.xlu0 %1617
    %1619 = vrot.lane.b32.xlu0 %v1605, 76
    %v1620 = vpop.permute.xlu0 %1619
    %1621 = vrot.lane.b32.xlu0 %v1590, 76
    %v1622 = vpop.permute.xlu0 %1621
    %1623 = vrot.lane.b32.xlu0 %v1606, 76
    %v1624 = vpop.permute.xlu0 %1623
    %1625 = vrot.lane.b32.xlu0 %v1593, 76
    %v1626 = vpop.permute.xlu0 %1625
    %1627 = vrot.lane.b32.xlu0 %v1607, 76
    %v1628 = vpop.permute.xlu0 %1627
    %1629 = vrot.lane.b32.xlu0 %v1596, 76
    %v1630 = vpop.permute.xlu0 %1629
    %1631 = vrot.lane.b32.xlu0 %v1608, 76
    %v1632 = vpop.permute.xlu0 %1631
    %vm1633 = vcmask 621568
    %v1634 = vsel %vm1633, %v1618, %v1620
    %v1635 = vsel %vm1633, %v1622, %v1624
    %v1636 = vsel %vm1633, %v1626, %v1628
    %v1637 = vsel %vm1633, %v1630, %v1632
    %v1646 = vmax.f32 %v1577, %v1634
    %v1647 = vmax.f32 %v1578, %v1620
    %v1648 = vmax.f32 %v1579, %v1635
    %v1649 = vmax.f32 %v1580, %v1624
    %v1650 = vmax.f32 %v1581, %v1636
    %v1651 = vmax.f32 %v1582, %v1628
    %v1652 = vmax.f32 %v1583, %v1637
    %v1653 = vmax.f32 %v1584, %v1632
    %v1654 = vrot.slane %v1646, 7
    %v1655 = vrot.slane %v1647, 7
    %v1656 = vrot.slane %v1648, 7
    %v1657 = vrot.slane %v1649, 7
    %v1658 = vrot.slane %v1650, 7
    %v1659 = vrot.slane %v1651, 7
    %v1660 = vrot.slane %v1652, 7
    %v1661 = vrot.slane %v1653, 7
    %v1662 = vsel %vm88, %v1658, %v1660
    %v1663 = vsel %vm88, %v1659, %v1661
    %v1664 = vsel %vm88, %v1656, %v1658
    %v1665 = vsel %vm88, %v1657, %v1659
    %v1666 = vsel %vm88, %v1654, %v1656
    %v1667 = vsel %vm88, %v1655, %v1657
    %v1668 = vsel %vm88, %v1660, %v1654
    %v1669 = vsel %vm88, %v1661, %v1655
    %v1670 = vmax.f32 %v1646, %v1668
    %v1671 = vmax.f32 %v1647, %v1669
    %v1672 = vmax.f32 %v1648, %v1666
    %v1673 = vmax.f32 %v1649, %v1667
    %v1674 = vmax.f32 %v1650, %v1664
    %v1675 = vmax.f32 %v1651, %v1665
    %v1676 = vmax.f32 %v1652, %v1662
    %v1677 = vmax.f32 %v1653, %v1663
    %v1678 = vld [vmem:[%s8] sm:$0xf]
    %v1679 = vld [vmem:[%s8 + $0x4] sm:$0xf]
    %v1680 = vld [vmem:[%s8 + $0x8] sm:$0xf]
    %v1681 = vld [vmem:[%s8 + $0xc] sm:$0xf]
    %v1682 = vld [vmem:[%s8 + $0x10] sm:$0xf]
    %v1683 = vld [vmem:[%s8 + $0x14] sm:$0xf]
    %v1684 = vld [vmem:[%s8 + $0x18] sm:$0xf]
    %v1685 = vld [vmem:[%s8 + $0x1c] sm:$0xf]
    %v1686 = vld [vmem:[%s8 + $0x20] sm:$0xf]
    %v1687 = vld [vmem:[%s8 + $0x24] sm:$0xf]
    %v1688 = vld [vmem:[%s8 + $0x28] sm:$0xf]
    %v1689 = vld [vmem:[%s8 + $0x2c] sm:$0xf]
    %v1690 = vld [vmem:[%s8 + $0x30] sm:$0xf]
    %v1691 = vld [vmem:[%s8 + $0x34] sm:$0xf]
    %v1692 = vld [vmem:[%s8 + $0x38] sm:$0xf]
    %v1693 = vld [vmem:[%s8 + $0x3c] sm:$0xf]
    %v1694 = vld [vmem:[%s8 + $0x40] sm:$0xf]
    %v1695 = vld [vmem:[%s8 + $0x44] sm:$0xf]
    %v1696 = vld [vmem:[%s8 + $0x48] sm:$0xf]
    %v1697 = vld [vmem:[%s8 + $0x4c] sm:$0xf]
    %v1698 = vld [vmem:[%s8 + $0x50] sm:$0xf]
    %v1699 = vld [vmem:[%s8 + $0x54] sm:$0xf]
    %v1700 = vld [vmem:[%s8 + $0x58] sm:$0xf]
    %v1701 = vld [vmem:[%s8 + $0x5c] sm:$0xf]
    %v1702 = vpack.c.bf16 %v1672, %v1670
    %v1703 = vpack.c.bf16 %v1673, %v1671
    %v1704 = vpack.c.bf16 %v1676, %v1674
    %v1705 = vpack.c.bf16 %v1677, %v1675
    %v1730 = vunpack.c.l.b16 %v1678
    %v1731 = vunpack.c.l.b16 %v1679
    %v1732 = vunpack.c.l.b16 %v1680
    %v1733 = vunpack.c.l.b16 %v1681
    %v1734 = vunpack.c.l.b16 %v1682
    %v1735 = vunpack.c.l.b16 %v1683
    %v1736 = vunpack.c.l.b16 %v1684
    %v1737 = vunpack.c.l.b16 %v1685
    %v1738 = vunpack.c.l.b16 %v1686
    %v1739 = vunpack.c.l.b16 %v1687
    %v1740 = vunpack.c.l.b16 %v1688
    %v1741 = vunpack.c.l.b16 %v1689
    %v1742 = vunpack.c.l.b16 %v1690
    %v1743 = vunpack.c.l.b16 %v1691
    %v1744 = vunpack.c.l.b16 %v1692
    %v1745 = vunpack.c.l.b16 %v1693
    %v1746 = vunpack.c.l.b16 %v1694
    %v1747 = vunpack.c.l.b16 %v1695
    %v1748 = vunpack.c.l.b16 %v1696
    %v1749 = vunpack.c.l.b16 %v1697
    %v1750 = vunpack.c.l.b16 %v1698
    %v1751 = vunpack.c.l.b16 %v1699
    %v1752 = vunpack.c.l.b16 %v1700
    %v1753 = vunpack.c.l.b16 %v1701
    %v1754 = vpack.c.b16 %v1731, %v1730
    %v1755 = vpack.c.b16 %v1733, %v1732
    %v1756 = vpack.c.b16 %v1735, %v1734
    %v1757 = vpack.c.b16 %v1737, %v1736
    %v1758 = vpack.c.b16 %v1739, %v1738
    %v1759 = vpack.c.b16 %v1741, %v1740
    %v1760 = vpack.c.b16 %v1743, %v1742
    %v1761 = vpack.c.b16 %v1745, %v1744
    %v1762 = vpack.c.b16 %v1747, %v1746
    %v1763 = vpack.c.b16 %v1749, %v1748
    %v1764 = vpack.c.b16 %v1751, %v1750
    %v1765 = vpack.c.b16 %v1753, %v1752
    %v1779 = vsel %vm974, %v1703, 0
    %v1782 = vsel %vm974, %v1705, 0
    %1784 = vmatprep.subr.bf16.mxu0 0
    %1785 = vmatpush1.bf16.msra.mxu0 %v1754
    %1786 = vmatprep.subr.bf16.mxu0 0
    %1787 = vmatpush1.bf16.msra.mxu0 %v1755
    %1788 = vmatprep.subr.bf16.mxu0 0
    %1789 = vmatpush1.bf16.msra.mxu0 %v1756
    %1790 = vmatprep.subr.bf16.mxu0 0
    %1791 = vmatpush1.bf16.msra.mxu0 %v1757
    %1792 = vmatprep.subr.bf16.mxu0 0
    %1793 = vmatpush1.bf16.msra.mxu0 %v1758
    %1794 = vmatprep.subr.bf16.mxu0 0
    %1795 = vmatpush1.bf16.msra.mxu0 %v1759
    %1796 = vmatprep.subr.bf16.mxu0 0
    %1797 = vmatpush1.bf16.msra.mxu0 %v1760
    %1798 = vmatprep.subr.bf16.mxu0 0
    %1799 = vmatpush1.bf16.msra.mxu0 %v1761
    %1800 = vmatprep.subr.bf16.mxu0 0
    %1801 = vmatpush1.bf16.msra.mxu0 %v1762
    %1802 = vmatprep.subr.bf16.mxu0 0
    %1803 = vmatpush1.bf16.msra.mxu0 %v1763
    %1804 = vmatprep.subr.bf16.mxu0 0
    %1805 = vmatpush1.bf16.msra.mxu0 %v1764
    %1806 = vmatprep.subr.bf16.mxu0 0
    %1807 = vmatpush1.bf16.msra.mxu0 %v1765
    %1808 = vmatprep.subr.bf16.mxu0 0
    %1809 = vmatpush1.bf16.msra.mxu0 0
    %1810 = vmatprep.subr.bf16.mxu0 0
    %1811 = vmatpush1.bf16.msra.mxu0 0
    %1812 = vmatprep.subr.bf16.mxu0 0
    %1813 = vmatpush1.bf16.msra.mxu0 0
    %1814 = vmatprep.subr.bf16.mxu0 0
    %1815 = vmatpush1.bf16.msra.mxu0 0
    %1816 = vmatprep.mubr.bf16.mxu0 %v1779
    %1817 = vmatmul.mubr.bf16.gmra.mrb[0].mxu0 %v1702
    %v1818 = vpop.f32.mrb[0].mxu0
    %v1819 = vadd.f32 0.0, %v1818
    %v1820 = vpop.f32.mrb[0].mxu0
    %v1821 = vpop.f32.mrb[0].mxu0
    %v1822 = vadd.f32 0.0, %v1821
    %v1823 = vpop.f32.mrb[0].mxu0
    %1824 = vmatprep.mubr.bf16.mxu0 %v1782
    %1825 = vmatmul.mubr.bf16.gmra.mrb[0].mxu0 %v1704
    %v1826 = vpop.f32.mrb[0].mxu0
    %v1827 = vadd.f32 0.0, %v1826
    %v1828 = vpop.f32.mrb[0].mxu0
    %v1829 = vpop.f32.mrb[0].mxu0
    %v1830 = vadd.f32 0.0, %v1829
    %v1831 = vpop.f32.mrb[0].mxu0
    %1832 = vdwg.mxu0
    %v1833 = vld [vmem:[%s17] sm:$0xf]
    %v1834 = vld [vmem:[%s17 + $0x4] sm:$0xf]
    %v1835 = vpack.c.bf16 %v1822, %v1819
    %v1836 = vpack.c.bf16 %v1830, %v1827
    %v1839 = vunpack.c.l.b16 %v1833
    %v1840 = vunpack.c.l.b16 %v1834
    %v1841 = vpack.c.b16 %v1840, %v1839
    %v1843 = vsel %vm1464, %v1841, 0
    %1845 = vmatprep.subr.bf16.mxu0 0
    %1846 = vmatpush1.bf16.msra.mxu0 %v1835
    %1847 = vmatprep.subr.bf16.mxu0 0
    %1848 = vmatpush1.bf16.msra.mxu0 %v1836
    %1849 = vmatprep.subr.bf16.mxu0 0
    %1850 = vmatpush1.bf16.msra.mxu0 0
    %1851 = vmatprep.subr.bf16.mxu0 0
    %1852 = vmatpush1.bf16.msra.mxu0 0
    %1853 = vmatprep.subr.bf16.mxu0 0
    %1854 = vmatpush1.bf16.msra.mxu0 0
    %1855 = vmatprep.subr.bf16.mxu0 0
    %1856 = vmatpush1.bf16.msra.mxu0 0
    %1857 = vmatprep.subr.bf16.mxu0 0
    %1858 = vmatpush1.bf16.msra.mxu0 0
    %1859 = vmatprep.subr.bf16.mxu0 0
    %1860 = vmatpush1.bf16.msra.mxu0 0
    %1861 = vmatprep.subr.bf16.mxu0 0
    %1862 = vmatpush1.bf16.msra.mxu0 0
    %1863 = vmatprep.subr.bf16.mxu0 0
    %1864 = vmatpush1.bf16.msra.mxu0 0
    %1865 = vmatprep.subr.bf16.mxu0 0
    %1866 = vmatpush1.bf16.msra.mxu0 0
    %1867 = vmatprep.subr.bf16.mxu0 0
    %1868 = vmatpush1.bf16.msra.mxu0 0
    %1869 = vmatprep.subr.bf16.mxu0 0
    %1870 = vmatpush1.bf16.msra.mxu0 0
    %1871 = vmatprep.subr.bf16.mxu0 0
    %1872 = vmatpush1.bf16.msra.mxu0 0
    %1873 = vmatprep.subr.bf16.mxu0 0
    %1874 = vmatpush1.bf16.msra.mxu0 0
    %1875 = vmatprep.subr.bf16.mxu0 0
    %1876 = vmatpush1.bf16.msra.mxu0 0
    %1877 = vmatprep.mubr.bf16.mxu0 0
    %1878 = vmatmul.mubr.bf16.gmra.mrb[0].mxu0 %v1843
    %v1879 = vpop.f32.mrb[0].mxu0
    %v1880 = vadd.f32 0.0, %v1879
    %v1881 = vpop.f32.mrb[0].mxu0
    %v1882 = vpop.f32.mrb[0].mxu0
    %v1883 = vadd.f32 0.0, %v1882
    %v1884 = vpop.f32.mrb[0].mxu0
    %1885 = vdwg.mxu0
    %v1886 = vrot.slane %v1880, 7
    %v1887 = vrot.slane %v1883, 7
    %v1888 = vsel %vm88, %v1886, %v1887
    %v1889 = vsel %vm88, %v1887, %v1886
    %v1890 = vld [vmem:[%s11] sm:$0xff]
    %v1891 = vld [vmem:[%s11 + $0x8] sm:$0xff]
    %1893 = vset.pattern.permute.xlu0 0
    %1894 = vperm.xlu0 %1893, %v1890
    %v1895 = vpop.permute.xlu0 %1894
    %1898 = vset.pattern.permute.xlu0 0
    %1899 = vperm.xlu0 %1898, %v1891
    %v1900 = vpop.permute.xlu0 %1899
    %v1902 = vmul.f32 %v1889, %v1895
    %v1903 = vmul.f32 %v1888, %v1900
    %v1904 = vrot.slane %v1880, 1
    %v1905 = vrot.slane %v1883, 1
    %v1906 = vsel %vm161, %v1904, %v1905
    %v1907 = vsel %vm161, %v1905, %v1904
    %1908 = vset.pattern.permute.xlu0 1
    %1909 = vperm.xlu0 %1908, %v1890
    %v1910 = vpop.permute.xlu0 %1909
    %1912 = vset.pattern.permute.xlu0 1
    %1913 = vperm.xlu0 %1912, %v1891
    %v1914 = vpop.permute.xlu0 %1913
    %v1916 = vmul.f32 %v1906, %v1910
    %v1917 = vmul.f32 %v1907, %v1914
    %1920 = vrot.lane.b32.xlu0 %v1880, 96
    %v1921 = vpop.permute.xlu0 %1920
    %1922 = vrot.lane.b32.xlu0 %v1883, 96
    %v1923 = vpop.permute.xlu0 %1922
    %1928 = vrot.lane.b32.xlu0 %v1916, 64
    %v1929 = vpop.permute.xlu0 %1928
    %1930 = vrot.lane.b32.xlu0 %v1917, 64
    %v1931 = vpop.permute.xlu0 %1930
    %v1934 = vsel %vm1221, %v1902, %v1921
    %v1935 = vsel %vm1221, %v1903, %v1923
    %v1936 = vsel %vm974, %v1921, %v1929
    %v1937 = vsel %vm974, %v1923, %v1931
    %v1938 = vld [vmem:[%s9] sm:$0xff]
    %v1939 = vld [vmem:[%s9 + $0x8] sm:$0xff]
    %v1940 = vld [vmem:[%s9 + $0x10] sm:$0xff]
    %v1941 = vld [vmem:[%s9 + $0x18] sm:$0xff]
    %v1942 = vld [vmem:[%s9 + $0x20] sm:$0xff]
    %v1943 = vld [vmem:[%s9 + $0x28] sm:$0xff]
    %v1944 = vld [vmem:[%s9 + $0x30] sm:$0xff]
    %v1945 = vld [vmem:[%s9 + $0x38] sm:$0xff]
    %v1946 = vld [vmem:[%s9 + $0x40] sm:$0xff]
    %v1947 = vld [vmem:[%s9 + $0x48] sm:$0xff]
    %v1948 = vld [vmem:[%s9 + $0x50] sm:$0xff]
    %v1949 = vld [vmem:[%s9 + $0x58] sm:$0xff]
    %v1950 = vld [vmem:[%s9 + $0x60] sm:$0xff]
    %v1951 = vld [vmem:[%s9 + $0x68] sm:$0xff]
    %v1952 = vld [vmem:[%s9 + $0x70] sm:$0xff]
    %v1953 = vld [vmem:[%s9 + $0x78] sm:$0xff]
    %v1954 = vld [vmem:[%s9 + $0x80] sm:$0xff]
    %v1955 = vld [vmem:[%s9 + $0x88] sm:$0xff]
    %v1956 = vld [vmem:[%s9 + $0x90] sm:$0xff]
    %v1957 = vld [vmem:[%s9 + $0x98] sm:$0xff]
    %v1958 = vld [vmem:[%s9 + $0xa0] sm:$0xff]
    %v1959 = vld [vmem:[%s9 + $0xa8] sm:$0xff]
    %v1960 = vld [vmem:[%s9 + $0xb0] sm:$0xff]
    %v1961 = vld [vmem:[%s9 + $0xb8] sm:$0xff]
    %v1962 = vld [vmem:[%s9 + $0xc0] sm:$0xff]
    %v1963 = vld [vmem:[%s9 + $0xc8] sm:$0xff]
    %v1964 = vld [vmem:[%s9 + $0xd0] sm:$0xff]
    %v1965 = vld [vmem:[%s9 + $0xd8] sm:$0xff]
    %v1966 = vld [vmem:[%s9 + $0xe0] sm:$0xff]
    %v1967 = vld [vmem:[%s9 + $0xe8] sm:$0xff]
    %v1968 = vld [vmem:[%s9 + $0xf0] sm:$0xff]
    %v1969 = vld [vmem:[%s9 + $0xf8] sm:$0xff]
    %v1970 = vld [vmem:[%s9 + $0x100] sm:$0xff]
    %v1971 = vld [vmem:[%s9 + $0x108] sm:$0xff]
    %v1972 = vld [vmem:[%s9 + $0x110] sm:$0xff]
    %v1973 = vld [vmem:[%s9 + $0x118] sm:$0xff]
    %v1974 = vpack.c.bf16 %v1935, %v1934
    %v1975 = vpack.c.bf16 %v1937, %v1936
    %v1976 = vpack.c.bf16 %v1931, %v1929
    %v1977 = vld [vmem:[%s10] sm:$0x3]
    %v1979 = vlaneseq
    %v1980 = vshrl.u32 %v1979, 7
    %v1981 = vsub.s32 0, %v1980
    %v1982 = vrot.slane %v1977, %v1981
    %v1983 = vlaneseq
    %v1984 = vshrl.u32 %v1983, 7
    %v1985 = vsub.s32 1, %v1984
    %v1986 = vrot.slane %v1977, %v1985
    %v2025 = vunpack.c.l.b16 %v1938
    %v2026 = vunpack.c.h.b16 %v1938
    %v2027 = vunpack.c.l.b16 %v1939
    %v2028 = vunpack.c.h.b16 %v1939
    %v2029 = vunpack.c.l.b16 %v1940
    %v2030 = vunpack.c.h.b16 %v1940
    %v2031 = vunpack.c.l.b16 %v1941
    %v2032 = vunpack.c.h.b16 %v1941
    %v2033 = vunpack.c.l.b16 %v1942
    %v2034 = vunpack.c.h.b16 %v1942
    %v2035 = vunpack.c.l.b16 %v1943
    %v2036 = vunpack.c.h.b16 %v1943
    %v2037 = vunpack.c.l.b16 %v1944
    %v2038 = vunpack.c.h.b16 %v1944
    %v2039 = vunpack.c.l.b16 %v1945
    %v2040 = vunpack.c.h.b16 %v1945
    %v2041 = vunpack.c.l.b16 %v1946
    %v2042 = vunpack.c.h.b16 %v1946
    %v2043 = vunpack.c.l.b16 %v1947
    %v2044 = vunpack.c.h.b16 %v1947
    %v2045 = vunpack.c.l.b16 %v1948
    %v2046 = vunpack.c.h.b16 %v1948
    %v2047 = vunpack.c.l.b16 %v1949
    %v2048 = vunpack.c.h.b16 %v1949
    %v2049 = vunpack.c.l.b16 %v1950
    %v2050 = vunpack.c.h.b16 %v1950
    %v2051 = vunpack.c.l.b16 %v1951
    %v2052 = vunpack.c.h.b16 %v1951
    %v2053 = vunpack.c.l.b16 %v1952
    %v2054 = vunpack.c.h.b16 %v1952
    %v2055 = vunpack.c.l.b16 %v1953
    %v2056 = vunpack.c.h.b16 %v1953
    %v2057 = vunpack.c.l.b16 %v1954
    %v2058 = vunpack.c.h.b16 %v1954
    %v2059 = vunpack.c.l.b16 %v1955
    %v2060 = vunpack.c.h.b16 %v1955
    %v2061 = vunpack.c.l.b16 %v1956
    %v2062 = vunpack.c.h.b16 %v1956
    %v2063 = vunpack.c.l.b16 %v1957
    %v2064 = vunpack.c.h.b16 %v1957
    %v2065 = vunpack.c.l.b16 %v1958
    %v2066 = vunpack.c.h.b16 %v1958
    %v2067 = vunpack.c.l.b16 %v1959
    %v2068 = vunpack.c.h.b16 %v1959
    %v2069 = vunpack.c.l.b16 %v1960
    %v2070 = vunpack.c.h.b16 %v1960
    %v2071 = vunpack.c.l.b16 %v1961
    %v2072 = vunpack.c.h.b16 %v1961
    %v2073 = vunpack.c.l.b16 %v1962
    %v2074 = vunpack.c.h.b16 %v1962
    %v2075 = vunpack.c.l.b16 %v1963
    %v2076 = vunpack.c.h.b16 %v1963
    %v2077 = vunpack.c.l.b16 %v1964
    %v2078 = vunpack.c.h.b16 %v1964
    %v2079 = vunpack.c.l.b16 %v1965
    %v2080 = vunpack.c.h.b16 %v1965
    %v2081 = vunpack.c.l.b16 %v1966
    %v2082 = vunpack.c.h.b16 %v1966
    %v2083 = vunpack.c.l.b16 %v1967
    %v2084 = vunpack.c.h.b16 %v1967
    %v2085 = vunpack.c.l.b16 %v1968
    %v2086 = vunpack.c.h.b16 %v1968
    %v2087 = vunpack.c.l.b16 %v1969
    %v2088 = vunpack.c.h.b16 %v1969
    %v2089 = vunpack.c.l.b16 %v1970
    %v2090 = vunpack.c.h.b16 %v1970
    %v2091 = vunpack.c.l.b16 %v1971
    %v2092 = vunpack.c.h.b16 %v1971
    %v2093 = vunpack.c.l.b16 %v1972
    %v2094 = vunpack.c.h.b16 %v1972
    %v2095 = vunpack.c.l.b16 %v1973
    %v2096 = vunpack.c.h.b16 %v1973
    %v2097 = vpack.c.b16 %v2027, %v2025
    %v2098 = vpack.c.b16 %v2028, %v2026
    %v2099 = vpack.c.b16 %v2031, %v2029
    %v2100 = vpack.c.b16 %v2032, %v2030
    %v2101 = vpack.c.b16 %v2035, %v2033
    %v2102 = vpack.c.b16 %v2036, %v2034
    %v2103 = vpack.c.b16 %v2039, %v2037
    %v2104 = vpack.c.b16 %v2040, %v2038
    %v2105 = vpack.c.b16 %v2043, %v2041
    %v2106 = vpack.c.b16 %v2044, %v2042
    %v2107 = vpack.c.b16 %v2047, %v2045
    %v2108 = vpack.c.b16 %v2048, %v2046
    %v2109 = vpack.c.b16 %v2051, %v2049
    %v2110 = vpack.c.b16 %v2052, %v2050
    %v2111 = vpack.c.b16 %v2055, %v2053
    %v2112 = vpack.c.b16 %v2056, %v2054
    %v2113 = vpack.c.b16 %v2059, %v2057
    %v2114 = vpack.c.b16 %v2060, %v2058
    %v2115 = vpack.c.b16 %v2063, %v2061
    %v2116 = vpack.c.b16 %v2064, %v2062
    %v2117 = vpack.c.b16 %v2067, %v2065
    %v2118 = vpack.c.b16 %v2068, %v2066
    %v2119 = vpack.c.b16 %v2071, %v2069
    %v2120 = vpack.c.b16 %v2072, %v2070
    %v2121 = vpack.c.b16 %v2075, %v2073
    %v2122 = vpack.c.b16 %v2076, %v2074
    %v2123 = vpack.c.b16 %v2079, %v2077
    %v2124 = vpack.c.b16 %v2080, %v2078
    %v2125 = vpack.c.b16 %v2083, %v2081
    %v2126 = vpack.c.b16 %v2084, %v2082
    %v2127 = vpack.c.b16 %v2087, %v2085
    %v2128 = vpack.c.b16 %v2088, %v2086
    %v2129 = vpack.c.b16 %v2091, %v2089
    %v2130 = vpack.c.b16 %v2092, %v2090
    %v2131 = vpack.c.b16 %v2095, %v2093
    %v2132 = vpack.c.b16 %v2096, %v2094
    %v2170 = vsel %vm1464, %v1976, 0
    %2172 = vmatprep.subr.bf16.mxu0 %v2098
    %2173 = vmatpush1.bf16.msra.mxu0 %v2097
    %2174 = vmatprep.subr.bf16.mxu0 %v2100
    %2175 = vmatpush1.bf16.msra.mxu0 %v2099
    %2176 = vmatprep.subr.bf16.mxu0 %v2102
    %2177 = vmatpush1.bf16.msra.mxu0 %v2101
    %2178 = vmatprep.subr.bf16.mxu0 %v2104
    %2179 = vmatpush1.bf16.msra.mxu0 %v2103
    %2180 = vmatprep.subr.bf16.mxu0 %v2106
    %2181 = vmatpush1.bf16.msra.mxu0 %v2105
    %2182 = vmatprep.subr.bf16.mxu0 %v2108
    %2183 = vmatpush1.bf16.msra.mxu0 %v2107
    %2184 = vmatprep.subr.bf16.mxu0 %v2110
    %2185 = vmatpush1.bf16.msra.mxu0 %v2109
    %2186 = vmatprep.subr.bf16.mxu0 %v2112
    %2187 = vmatpush1.bf16.msra.mxu0 %v2111
    %2188 = vmatprep.subr.bf16.mxu0 %v2114
    %2189 = vmatpush1.bf16.msra.mxu0 %v2113
    %2190 = vmatprep.subr.bf16.mxu0 %v2116
    %2191 = vmatpush1.bf16.msra.mxu0 %v2115
    %2192 = vmatprep.subr.bf16.mxu0 %v2118
    %2193 = vmatpush1.bf16.msra.mxu0 %v2117
    %2194 = vmatprep.subr.bf16.mxu0 %v2120
    %2195 = vmatpush1.bf16.msra.mxu0 %v2119
    %2196 = vmatprep.subr.bf16.mxu0 %v2122
    %2197 = vmatpush1.bf16.msra.mxu0 %v2121
    %2198 = vmatprep.subr.bf16.mxu0 %v2124
    %2199 = vmatpush1.bf16.msra.mxu0 %v2123
    %2200 = vmatprep.subr.bf16.mxu0 %v2126
    %2201 = vmatpush1.bf16.msra.mxu0 %v2125
    %2202 = vmatprep.subr.bf16.mxu0 %v2128
    %2203 = vmatpush1.bf16.msra.mxu0 %v2127
    %2204 = vmatprep.mubr.bf16.mxu0 %v1975
    %2205 = vmatmul.mubr.bf16.gmra.mrb[0].mxu0 %v1974
    %v2206 = vpop.f32.mrb[0].mxu0
    %v2207 = vadd.f32 %v1982, %v2206
    %v2208 = vpop.f32.mrb[0].mxu0
    %v2209 = vadd.f32 %v1986, %v2208
    %v2210 = vpop.f32.mrb[0].mxu0
    %v2211 = vadd.f32 %v1982, %v2210
    %v2212 = vpop.f32.mrb[0].mxu0
    %v2213 = vadd.f32 %v1986, %v2212
    %2214 = vdwg.mxu0
    %2215 = vmatprep.subr.bf16.mxu0 %v2130
    %2216 = vmatpush1.bf16.msra.mxu0 %v2129
    %2217 = vmatprep.subr.bf16.mxu0 %v2132
    %2218 = vmatpush1.bf16.msra.mxu0 %v2131
    %2219 = vmatprep.subr.bf16.mxu0 0
    %2220 = vmatpush1.bf16.msra.mxu0 0
    %2221 = vmatprep.subr.bf16.mxu0 0
    %2222 = vmatpush1.bf16.msra.mxu0 0
    %2223 = vmatprep.subr.bf16.mxu0 0
    %2224 = vmatpush1.bf16.msra.mxu0 0
    %2225 = vmatprep.subr.bf16.mxu0 0
    %2226 = vmatpush1.bf16.msra.mxu0 0
    %2227 = vmatprep.subr.bf16.mxu0 0
    %2228 = vmatpush1.bf16.msra.mxu0 0
    %2229 = vmatprep.subr.bf16.mxu0 0
    %2230 = vmatpush1.bf16.msra.mxu0 0
    %2231 = vmatprep.subr.bf16.mxu0 0
    %2232 = vmatpush1.bf16.msra.mxu0 0
    %2233 = vmatprep.subr.bf16.mxu0 0
    %2234 = vmatpush1.bf16.msra.mxu0 0
    %2235 = vmatprep.subr.bf16.mxu0 0
    %2236 = vmatpush1.bf16.msra.mxu0 0
    %2237 = vmatprep.subr.bf16.mxu0 0
    %2238 = vmatpush1.bf16.msra.mxu0 0
    %2239 = vmatprep.subr.bf16.mxu0 0
    %2240 = vmatpush1.bf16.msra.mxu0 0
    %2241 = vmatprep.subr.bf16.mxu0 0
    %2242 = vmatpush1.bf16.msra.mxu0 0
    %2243 = vmatprep.subr.bf16.mxu0 0
    %2244 = vmatpush1.bf16.msra.mxu0 0
    %2245 = vmatprep.subr.bf16.mxu0 0
    %2246 = vmatpush1.bf16.msra.mxu0 0
    %2247 = vmatprep.mubr.bf16.mxu0 0
    %2248 = vmatmul.mubr.bf16.gmra.mrb[0].mxu0 %v2170
    %v2249 = vpop.f32.mrb[0].mxu0
    %v2250 = vadd.f32 %v2207, %v2249
    %v2251 = vpop.f32.mrb[0].mxu0
    %v2252 = vadd.f32 %v2209, %v2251
    %v2253 = vpop.f32.mrb[0].mxu0
    %v2254 = vadd.f32 %v2211, %v2253
    %v2255 = vpop.f32.mrb[0].mxu0
    %v2256 = vadd.f32 %v2213, %v2255
    %2257 = vdwg.mxu0
    %v2258 = vmax.f32 %v2250, 0.0
    %v2259 = vmax.f32 %v2252, 0.0
    %v2260 = vmax.f32 %v2254, 0.0
    %v2261 = vmax.f32 %v2256, 0.0
    %vm2262 = vcmask 1047680
    %2263 = vrot.lane.b32.xlu0 %v2258, 16
    %v2264 = vpop.permute.xlu0 %2263
    %v2265 = vsel %vm2262, %v2264, %v2259
    %2266 = vrot.lane.b32.xlu0 %v2260, 16
    %v2267 = vpop.permute.xlu0 %2266
    %v2268 = vsel %vm2262, %v2267, %v2261
    %2269 = vrot.lane.b32.xlu0 %v2265, 16
    %v2270 = vpop.permute.xlu0 %2269
    %2271 = vrot.lane.b32.xlu0 %v2268, 16
    %v2272 = vpop.permute.xlu0 %2271
    %v2273 = vsel %vm2262, %v2270, %v2264
    %v2274 = vsel %vm2262, %v2272, %v2267
    %2281 = vrot.lane.b32.xlu0 %v2258, 2
    %v2282 = vpop.permute.xlu0 %2281
    %2283 = vrot.lane.b32.xlu0 %v2265, 2
    %v2284 = vpop.permute.xlu0 %2283
    %2285 = vrot.lane.b32.xlu0 %v2273, 2
    %v2286 = vpop.permute.xlu0 %2285
    %2287 = vrot.lane.b32.xlu0 %v2260, 2
    %v2288 = vpop.permute.xlu0 %2287
    %2289 = vrot.lane.b32.xlu0 %v2268, 2
    %v2290 = vpop.permute.xlu0 %2289
    %2291 = vrot.lane.b32.xlu0 %v2274, 2
    %v2292 = vpop.permute.xlu0 %2291
    %vm2293 = vcmask 15360
    %v2294 = vsel %vm2293, %v2282, %v2284
    %v2295 = vsel %vm2293, %v2284, %v2286
    %v2296 = vsel %vm2293, %v2288, %v2290
    %v2297 = vsel %vm2293, %v2290, %v2292
    %v2302 = vmax.f32 %v2258, %v2294
    %v2303 = vmax.f32 %v2259, %v2295
    %v2304 = vmax.f32 %v2260, %v2296
    %v2305 = vmax.f32 %v2261, %v2297
    %v2306 = vrot.slane %v2302, 7
    %v2307 = vrot.slane %v2303, 7
    %v2308 = vrot.slane %v2304, 7
    %v2309 = vrot.slane %v2305, 7
    %v2310 = vsel %vm88, %v2306, %v2308
    %v2311 = vsel %vm88, %v2307, %v2309
    %v2312 = vsel %vm88, %v2308, %v2306
    %v2313 = vsel %vm88, %v2309, %v2307
    %v2314 = vmax.f32 %v2302, %v2312
    %v2315 = vmax.f32 %v2303, %v2313
    %v2316 = vmax.f32 %v2304, %v2310
    %v2317 = vmax.f32 %v2305, %v2311
    %v2318 = vld [vmem:[%s12] sm:$0xf]
    %v2319 = vld [vmem:[%s12 + $0x4] sm:$0xf]
    %v2320 = vld [vmem:[%s12 + $0x8] sm:$0xf]
    %v2321 = vld [vmem:[%s12 + $0xc] sm:$0xf]
    %v2322 = vld [vmem:[%s12 + $0x10] sm:$0xf]
    %v2323 = vld [vmem:[%s12 + $0x14] sm:$0xf]
    %v2324 = vld [vmem:[%s12 + $0x18] sm:$0xf]
    %v2325 = vld [vmem:[%s12 + $0x1c] sm:$0xf]
    %v2326 = vld [vmem:[%s12 + $0x20] sm:$0xf]
    %v2327 = vld [vmem:[%s12 + $0x24] sm:$0xf]
    %v2328 = vld [vmem:[%s12 + $0x28] sm:$0xf]
    %v2329 = vld [vmem:[%s12 + $0x2c] sm:$0xf]
    %v2330 = vld [vmem:[%s12 + $0x30] sm:$0xf]
    %v2331 = vld [vmem:[%s12 + $0x34] sm:$0xf]
    %v2332 = vld [vmem:[%s12 + $0x38] sm:$0xf]
    %v2333 = vld [vmem:[%s12 + $0x3c] sm:$0xf]
    %v2334 = vld [vmem:[%s12 + $0x40] sm:$0xf]
    %v2335 = vld [vmem:[%s12 + $0x44] sm:$0xf]
    %v2336 = vpack.c.bf16 %v2316, %v2314
    %v2337 = vpack.c.bf16 %v2317, %v2315
    %v2356 = vunpack.c.l.b16 %v2318
    %v2357 = vunpack.c.l.b16 %v2319
    %v2358 = vunpack.c.l.b16 %v2320
    %v2359 = vunpack.c.l.b16 %v2321
    %v2360 = vunpack.c.l.b16 %v2322
    %v2361 = vunpack.c.l.b16 %v2323
    %v2362 = vunpack.c.l.b16 %v2324
    %v2363 = vunpack.c.l.b16 %v2325
    %v2364 = vunpack.c.l.b16 %v2326
    %v2365 = vunpack.c.l.b16 %v2327
    %v2366 = vunpack.c.l.b16 %v2328
    %v2367 = vunpack.c.l.b16 %v2329
    %v2368 = vunpack.c.l.b16 %v2330
    %v2369 = vunpack.c.l.b16 %v2331
    %v2370 = vunpack.c.l.b16 %v2332
    %v2371 = vunpack.c.l.b16 %v2333
    %v2372 = vunpack.c.l.b16 %v2334
    %v2373 = vunpack.c.l.b16 %v2335
    %v2374 = vpack.c.b16 %v2357, %v2356
    %v2375 = vpack.c.b16 %v2359, %v2358
    %v2376 = vpack.c.b16 %v2361, %v2360
    %v2377 = vpack.c.b16 %v2363, %v2362
    %v2378 = vpack.c.b16 %v2365, %v2364
    %v2379 = vpack.c.b16 %v2367, %v2366
    %v2380 = vpack.c.b16 %v2369, %v2368
    %v2381 = vpack.c.b16 %v2371, %v2370
    %v2382 = vpack.c.b16 %v2373, %v2372
    %vm2392 = vcmask 130048
    %v2394 = vsel %vm2392, %v2337, 0
    %2396 = vmatprep.subr.bf16.mxu0 0
    %2397 = vmatpush1.bf16.msra.mxu0 %v2374
    %2398 = vmatprep.subr.bf16.mxu0 0
    %2399 = vmatpush1.bf16.msra.mxu0 %v2375
    %2400 = vmatprep.subr.bf16.mxu0 0
    %2401 = vmatpush1.bf16.msra.mxu0 %v2376
    %2402 = vmatprep.subr.bf16.mxu0 0
    %2403 = vmatpush1.bf16.msra.mxu0 %v2377
    %2404 = vmatprep.subr.bf16.mxu0 0
    %2405 = vmatpush1.bf16.msra.mxu0 %v2378
    %2406 = vmatprep.subr.bf16.mxu0 0
    %2407 = vmatpush1.bf16.msra.mxu0 %v2379
    %2408 = vmatprep.subr.bf16.mxu0 0
    %2409 = vmatpush1.bf16.msra.mxu0 %v2380
    %2410 = vmatprep.subr.bf16.mxu0 0
    %2411 = vmatpush1.bf16.msra.mxu0 %v2381
    %2412 = vmatprep.subr.bf16.mxu0 0
    %2413 = vmatpush1.bf16.msra.mxu0 %v2382
    %2414 = vmatprep.subr.bf16.mxu0 0
    %2415 = vmatpush1.bf16.msra.mxu0 0
    %2416 = vmatprep.subr.bf16.mxu0 0
    %2417 = vmatpush1.bf16.msra.mxu0 0
    %2418 = vmatprep.subr.bf16.mxu0 0
    %2419 = vmatpush1.bf16.msra.mxu0 0
    %2420 = vmatprep.subr.bf16.mxu0 0
    %2421 = vmatpush1.bf16.msra.mxu0 0
    %2422 = vmatprep.subr.bf16.mxu0 0
    %2423 = vmatpush1.bf16.msra.mxu0 0
    %2424 = vmatprep.subr.bf16.mxu0 0
    %2425 = vmatpush1.bf16.msra.mxu0 0
    %2426 = vmatprep.subr.bf16.mxu0 0
    %2427 = vmatpush1.bf16.msra.mxu0 0
    %2428 = vmatprep.mubr.bf16.mxu0 %v2394
    %2429 = vmatmul.mubr.bf16.gmra.mrb[0].mxu0 %v2336
    %v2430 = vpop.f32.mrb[0].mxu0
    %v2431 = vadd.f32 0.0, %v2430
    %v2432 = vpop.f32.mrb[0].mxu0
    %v2433 = vpop.f32.mrb[0].mxu0
    %v2434 = vadd.f32 0.0, %v2433
    %v2435 = vpop.f32.mrb[0].mxu0
    %2436 = vdwg.mxu0
    %v2437 = vld [vmem:[%s17] sm:$0xf]
    %v2438 = vpack.c.bf16 %v2434, %v2431
    %v2440 = vsel %vm2392, %v2437, 0
    %2442 = vmatprep.subr.bf16.mxu0 0
    %2443 = vmatpush1.bf16.msra.mxu0 %v2438
    %2444 = vmatprep.subr.bf16.mxu0 0
    %2445 = vmatpush1.bf16.msra.mxu0 0
    %2446 = vmatprep.subr.bf16.mxu0 0
    %2447 = vmatpush1.bf16.msra.mxu0 0
    %2448 = vmatprep.subr.bf16.mxu0 0
    %2449 = vmatpush1.bf16.msra.mxu0 0
    %2450 = vmatprep.subr.bf16.mxu0 0
    %2451 = vmatpush1.bf16.msra.mxu0 0
    %2452 = vmatprep.subr.bf16.mxu0 0
    %2453 = vmatpush1.bf16.msra.mxu0 0
    %2454 = vmatprep.subr.bf16.mxu0 0
    %2455 = vmatpush1.bf16.msra.mxu0 0
    %2456 = vmatprep.subr.bf16.mxu0 0
    %2457 = vmatpush1.bf16.msra.mxu0 0
    %2458 = vmatprep.subr.bf16.mxu0 0
    %2459 = vmatpush1.bf16.msra.mxu0 0
    %2460 = vmatprep.subr.bf16.mxu0 0
    %2461 = vmatpush1.bf16.msra.mxu0 0
    %2462 = vmatprep.subr.bf16.mxu0 0
    %2463 = vmatpush1.bf16.msra.mxu0 0
    %2464 = vmatprep.subr.bf16.mxu0 0
    %2465 = vmatpush1.bf16.msra.mxu0 0
    %2466 = vmatprep.subr.bf16.mxu0 0
    %2467 = vmatpush1.bf16.msra.mxu0 0
    %2468 = vmatprep.subr.bf16.mxu0 0
    %2469 = vmatpush1.bf16.msra.mxu0 0
    %2470 = vmatprep.subr.bf16.mxu0 0
    %2471 = vmatpush1.bf16.msra.mxu0 0
    %2472 = vmatprep.subr.bf16.mxu0 0
    %2473 = vmatpush1.bf16.msra.mxu0 0
    %2474 = vmatprep.mubr.bf16.mxu0 0
    %2475 = vmatmul.mubr.bf16.gmra.mrb[0].mxu0 %v2440
    %v2476 = vpop.f32.mrb[0].mxu0
    %v2477 = vadd.f32 0.0, %v2476
    %v2478 = vpop.f32.mrb[0].mxu0
    %v2479 = vpop.f32.mrb[0].mxu0
    %v2480 = vpop.f32.mrb[0].mxu0
    %2481 = vdwg.mxu0
    %v2482 = vrot.slane %v2477, 7
    %v2483 = vld [vmem:[%s15] sm:$0xff]
    %2485 = vset.pattern.permute.xlu0 0
    %2486 = vperm.xlu0 %2485, %v2483
    %v2487 = vpop.permute.xlu0 %2486
    %v2489 = vmul.f32 %v2482, %v2487
    %v2490 = vrot.slane %v2477, 1
    %2491 = vset.pattern.permute.xlu0 1
    %2492 = vperm.xlu0 %2491, %v2483
    %v2493 = vpop.permute.xlu0 %2492
    %v2495 = vmul.f32 %v2490, %v2493
    %2497 = vrot.lane.b32.xlu0 %v2477, 72
    %v2498 = vpop.permute.xlu0 %2497
    %2501 = vrot.lane.b32.xlu0 %v2495, 16
    %v2502 = vpop.permute.xlu0 %2501
    %vm2504 = vcmask 588800
    %v2505 = vsel %vm2504, %v2489, %v2498
    %v2506 = vsel %vm2392, %v2498, %v2502
    %v2507 = vld [vmem:[%s13] sm:$0xf]
    %v2508 = vld [vmem:[%s13 + $0x4] sm:$0xf]
    %v2509 = vld [vmem:[%s13 + $0x8] sm:$0xf]
    %v2510 = vld [vmem:[%s13 + $0xc] sm:$0xf]
    %v2511 = vld [vmem:[%s13 + $0x10] sm:$0xf]
    %v2512 = vld [vmem:[%s13 + $0x14] sm:$0xf]
    %v2513 = vld [vmem:[%s13 + $0x18] sm:$0xf]
    %v2514 = vld [vmem:[%s13 + $0x1c] sm:$0xf]
    %v2515 = vld [vmem:[%s13 + $0x20] sm:$0xf]
    %v2516 = vld [vmem:[%s13 + $0x24] sm:$0xf]
    %v2517 = vld [vmem:[%s13 + $0x28] sm:$0xf]
    %v2518 = vld [vmem:[%s13 + $0x2c] sm:$0xf]
    %v2519 = vld [vmem:[%s13 + $0x30] sm:$0xf]
    %v2520 = vld [vmem:[%s13 + $0x34] sm:$0xf]
    %v2521 = vld [vmem:[%s13 + $0x38] sm:$0xf]
    %v2522 = vld [vmem:[%s13 + $0x3c] sm:$0xf]
    %v2523 = vld [vmem:[%s13 + $0x40] sm:$0xf]
    %v2524 = vld [vmem:[%s13 + $0x44] sm:$0xf]
    %v2525 = vld [vmem:[%s13 + $0x48] sm:$0xf]
    %v2526 = vld [vmem:[%s13 + $0x4c] sm:$0xf]
    %v2527 = vld [vmem:[%s13 + $0x50] sm:$0xf]
    %v2528 = vld [vmem:[%s13 + $0x54] sm:$0xf]
    %v2529 = vld [vmem:[%s13 + $0x58] sm:$0xf]
    %v2530 = vld [vmem:[%s13 + $0x5c] sm:$0xf]
    %v2531 = vld [vmem:[%s13 + $0x60] sm:$0xf]
    %v2532 = vld [vmem:[%s13 + $0x64] sm:$0xf]
    %v2533 = vld [vmem:[%s13 + $0x68] sm:$0xf]
    %v2534 = vpack.c.bf16 %v2505, %v2505
    %v2535 = vpack.c.bf16 %v2506, %v2506
    %v2536 = vld [vmem:[%s14] sm:$0x1]
    %v2538 = vlaneseq
    %v2539 = vshrl.u32 %v2538, 7
    %v2540 = vsub.s32 0, %v2539
    %v2541 = vrot.slane %v2536, %v2540
    %v2570 = vunpack.c.l.b16 %v2507
    %v2571 = vunpack.c.l.b16 %v2508
    %v2572 = vunpack.c.l.b16 %v2509
    %v2573 = vunpack.c.l.b16 %v2510
    %v2574 = vunpack.c.l.b16 %v2511
    %v2575 = vunpack.c.l.b16 %v2512
    %v2576 = vunpack.c.l.b16 %v2513
    %v2577 = vunpack.c.l.b16 %v2514
    %v2578 = vunpack.c.l.b16 %v2515
    %v2579 = vunpack.c.l.b16 %v2516
    %v2580 = vunpack.c.l.b16 %v2517
    %v2581 = vunpack.c.l.b16 %v2518
    %v2582 = vunpack.c.l.b16 %v2519
    %v2583 = vunpack.c.l.b16 %v2520
    %v2584 = vunpack.c.l.b16 %v2521
    %v2585 = vunpack.c.l.b16 %v2522
    %v2586 = vunpack.c.l.b16 %v2523
    %v2587 = vunpack.c.l.b16 %v2524
    %v2588 = vunpack.c.l.b16 %v2525
    %v2589 = vunpack.c.l.b16 %v2526
    %v2590 = vunpack.c.l.b16 %v2527
    %v2591 = vunpack.c.l.b16 %v2528
    %v2592 = vunpack.c.l.b16 %v2529
    %v2593 = vunpack.c.l.b16 %v2530
    %v2594 = vunpack.c.l.b16 %v2531
    %v2595 = vunpack.c.l.b16 %v2532
    %v2596 = vunpack.c.l.b16 %v2533
    %v2597 = vpack.c.b16 %v2571, %v2570
    %v2598 = vpack.c.b16 %v2573, %v2572
    %v2599 = vpack.c.b16 %v2575, %v2574
    %v2600 = vpack.c.b16 %v2577, %v2576
    %v2601 = vpack.c.b16 %v2579, %v2578
    %v2602 = vpack.c.b16 %v2581, %v2580
    %v2603 = vpack.c.b16 %v2583, %v2582
    %v2604 = vpack.c.b16 %v2585, %v2584
    %v2605 = vpack.c.b16 %v2587, %v2586
    %v2606 = vpack.c.b16 %v2589, %v2588
    %v2607 = vpack.c.b16 %v2591, %v2590
    %v2608 = vpack.c.b16 %v2593, %v2592
    %v2609 = vpack.c.b16 %v2595, %v2594
    %v2610 = vpack.c.b16 %v2596, %v2596
    %vm2624 = vcmask 719872
    %v2626 = vsel %vm2624, %v2535, 0
    %vm2628 = vcmask 1043456
    %v2630 = vsel %vm2628, %v2610, 0
    %2632 = vmatprep.subr.bf16.mxu0 0
    %2633 = vmatpush1.bf16.msra.mxu0 %v2597
    %2634 = vmatprep.subr.bf16.mxu0 0
    %2635 = vmatpush1.bf16.msra.mxu0 %v2598
    %2636 = vmatprep.subr.bf16.mxu0 0
    %2637 = vmatpush1.bf16.msra.mxu0 %v2599
    %2638 = vmatprep.subr.bf16.mxu0 0
    %2639 = vmatpush1.bf16.msra.mxu0 %v2600
    %2640 = vmatprep.subr.bf16.mxu0 0
    %2641 = vmatpush1.bf16.msra.mxu0 %v2601
    %2642 = vmatprep.subr.bf16.mxu0 0
    %2643 = vmatpush1.bf16.msra.mxu0 %v2602
    %2644 = vmatprep.subr.bf16.mxu0 0
    %2645 = vmatpush1.bf16.msra.mxu0 %v2603
    %2646 = vmatprep.subr.bf16.mxu0 0
    %2647 = vmatpush1.bf16.msra.mxu0 %v2604
    %2648 = vmatprep.subr.bf16.mxu0 0
    %2649 = vmatpush1.bf16.msra.mxu0 %v2605
    %2650 = vmatprep.subr.bf16.mxu0 0
    %2651 = vmatpush1.bf16.msra.mxu0 %v2606
    %2652 = vmatprep.subr.bf16.mxu0 0
    %2653 = vmatpush1.bf16.msra.mxu0 %v2607
    %2654 = vmatprep.subr.bf16.mxu0 0
    %2655 = vmatpush1.bf16.msra.mxu0 %v2608
    %2656 = vmatprep.subr.bf16.mxu0 0
    %2657 = vmatpush1.bf16.msra.mxu0 %v2609
    %2658 = vmatprep.subr.bf16.mxu0 0
    %2659 = vmatpush1.bf16.msra.mxu0 %v2630
    %2660 = vmatprep.subr.bf16.mxu0 0
    %2661 = vmatpush1.bf16.msra.mxu0 0
    %2662 = vmatprep.subr.bf16.mxu0 0
    %2663 = vmatpush1.bf16.msra.mxu0 0
    %2664 = vmatprep.mubr.bf16.mxu0 %v2626
    %2665 = vmatmul.mubr.bf16.gmra.mrb[0].mxu0 %v2534
    %v2666 = vpop.f32.mrb[0].mxu0
    %v2667 = vadd.f32 %v2541, %v2666
    %v2668 = vpop.f32.mrb[0].mxu0
    %v2669 = vpop.f32.mrb[0].mxu0
    %v2670 = vpop.f32.mrb[0].mxu0
    %2671 = vdwg.mxu0
    %v2672 = vmax.f32 %v2667, 0.0
    %vm2673 = vcmask 1048320
    %2674 = vrot.lane.b32.xlu0 %v2672, 96
    %v2675 = vpop.permute.xlu0 %2674
    %v2676 = vsel %vm2673, %v2675, %v2672
    %2677 = vrot.lane.b32.xlu0 %v2676, 96
    %v2678 = vpop.permute.xlu0 %2677
    %v2679 = vsel %vm2673, %v2678, %v2672
    %2682 = vrot.lane.b32.xlu0 %v2679, 56
    %v2683 = vpop.permute.xlu0 %2682
    %2684 = vrot.lane.b32.xlu0 %v2678, 56
    %v2685 = vpop.permute.xlu0 %2684
    %vm2686 = vcmask 457728
    %v2687 = vsel %vm2686, %v2683, %v2685
    %v2689 = vmax.f32 %v2672, %v2687
    %v2690 = vrot.slane %v2689, 7
    %v2691 = vmax.f32 %v2689, %v2690
    %v2692 = vld [vmem:[%s16] sm:$0xf]
    %v2693 = vld [vmem:[%s16 + $0x4] sm:$0xf]
    %v2694 = vld [vmem:[%s16 + $0x8] sm:$0xf]
    %v2695 = vld [vmem:[%s16 + $0xc] sm:$0xf]
    %v2696 = vld [vmem:[%s16 + $0x10] sm:$0xf]
    %v2697 = vld [vmem:[%s16 + $0x14] sm:$0xf]
    %v2698 = vld [vmem:[%s16 + $0x18] sm:$0xf]
    %v2699 = vld [vmem:[%s16 + $0x1c] sm:$0xf]
    %v2700 = vld [vmem:[%s16 + $0x20] sm:$0xf]
    %v2701 = vld [vmem:[%s16 + $0x24] sm:$0xf]
    %v2702 = vld [vmem:[%s16 + $0x28] sm:$0xf]
    %v2703 = vld [vmem:[%s16 + $0x2c] sm:$0xf]
    %v2704 = vpack.c.bf16 %v2691, %v2691
    %v2717 = vunpack.c.l.b16 %v2692
    %v2718 = vunpack.c.l.b16 %v2693
    %v2719 = vunpack.c.l.b16 %v2694
    %v2720 = vunpack.c.l.b16 %v2695
    %v2721 = vunpack.c.l.b16 %v2696
    %v2722 = vunpack.c.l.b16 %v2697
    %v2723 = vunpack.c.l.b16 %v2698
    %v2724 = vunpack.c.l.b16 %v2699
    %v2725 = vunpack.c.l.b16 %v2700
    %v2726 = vunpack.c.l.b16 %v2701
    %v2727 = vunpack.c.l.b16 %v2702
    %v2728 = vunpack.c.l.b16 %v2703
    %v2729 = vpack.c.b16 %v2718, %v2717
    %v2730 = vpack.c.b16 %v2720, %v2719
    %v2731 = vpack.c.b16 %v2722, %v2721
    %v2732 = vpack.c.b16 %v2724, %v2723
    %v2733 = vpack.c.b16 %v2726, %v2725
    %v2734 = vpack.c.b16 %v2728, %v2727
    %v2742 = vsel %vm1221, %v2704, 0
    %2744 = vmatprep.subr.bf16.mxu0 0
    %2745 = vmatpush1.bf16.msra.mxu0 %v2729
    %2746 = vmatprep.subr.bf16.mxu0 0
    %2747 = vmatpush1.bf16.msra.mxu0 %v2730
    %2748 = vmatprep.subr.bf16.mxu0 0
    %2749 = vmatpush1.bf16.msra.mxu0 %v2731
    %2750 = vmatprep.subr.bf16.mxu0 0
    %2751 = vmatpush1.bf16.msra.mxu0 %v2732
    %2752 = vmatprep.subr.bf16.mxu0 0
    %2753 = vmatpush1.bf16.msra.mxu0 %v2733
    %2754 = vmatprep.subr.bf16.mxu0 0
    %2755 = vmatpush1.bf16.msra.mxu0 %v2734
    %2756 = vmatprep.subr.bf16.mxu0 0
    %2757 = vmatpush1.bf16.msra.mxu0 0
    %2758 = vmatprep.subr.bf16.mxu0 0
    %2759 = vmatpush1.bf16.msra.mxu0 0
    %2760 = vmatprep.subr.bf16.mxu0 0
    %2761 = vmatpush1.bf16.msra.mxu0 0
    %2762 = vmatprep.subr.bf16.mxu0 0
    %2763 = vmatpush1.bf16.msra.mxu0 0
    %2764 = vmatprep.subr.bf16.mxu0 0
    %2765 = vmatpush1.bf16.msra.mxu0 0
    %2766 = vmatprep.subr.bf16.mxu0 0
    %2767 = vmatpush1.bf16.msra.mxu0 0
    %2768 = vmatprep.subr.bf16.mxu0 0
    %2769 = vmatpush1.bf16.msra.mxu0 0
    %2770 = vmatprep.subr.bf16.mxu0 0
    %2771 = vmatpush1.bf16.msra.mxu0 0
    %2772 = vmatprep.subr.bf16.mxu0 0
    %2773 = vmatpush1.bf16.msra.mxu0 0
    %2774 = vmatprep.subr.bf16.mxu0 0
    %2775 = vmatpush1.bf16.msra.mxu0 0
    %2776 = vmatprep.mubr.bf16.mxu0 0
    %2777 = vmatmul.mubr.bf16.gmra.mrb[0].mxu0 %v2742
    %v2778 = vpop.f32.mrb[0].mxu0
    %v2779 = vadd.f32 0.0, %v2778
    %v2780 = vpop.f32.mrb[0].mxu0
    %v2781 = vpop.f32.mrb[0].mxu0
    %v2782 = vpop.f32.mrb[0].mxu0
    %2783 = vdwg.mxu0
    %v2784 = vld [vmem:[%s17] sm:$0x3]
    %v2785 = vpack.c.bf16 %v2779, %v2779
    %vm2786 = vcmask 64512
    %v2788 = vsel %vm2786, %v2784, 0
    %v2791 = vsel %vm2628, %v2785, 0
    %2793 = vmatprep.subr.bf16.mxu0 0
    %2794 = vmatpush1.bf16.msra.mxu0 %v2791
    %2795 = vmatprep.subr.bf16.mxu0 0
    %2796 = vmatpush1.bf16.msra.mxu0 0
    %2797 = vmatprep.subr.bf16.mxu0 0
    %2798 = vmatpush1.bf16.msra.mxu0 0
    %2799 = vmatprep.subr.bf16.mxu0 0
    %2800 = vmatpush1.bf16.msra.mxu0 0
    %2801 = vmatprep.subr.bf16.mxu0 0
    %2802 = vmatpush1.bf16.msra.mxu0 0
    %2803 = vmatprep.subr.bf16.mxu0 0
    %2804 = vmatpush1.bf16.msra.mxu0 0
    %2805 = vmatprep.subr.bf16.mxu0 0
    %2806 = vmatpush1.bf16.msra.mxu0 0
    %2807 = vmatprep.subr.bf16.mxu0 0
    %2808 = vmatpush1.bf16.msra.mxu0 0
    %2809 = vmatprep.subr.bf16.mxu0 0
    %2810 = vmatpush1.bf16.msra.mxu0 0
    %2811 = vmatprep.subr.bf16.mxu0 0
    %2812 = vmatpush1.bf16.msra.mxu0 0
    %2813 = vmatprep.subr.bf16.mxu0 0
    %2814 = vmatpush1.bf16.msra.mxu0 0
    %2815 = vmatprep.subr.bf16.mxu0 0
    %2816 = vmatpush1.bf16.msra.mxu0 0
    %2817 = vmatprep.subr.bf16.mxu0 0
    %2818 = vmatpush1.bf16.msra.mxu0 0
    %2819 = vmatprep.subr.bf16.mxu0 0
    %2820 = vmatpush1.bf16.msra.mxu0 0
    %2821 = vmatprep.subr.bf16.mxu0 0
    %2822 = vmatpush1.bf16.msra.mxu0 0
    %2823 = vmatprep.subr.bf16.mxu0 0
    %2824 = vmatpush1.bf16.msra.mxu0 0
    %2825 = vmatprep.mubr.bf16.mxu0 0
    %2826 = vmatmul.mubr.bf16.gmra.mrb[0].mxu0 %v2788
    %v2827 = vpop.f32.mrb[0].mxu0
    %v2828 = vadd.f32 0.0, %v2827
    %v2829 = vpop.f32.mrb[0].mxu0
    %v2830 = vpop.f32.mrb[0].mxu0
    %v2831 = vpop.f32.mrb[0].mxu0
    %2832 = vdwg.mxu0
    %v2833 = vld [vmem:[%s18] sm:$0x1]
    %v2834 = vpack.c.bf16 %v2828, %v2828
    %vm2835 = vcmask 31744
    %v2837 = vsel %vm2835, %v2833, 0
    %vm2839 = vcmask 1041408
    %v2841 = vsel %vm2839, %v2834, 0
    %2843 = vmatprep.subr.bf16.mxu0 0
    %2844 = vmatpush1.bf16.msra.mxu0 %v2841
    %2845 = vmatprep.subr.bf16.mxu0 0
    %2846 = vmatpush1.bf16.msra.mxu0 0
    %2847 = vmatprep.subr.bf16.mxu0 0
    %2848 = vmatpush1.bf16.msra.mxu0 0
    %2849 = vmatprep.subr.bf16.mxu0 0
    %2850 = vmatpush1.bf16.msra.mxu0 0
    %2851 = vmatprep.subr.bf16.mxu0 0
    %2852 = vmatpush1.bf16.msra.mxu0 0
    %2853 = vmatprep.subr.bf16.mxu0 0
    %2854 = vmatpush1.bf16.msra.mxu0 0
    %2855 = vmatprep.subr.bf16.mxu0 0
    %2856 = vmatpush1.bf16.msra.mxu0 0
    %2857 = vmatprep.subr.bf16.mxu0 0
    %2858 = vmatpush1.bf16.msra.mxu0 0
    %2859 = vmatprep.subr.bf16.mxu0 0
    %2860 = vmatpush1.bf16.msra.mxu0 0
    %2861 = vmatprep.subr.bf16.mxu0 0
    %2862 = vmatpush1.bf16.msra.mxu0 0
    %2863 = vmatprep.subr.bf16.mxu0 0
    %2864 = vmatpush1.bf16.msra.mxu0 0
    %2865 = vmatprep.subr.bf16.mxu0 0
    %2866 = vmatpush1.bf16.msra.mxu0 0
    %2867 = vmatprep.subr.bf16.mxu0 0
    %2868 = vmatpush1.bf16.msra.mxu0 0
    %2869 = vmatprep.subr.bf16.mxu0 0
    %2870 = vmatpush1.bf16.msra.mxu0 0
    %2871 = vmatprep.subr.bf16.mxu0 0
    %2872 = vmatpush1.bf16.msra.mxu0 0
    %2873 = vmatprep.subr.bf16.mxu0 0
    %2874 = vmatpush1.bf16.msra.mxu0 0
    %2875 = vmatprep.mubr.bf16.mxu0 0
    %2876 = vmatmul.mubr.bf16.gmra.mrb[0].mxu0 %v2837
    %v2877 = vpop.f32.mrb[0].mxu0
    %v2878 = vadd.f32 0.0, %v2877
    %v2879 = vpop.f32.mrb[0].mxu0
    %v2880 = vpop.f32.mrb[0].mxu0
    %v2881 = vpop.f32.mrb[0].mxu0
    %2882 = vdwg.mxu0
    %s2883 = scalar_lea.vmem %s18, 1
    %v2884 = vld [vmem:[%s2883] sm:$0x1]
    %v2886 = vsel %vm2835, %v2884, 0
    %2888 = vmatprep.subr.bf16.mxu0 0
    %2889 = vmatpush1.bf16.msra.mxu0 %v2841
    %2890 = vmatprep.subr.bf16.mxu0 0
    %2891 = vmatpush1.bf16.msra.mxu0 0
    %2892 = vmatprep.subr.bf16.mxu0 0
    %2893 = vmatpush1.bf16.msra.mxu0 0
    %2894 = vmatprep.subr.bf16.mxu0 0
    %2895 = vmatpush1.bf16.msra.mxu0 0
    %2896 = vmatprep.subr.bf16.mxu0 0
    %2897 = vmatpush1.bf16.msra.mxu0 0
    %2898 = vmatprep.subr.bf16.mxu0 0
    %2899 = vmatpush1.bf16.msra.mxu0 0
    %2900 = vmatprep.subr.bf16.mxu0 0
    %2901 = vmatpush1.bf16.msra.mxu0 0
    %2902 = vmatprep.subr.bf16.mxu0 0
    %2903 = vmatpush1.bf16.msra.mxu0 0
    %2904 = vmatprep.subr.bf16.mxu0 0
    %2905 = vmatpush1.bf16.msra.mxu0 0
    %2906 = vmatprep.subr.bf16.mxu0 0
    %2907 = vmatpush1.bf16.msra.mxu0 0
    %2908 = vmatprep.subr.bf16.mxu0 0
    %2909 = vmatpush1.bf16.msra.mxu0 0
    %2910 = vmatprep.subr.bf16.mxu0 0
    %2911 = vmatpush1.bf16.msra.mxu0 0
    %2912 = vmatprep.subr.bf16.mxu0 0
    %2913 = vmatpush1.bf16.msra.mxu0 0
    %2914 = vmatprep.subr.bf16.mxu0 0
    %2915 = vmatpush1.bf16.msra.mxu0 0
    %2916 = vmatprep.subr.bf16.mxu0 0
    %2917 = vmatpush1.bf16.msra.mxu0 0
    %2918 = vmatprep.subr.bf16.mxu0 0
    %2919 = vmatpush1.bf16.msra.mxu0 0
    %2920 = vmatprep.mubr.bf16.mxu0 0
    %2921 = vmatmul.mubr.bf16.gmra.mrb[0].mxu0 %v2886
    %v2922 = vpop.f32.mrb[0].mxu0
    %v2923 = vadd.f32 0.0, %v2922
    %v2924 = vpop.f32.mrb[0].mxu0
    %v2925 = vpop.f32.mrb[0].mxu0
    %v2926 = vpop.f32.mrb[0].mxu0
    %2927 = vdwg.mxu0
    %v2928 = vld [vmem:[%s19] sm:$0xf]
    %v2929 = vld [vmem:[%s19 + $0x4] sm:$0xf]
    %v2930 = vld [vmem:[%s19 + $0x8] sm:$0xf]
    %v2931 = vld [vmem:[%s19 + $0xc] sm:$0xf]
    %v2932 = vld [vmem:[%s19 + $0x10] sm:$0xf]
    %v2933 = vld [vmem:[%s19 + $0x14] sm:$0xf]
    %v2934 = vpack.c.bf16 %v2878, %v2878
    %s2935 = scalar_lea.vmem %s19, 24
    %v2936 = vld [vmem:[%s2935] sm:$0xf]
    %v2937 = vld [vmem:[%s2935 + $0x4] sm:$0xf]
    %v2938 = vld [vmem:[%s2935 + $0x8] sm:$0xf]
    %v2939 = vld [vmem:[%s2935 + $0xc] sm:$0xf]
    %v2940 = vld [vmem:[%s2935 + $0x10] sm:$0xf]
    %v2941 = vld [vmem:[%s2935 + $0x14] sm:$0xf]
    %v2942 = vpack.c.bf16 %v2923, %v2923
    %v2949 = vunpack.c.l.b16 %v2936
    %v2950 = vunpack.c.l.b16 %v2937
    %v2951 = vunpack.c.l.b16 %v2938
    %v2952 = vunpack.c.l.b16 %v2939
    %v2953 = vunpack.c.l.b16 %v2940
    %v2954 = vunpack.c.l.b16 %v2941
    %v2955 = vpack.c.b16 %v2950, %v2949
    %v2956 = vpack.c.b16 %v2952, %v2951
    %v2957 = vpack.c.b16 %v2954, %v2953
    %vm2961 = vcmask 392192
    %v2963 = vsel %vm2961, %v2942, 0
    %2965 = vmatprep.subr.bf16.mxu0 0
    %2966 = vmatpush1.bf16.msra.mxu0 %v2955
    %2967 = vmatprep.subr.bf16.mxu0 0
    %2968 = vmatpush1.bf16.msra.mxu0 %v2956
    %2969 = vmatprep.subr.bf16.mxu0 0
    %2970 = vmatpush1.bf16.msra.mxu0 %v2957
    %2971 = vmatprep.subr.bf16.mxu0 0
    %2972 = vmatpush1.bf16.msra.mxu0 0
    %2973 = vmatprep.subr.bf16.mxu0 0
    %2974 = vmatpush1.bf16.msra.mxu0 0
    %2975 = vmatprep.subr.bf16.mxu0 0
    %2976 = vmatpush1.bf16.msra.mxu0 0
    %2977 = vmatprep.subr.bf16.mxu0 0
    %2978 = vmatpush1.bf16.msra.mxu0 0
    %2979 = vmatprep.subr.bf16.mxu0 0
    %2980 = vmatpush1.bf16.msra.mxu0 0
    %2981 = vmatprep.subr.bf16.mxu0 0
    %2982 = vmatpush1.bf16.msra.mxu0 0
    %2983 = vmatprep.subr.bf16.mxu0 0
    %2984 = vmatpush1.bf16.msra.mxu0 0
    %2985 = vmatprep.subr.bf16.mxu0 0
    %2986 = vmatpush1.bf16.msra.mxu0 0
    %2987 = vmatprep.subr.bf16.mxu0 0
    %2988 = vmatpush1.bf16.msra.mxu0 0
    %2989 = vmatprep.subr.bf16.mxu0 0
    %2990 = vmatpush1.bf16.msra.mxu0 0
    %2991 = vmatprep.subr.bf16.mxu0 0
    %2992 = vmatpush1.bf16.msra.mxu0 0
    %2993 = vmatprep.subr.bf16.mxu0 0
    %2994 = vmatpush1.bf16.msra.mxu0 0
    %2995 = vmatprep.subr.bf16.mxu0 0
    %2996 = vmatpush1.bf16.msra.mxu0 0
    %2997 = vmatprep.mubr.bf16.mxu0 0
    %2998 = vmatmul.mubr.bf16.gmra.mrb[0].mxu0 %v2963
    %v2999 = vpop.f32.mrb[0].mxu0
    %v3000 = vadd.f32 0.0, %v2999
    %v3001 = vpop.f32.mrb[0].mxu0
    %v3002 = vpop.f32.mrb[0].mxu0
    %v3003 = vpop.f32.mrb[0].mxu0
    %3004 = vdwg.mxu0
    %v3011 = vunpack.c.l.b16 %v2928
    %v3012 = vunpack.c.l.b16 %v2929
    %v3013 = vunpack.c.l.b16 %v2930
    %v3014 = vunpack.c.l.b16 %v2931
    %v3015 = vunpack.c.l.b16 %v2932
    %v3016 = vunpack.c.l.b16 %v2933
    %v3017 = vpack.c.b16 %v3012, %v3011
    %v3018 = vpack.c.b16 %v3014, %v3013
    %v3019 = vpack.c.b16 %v3016, %v3015
    %v3024 = vsel %vm2961, %v2934, 0
    %3026 = vmatprep.subr.bf16.mxu0 0
    %3027 = vmatpush1.bf16.msra.mxu0 %v3017
    %3028 = vmatprep.subr.bf16.mxu0 0
    %3029 = vmatpush1.bf16.msra.mxu0 %v3018
    %3030 = vmatprep.subr.bf16.mxu0 0
    %3031 = vmatpush1.bf16.msra.mxu0 %v3019
    %3032 = vmatprep.subr.bf16.mxu0 0
    %3033 = vmatpush1.bf16.msra.mxu0 0
    %3034 = vmatprep.subr.bf16.mxu0 0
    %3035 = vmatpush1.bf16.msra.mxu0 0
    %3036 = vmatprep.subr.bf16.mxu0 0
    %3037 = vmatpush1.bf16.msra.mxu0 0
    %3038 = vmatprep.subr.bf16.mxu0 0
    %3039 = vmatpush1.bf16.msra.mxu0 0
    %3040 = vmatprep.subr.bf16.mxu0 0
    %3041 = vmatpush1.bf16.msra.mxu0 0
    %3042 = vmatprep.subr.bf16.mxu0 0
    %3043 = vmatpush1.bf16.msra.mxu0 0
    %3044 = vmatprep.subr.bf16.mxu0 0
    %3045 = vmatpush1.bf16.msra.mxu0 0
    %3046 = vmatprep.subr.bf16.mxu0 0
    %3047 = vmatpush1.bf16.msra.mxu0 0
    %3048 = vmatprep.subr.bf16.mxu0 0
    %3049 = vmatpush1.bf16.msra.mxu0 0
    %3050 = vmatprep.subr.bf16.mxu0 0
    %3051 = vmatpush1.bf16.msra.mxu0 0
    %3052 = vmatprep.subr.bf16.mxu0 0
    %3053 = vmatpush1.bf16.msra.mxu0 0
    %3054 = vmatprep.subr.bf16.mxu0 0
    %3055 = vmatpush1.bf16.msra.mxu0 0
    %3056 = vmatprep.subr.bf16.mxu0 0
    %3057 = vmatpush1.bf16.msra.mxu0 0
    %3058 = vmatprep.mubr.bf16.mxu0 0
    %3059 = vmatmul.mubr.bf16.gmra.mrb[0].mxu0 %v3024
    %v3060 = vpop.f32.mrb[0].mxu0
    %v3061 = vadd.f32 %v3000, %v3060
    %v3062 = vpop.f32.mrb[0].mxu0
    %v3063 = vpop.f32.mrb[0].mxu0
    %v3064 = vpop.f32.mrb[0].mxu0
    %3065 = vdwg.mxu0
    %v3066 = vld [vmem:[%s20] sm:$0x1]
    %v3068 = vlaneseq
    %v3069 = vshrl.u32 %v3068, 7
    %v3070 = vsub.s32 0, %v3069
    %v3071 = vrot.slane %v3066, %v3070
    %v3073 = vadd.f32 %v3061, %v3071
    %3074 = vst [vmem:[#allocation2] sm:$0x3] %v3073
    // Predicated region
    $region86: #{cifar10_forward.1} parent=1 // pred_check
      _
    $region87: #{cifar10_forward.1} parent=1 // pred_check_branch
      %3076 = sbr.rel (0) target = $region89
    $region88: #{cifar10_forward.1} parent=1 // pred_region
      %s3078 = ssub.s32 32, 32
      %3079 = vsyncadd [#allocation3], %s3078
      %s3081 = sshll.u32 [#allocation2], 4
      %s3082 = int_to_ptr.vmem [resolvable:$true] %s3081
      %3084 = dma.vmem_to_hbm [thread:$0]  %s3082, 32, %s21, [#allocation3]
    $region89: #{cifar10_forward.1} parent=1 // pred_fallthru
      _
    // Predicated region
    $region90: #{cifar10_forward.1} parent=1 // pred_check
      _
    $region91: #{cifar10_forward.1} parent=1 // pred_check_branch
      %3086 = sbr.rel (0) target = $region93
    $region92: #{cifar10_forward.1} parent=1 // pred_region
      %3087 = dma.done [#allocation3], 32
    $region93: #{cifar10_forward.1} parent=1 // pred_fallthru
      _
    %3088 = vsyncpa [#allocation3], 1

</llo_original>
